<compile_context>
chip_gen: v7x
topology: tpu7x:2x2x1
jax: 0.10.0
libtpu: 0.0.40
codegen_flags: <defaults>
</compile_context>

<pallas_src>
import functools

import jax
import jax.numpy as jnp
from jax import lax
from jax.experimental import pallas as pl
from jax.experimental.pallas import tpu as pltpu

_BIG = 1e9      # penalty that removes a pixel from the candidate set of the min-reduction
_THRESH = 1e8   # anything above this means "candidate set was empty" -> distance := 0
                # (requires (H-1)^2 + (W-1)^2 < _THRESH, i.e. images below ~7000 px per side)
_RB = 8         # (batch, class) rows per grid step (native sublane count)
_QT = 128       # q-candidate pixels per reduction step (divides any 128-padded S)
_PT_MAX = 2048  # output-pixel tile (lanes); sized for v7x's 64 MiB VMEM with big margin
_LANE = 128


def _round_up(x, m):
    return -(-x // m) * m


def _auto_sweep_dtype():
    """bf16 inner sweep on chips with a bf16 VALU (v6e / v7x); f32 elsewhere."""
    try:
        kind = jax.devices()[0].device_kind.lower()
    except Exception:
        return jnp.float32
    if any(tag in kind for tag in ("v6", "v7", "7x")):
        return jnp.bfloat16
    return jnp.float32


def _hausdorff_kernel(pen_pb_ref, pen_pf_ref, pen_tb_ref, pen_tf_ref,
                      probs_ref, tgt_ref, valid_ref,
                      out_ref,
                      acc_pb, acc_pf, acc_tb, acc_tf,
                      *, width, qt_size, pt_size, sweep_dtype):
    """Grid = (row-block g, p-tile p, q-tile qt); qt is the reduction axis.

    pen_*_ref : (1, QT, RB) pre-baked exclusion penalties at the q-tile, q-major
    probs     : (RB, PT)    softmax prob rows for this (g, p) block (resident across qt)
    tgt       : (RB, PT)    one-hot target rows (resident)
    valid     : (RB, PT)    1.0 where target != ignore_index (0 on padding; resident)
    out       : (RB, PT)    per-pixel loss, written only at the last qt step
    acc_*     : (RB, PT)    running min squared distance to {pred-bg, pred-fg, tgt-bg, tgt-fg}
    """
    qt = pl.program_id(2)
    n_qt = pl.num_programs(2)

    @pl.when(qt == 0)
    def _init():
        big = jnp.full(acc_pb.shape, _BIG, dtype=jnp.float32)
        acc_pb[...] = big
        acc_pf[...] = big
        acc_tb[...] = big
        acc_tf[...] = big

    # ---- in-kernel coordinates for this (q-tile, p-tile) pair (no coordinate inputs) ----
    inv_w = 1.0 / width
    q0 = qt * qt_size
    p0 = pl.program_id(1) * pt_size
    q_idx = (q0 + lax.broadcasted_iota(jnp.int32, (qt_size, 1), 0)).astype(jnp.float32)
    p_idx = (p0 + lax.broadcasted_iota(jnp.int32, (1, pt_size), 1)).astype(jnp.float32)
    # floor((idx + 0.5)/W) == idx // W for integer idx, robust to f32 rounding at these sizes.
    yq = jnp.floor((q_idx + 0.5) * inv_w)
    xq = q_idx - yq * width
    yp = jnp.floor((p_idx + 0.5) * inv_w)
    xp = p_idx - yp * width
    dy = yq - yp                                   # (QT, 1) - (1, PT) -> (QT, PT)
    dx = xq - xp
    d2 = (dy * dy + dx * dx).astype(sweep_dtype)   # (QT, PT), hot-loop dtype

    pen_pb = pen_pb_ref[0].astype(sweep_dtype)     # (QT, RB)
    pen_pf = pen_pf_ref[0].astype(sweep_dtype)
    pen_tb = pen_tb_ref[0].astype(sweep_dtype)
    pen_tf = pen_tf_ref[0].astype(sweep_dtype)

    # Fused masked-min sweep: d2 is computed once and reused for all 4 masks x RB rows.
    rows_pb, rows_pf, rows_tb, rows_tf = [], [], [], []
    for r in range(acc_pb.shape[0]):               # statically unrolled over RB rows
        rows_pb.append(jnp.min(d2 + pen_pb[:, r:r + 1], axis=0, keepdims=True))
        rows_pf.append(jnp.min(d2 + pen_pf[:, r:r + 1], axis=0, keepdims=True))
        rows_tb.append(jnp.min(d2 + pen_tb[:, r:r + 1], axis=0, keepdims=True))
        rows_tf.append(jnp.min(d2 + pen_tf[:, r:r + 1], axis=0, keepdims=True))

    # One full-tile (RB, PT) update per accumulator instead of 32 single-sublane RMWs.
    acc_pb[...] = jnp.minimum(acc_pb[...], jnp.concatenate(rows_pb, axis=0).astype(jnp.float32))
    acc_pf[...] = jnp.minimum(acc_pf[...], jnp.concatenate(rows_pf, axis=0).astype(jnp.float32))
    acc_tb[...] = jnp.minimum(acc_tb[...], jnp.concatenate(rows_tb, axis=0).astype(jnp.float32))
    acc_tf[...] = jnp.minimum(acc_tf[...], jnp.concatenate(rows_tf, axis=0).astype(jnp.float32))

    @pl.when(qt == n_qt - 1)
    def _finalize():
        p_soft = probs_ref[...]                    # (RB, PT)
        t_hot = tgt_ref[...]
        valid = valid_ref[...]
        m_pred = (p_soft > 0.5).astype(jnp.float32)

        def clamp(x):                              # empty candidate set -> distance 0
            return jnp.where(x < _THRESH, x, 0.0)

        dt_pred2 = m_pred * clamp(acc_pb[...]) + (1.0 - m_pred) * clamp(acc_pf[...])
        dt_tgt2 = t_hot * clamp(acc_tb[...]) + (1.0 - t_hot) * clamp(acc_tf[...])
        err = (p_soft - t_hot) ** 2
        out_ref[...] = valid * err * (dt_pred2 + dt_tgt2)


def hausdorff_loss(logits, targets, *, ignore_index=-100, reduction="mean", sweep_dtype=None):
    """logits: (B, C, H, W) float; targets: (B, H, W) int (values in [0, C) or ignore_index)."""
    B, C, H, W = logits.shape
    S = H * W
    G = B * C

    if (H - 1) ** 2 + (W - 1) ** 2 >= _THRESH:
        raise ValueError("image too large for the fixed _BIG/_THRESH constants "
                         "(needs (H-1)^2+(W-1)^2 < 1e8)")

    # ---- tiling: lane-dense p tiles sized for the smallest-VMEM generation (v7x) ----
    S_128 = _round_up(S, _LANE)
    PT = min(_PT_MAX, S_128)                 # multiple of 128
    S_pad = _round_up(S, PT)
    NP = S_pad // PT
    QT = _QT
    n_qt = S_pad // QT
    G_pad = _round_up(G, _RB)
    NG = G_pad // _RB

    # ---- glue (XLA): softmax over classes, one-hot targets, pre-baked penalties ----
    probs = jax.nn.softmax(logits.astype(jnp.float32), axis=1)         # (B, C, H, W)
    probs_flat = probs.reshape(G, S)                                    # (B*C, S)

    tgt = targets.reshape(B, S)
    valid = (tgt != ignore_index).astype(jnp.float32)                   # (B, S)
    onehot = jax.nn.one_hot(jnp.where(tgt == ignore_index, 0, tgt), C,
                            dtype=jnp.float32) * valid[:, :, None]      # (B, S, C)
    onehot_flat = jnp.transpose(onehot, (0, 2, 1)).reshape(G, S)        # (B*C, S)
    valid_rows = jnp.broadcast_to(valid[:, None, :], (B, C, S)).reshape(G, S)

    def pad_rows(x):                          # (G, S) -> (G_pad, S_pad), zero padded
        return jnp.pad(x, ((0, G_pad - G), (0, S_pad - S)))

    probs_p = pad_rows(probs_flat)
    onehot_p = pad_rows(onehot_flat)
    valid_p = pad_rows(valid_rows)

    # Pre-baked exclusion penalties (no compare/cast/complement in the inner loop).
    # Padded q pixels get _BIG in every mask so they never win a min.
    fg_pred = (probs_p > 0.5).astype(jnp.float32)
    fg_tgt = onehot_p
    qpad = (jnp.arange(S_pad) >= S).astype(jnp.float32)[None, :]
    pen_pb = (fg_pred + qpad) * _BIG          # exclude predicted-fg q  -> dist to pred-bg
    pen_pf = ((1.0 - fg_pred) + qpad) * _BIG  # exclude predicted-bg q  -> dist to pred-fg
    pen_tb = (fg_tgt + qpad) * _BIG
    pen_tf = ((1.0 - fg_tgt) + qpad) * _BIG

    def qmajor(x):   # (G_pad, S_pad) -> (NG, S_pad, RB): q-major, no in-kernel transposes
        return x.reshape(NG, _RB, S_pad).transpose(0, 2, 1)

    pens_q = [qmajor(x) for x in (pen_pb, pen_pf, pen_tb, pen_tf)]

    if sweep_dtype is None:
        sweep_dtype = _auto_sweep_dtype()

    def _run(sdt):
        kernel = functools.partial(_hausdorff_kernel, width=W, qt_size=QT,
                                   pt_size=PT, sweep_dtype=sdt)
        pen_spec = pl.BlockSpec((1, QT, _RB), lambda g, p, q: (g, q, 0))
        row_spec = pl.BlockSpec((_RB, PT), lambda g, p, q: (g, p))
        return pl.pallas_call(
            kernel,
            out_shape=jax.ShapeDtypeStruct((G_pad, S_pad), jnp.float32),
            grid_spec=pltpu.PrefetchScalarGridSpec(
                num_scalar_prefetch=0,
                grid=(NG, NP, n_qt),
                in_specs=[pen_spec, pen_spec, pen_spec, pen_spec,
                          row_spec, row_spec, row_spec],
                out_specs=row_spec,
                scratch_shapes=[pltpu.VMEM((_RB, PT), jnp.float32)] * 4,
            ),
            compiler_params=pltpu.CompilerParams(
                dimension_semantics=("parallel", "parallel", "arbitrary"),
                vmem_limit_bytes=32 * 1024 * 1024,
            ),
        )(*pens_q, probs_p, onehot_p, valid_p)

    if jnp.dtype(sweep_dtype) == jnp.dtype(jnp.float32):
        lossmap = _run(jnp.float32)
    else:
        try:
            lossmap = _run(sweep_dtype)
        except Exception:   # bf16 sweep rejected by this Mosaic/chip -> safe f32 fallback
            lossmap = _run(jnp.float32)

    if reduction == "sum":
        return jnp.sum(lossmap)
    if reduction == "mean":
        denom = jnp.maximum(jnp.sum(valid) * C, 1.0)   # mean over valid (b, c, pixel) entries
        return jnp.sum(lossmap) / denom
    # 'none'
    return lossmap[:G, :S].reshape(B, C, H, W)


def _reference_loss(logits, targets, ignore_index=-100, reduction="mean"):
    """Pure-JAX O(S^2) reference with identical semantics (small shapes only)."""
    B, C, H, W = logits.shape
    S = H * W
    probs = jax.nn.softmax(logits.astype(jnp.float32), axis=1).reshape(B * C, S)
    tgt = targets.reshape(B, S)
    valid = (tgt != ignore_index).astype(jnp.float32)
    onehot = jax.nn.one_hot(jnp.where(tgt == ignore_index, 0, tgt), C,
                            dtype=jnp.float32) * valid[:, :, None]
    onehot = jnp.transpose(onehot, (0, 2, 1)).reshape(B * C, S)
    valid_rows = jnp.broadcast_to(valid[:, None, :], (B, C, S)).reshape(B * C, S)

    ys, xs = jnp.meshgrid(jnp.arange(H, dtype=jnp.float32),
                          jnp.arange(W, dtype=jnp.float32), indexing="ij")
    ys, xs = ys.reshape(S), xs.reshape(S)
    d2 = (ys[:, None] - ys[None, :]) ** 2 + (xs[:, None] - xs[None, :]) ** 2   # (q, p)

    def masked_min(incl):   # incl: (G, S) over q, 1 = candidate
        pen = (1.0 - incl) * _BIG
        val = jnp.min(d2[None, :, :] + pen[:, :, None], axis=1)
        return jnp.where(val < _THRESH, val, 0.0)

    m_pred = (probs > 0.5).astype(jnp.float32)
    dt_pred2 = m_pred * masked_min(1.0 - m_pred) + (1.0 - m_pred) * masked_min(m_pred)
    dt_tgt2 = onehot * masked_min(1.0 - onehot) + (1.0 - onehot) * masked_min(onehot)
    lossmap = valid_rows * (probs - onehot) ** 2 * (dt_pred2 + dt_tgt2)
    if reduction == "sum":
        return jnp.sum(lossmap)
    if reduction == "mean":
        return jnp.sum(lossmap) / jnp.maximum(jnp.sum(valid) * C, 1.0)
    return lossmap.reshape(B, C, H, W)


if __name__ == "__main__":
    key = jax.random.PRNGKey(0)
    B, C, H, W = 2, 4, 16, 16
    k1, k2 = jax.random.split(key)
    logits = jax.random.normal(k1, (B, C, H, W), dtype=jnp.float32)
    targets = jax.random.randint(k2, (B, H, W), 0, C).astype(jnp.int32)
    # add a few ignore_index pixels deterministically
    targets = targets.at[0, 0, :4].set(-100)

    loss = hausdorff_loss(logits, targets, ignore_index=-100, reduction="mean")
    loss = jax.block_until_ready(loss)
    ref = jax.block_until_ready(_reference_loss(logits, targets, -100, "mean"))

    assert loss.shape == () and bool(jnp.isfinite(loss))
    # generous tolerance: the inner sweep may run in bf16 on v6e/v7x
    assert jnp.allclose(loss, ref, rtol=5e-2, atol=1e-5), (float(loss), float(ref))
    print("KERNEL_OK")
</pallas_src>

<mosaic_0001>
module attributes {stable_mosaic.version = 11 : i64} {
  func.func @_hausdorff_kernel(%arg0: i32, %arg1: i32, %arg2: i32, %arg3: memref<1x128x8xf32, #tpu.memory_space<vmem>>, %arg4: memref<1x128x8xf32, #tpu.memory_space<vmem>>, %arg5: memref<1x128x8xf32, #tpu.memory_space<vmem>>, %arg6: memref<1x128x8xf32, #tpu.memory_space<vmem>>, %arg7: memref<8x256xf32, #tpu.memory_space<vmem>>, %arg8: memref<8x256xf32, #tpu.memory_space<vmem>>, %arg9: memref<8x256xf32, #tpu.memory_space<vmem>>, %arg10: memref<8x256xf32, #tpu.memory_space<vmem>>, %arg11: memref<8x256xf32, #tpu.memory_space<vmem>>, %arg12: memref<8x256xf32, #tpu.memory_space<vmem>>, %arg13: memref<8x256xf32, #tpu.memory_space<vmem>>, %arg14: memref<8x256xf32, #tpu.memory_space<vmem>>) attributes {dimension_semantics = [#tpu.dimension_semantics<parallel>, #tpu.dimension_semantics<parallel>, #tpu.dimension_semantics<arbitrary>], iteration_bounds = array<i64: 1, 1, 2>, scalar_prefetch = 0 : i64, scratch_operands = 4 : i64, tpu.core_type = #tpu.core_type<tc>, window_params = [{transform_indices = @transform_0, window_bounds = array<i64: 1, 128, 8>}, {transform_indices = @transform_1, window_bounds = array<i64: 1, 128, 8>}, {transform_indices = @transform_2, window_bounds = array<i64: 1, 128, 8>}, {transform_indices = @transform_3, window_bounds = array<i64: 1, 128, 8>}, {transform_indices = @transform_4, window_bounds = array<i64: 8, 256>}, {transform_indices = @transform_5, window_bounds = array<i64: 8, 256>}, {transform_indices = @transform_6, window_bounds = array<i64: 8, 256>}, {transform_indices = @transform_7, window_bounds = array<i64: 8, 256>}]} {
    %c0_i32 = arith.constant 0 : i32
    %0 = arith.cmpi eq, %arg2, %c0_i32 : i32
    %1 = arith.extui %0 : i1 to i32
    %c0_i32_0 = arith.constant 0 : i32
    %2 = arith.cmpi ne, %1, %c0_i32_0 : i32
    scf.if %2 {
      %cst_66 = arith.constant 1.000000e+09 : f32
      %225 = vector.broadcast %cst_66 : f32 to vector<8x256xf32>
      %c0_67 = arith.constant 0 : index
      %c0_68 = arith.constant 0 : index
      %226 = vector.load %arg11[%c0_67, %c0_68] : memref<8x256xf32, #tpu.memory_space<vmem>>, vector<8x256xf32>
      tpu.vector_store %arg11[%c0_67, %c0_68], %225 {strides = array<i32>} : memref<8x256xf32, #tpu.memory_space<vmem>>, vector<8x256xf32>,
      %c0_69 = arith.constant 0 : index
      %c0_70 = arith.constant 0 : index
      %227 = vector.load %arg12[%c0_69, %c0_70] : memref<8x256xf32, #tpu.memory_space<vmem>>, vector<8x256xf32>
      tpu.vector_store %arg12[%c0_69, %c0_70], %225 {strides = array<i32>} : memref<8x256xf32, #tpu.memory_space<vmem>>, vector<8x256xf32>,
      %c0_71 = arith.constant 0 : index
      %c0_72 = arith.constant 0 : index
      %228 = vector.load %arg13[%c0_71, %c0_72] : memref<8x256xf32, #tpu.memory_space<vmem>>, vector<8x256xf32>
      tpu.vector_store %arg13[%c0_71, %c0_72], %225 {strides = array<i32>} : memref<8x256xf32, #tpu.memory_space<vmem>>, vector<8x256xf32>,
      %c0_73 = arith.constant 0 : index
      %c0_74 = arith.constant 0 : index
      %229 = vector.load %arg14[%c0_73, %c0_74] : memref<8x256xf32, #tpu.memory_space<vmem>>, vector<8x256xf32>
      tpu.vector_store %arg14[%c0_73, %c0_74], %225 {strides = array<i32>} : memref<8x256xf32, #tpu.memory_space<vmem>>, vector<8x256xf32>,
    } else {
    }
    %c128_i32 = arith.constant 128 : i32
    %3 = arith.muli %arg2, %c128_i32 : i32
    %c256_i32 = arith.constant 256 : i32
    %4 = arith.muli %arg1, %c256_i32 : i32
    %5 = tpu.iota {dimensions = array<i32: 0>} : vector<128x1xi32>
    %6 = vector.broadcast %3 : i32 to vector<128x1xi32>
    %7 = arith.addi %6, %5 : vector<128x1xi32>
    %8 = arith.sitofp %7 : vector<128x1xi32> to vector<128x1xf32>
    %9 = tpu.iota {dimensions = array<i32: 1>} : vector<1x256xi32>
    %10 = vector.broadcast %4 : i32 to vector<1x256xi32>
    %11 = arith.addi %10, %9 : vector<1x256xi32>
    %12 = arith.sitofp %11 : vector<1x256xi32> to vector<1x256xf32>
    %cst = arith.constant 5.000000e-01 : f32
    %13 = vector.broadcast %cst : f32 to vector<128x1xf32>
    %14 = arith.addf %8, %13 : vector<128x1xf32>
    %cst_1 = arith.constant 6.250000e-02 : f32
    %15 = vector.broadcast %cst_1 : f32 to vector<128x1xf32>
    %16 = arith.mulf %14, %15 : vector<128x1xf32>
    %17 = math.floor %16 : vector<128x1xf32>
    %cst_2 = arith.constant 1.600000e+01 : f32
    %18 = vector.broadcast %cst_2 : f32 to vector<128x1xf32>
    %19 = arith.mulf %17, %18 : vector<128x1xf32>
    %20 = arith.subf %8, %19 : vector<128x1xf32>
    %cst_3 = arith.constant 5.000000e-01 : f32
    %21 = vector.broadcast %cst_3 : f32 to vector<1x256xf32>
    %22 = arith.addf %12, %21 : vector<1x256xf32>
    %cst_4 = arith.constant 6.250000e-02 : f32
    %23 = vector.broadcast %cst_4 : f32 to vector<1x256xf32>
    %24 = arith.mulf %22, %23 : vector<1x256xf32>
    %25 = math.floor %24 : vector<1x256xf32>
    %cst_5 = arith.constant 1.600000e+01 : f32
    %26 = vector.broadcast %cst_5 : f32 to vector<1x256xf32>
    %27 = arith.mulf %25, %26 : vector<1x256xf32>
    %28 = arith.subf %12, %27 : vector<1x256xf32>
    %29 = vector.broadcast %17 : vector<128x1xf32> to vector<128x256xf32>
    %30 = vector.broadcast %25 : vector<1x256xf32> to vector<128x256xf32>
    %31 = arith.subf %29, %30 : vector<128x256xf32>
    %32 = vector.broadcast %20 : vector<128x1xf32> to vector<128x256xf32>
    %33 = vector.broadcast %28 : vector<1x256xf32> to vector<128x256xf32>
    %34 = arith.subf %32, %33 : vector<128x256xf32>
    %35 = arith.mulf %31, %31 : vector<128x256xf32>
    %36 = arith.mulf %34, %34 : vector<128x256xf32>
    %37 = arith.addf %35, %36 : vector<128x256xf32>
    %c0 = arith.constant 0 : index
    %c0_6 = arith.constant 0 : index
    %c0_7 = arith.constant 0 : index
    %38 = vector.load %arg3[%c0, %c0_6, %c0_7] : memref<1x128x8xf32, #tpu.memory_space<vmem>>, vector<1x128x8xf32>
    %39 = vector.shape_cast %38 : vector<1x128x8xf32> to vector<128x8xf32>
    %c0_8 = arith.constant 0 : index
    %c0_9 = arith.constant 0 : index
    %c0_10 = arith.constant 0 : index
    %40 = vector.load %arg4[%c0_8, %c0_9, %c0_10] : memref<1x128x8xf32, #tpu.memory_space<vmem>>, vector<1x128x8xf32>
    %41 = vector.shape_cast %40 : vector<1x128x8xf32> to vector<128x8xf32>
    %c0_11 = arith.constant 0 : index
    %c0_12 = arith.constant 0 : index
    %c0_13 = arith.constant 0 : index
    %42 = vector.load %arg5[%c0_11, %c0_12, %c0_13] : memref<1x128x8xf32, #tpu.memory_space<vmem>>, vector<1x128x8xf32>
    %43 = vector.shape_cast %42 : vector<1x128x8xf32> to vector<128x8xf32>
    %c0_14 = arith.constant 0 : index
    %c0_15 = arith.constant 0 : index
    %c0_16 = arith.constant 0 : index
    %44 = vector.load %arg6[%c0_14, %c0_15, %c0_16] : memref<1x128x8xf32, #tpu.memory_space<vmem>>, vector<1x128x8xf32>
    %45 = vector.shape_cast %44 : vector<1x128x8xf32> to vector<128x8xf32>
    %46 = vector.extract_strided_slice %39 {offsets = [0, 0], sizes = [128, 1], strides = [1, 1]} : vector<128x8xf32> to vector<128x1xf32>
    %47 = vector.broadcast %46 : vector<128x1xf32> to vector<128x256xf32>
    %48 = arith.addf %37, %47 : vector<128x256xf32>
    %cst_17 = arith.constant dense<0x7F800000> : vector<256xf32>
    %49 = vector.multi_reduction <minimumf>, %48, %cst_17 [0] : vector<128x256xf32> to vector<256xf32>
    %50 = vector.shape_cast %49 : vector<256xf32> to vector<1x256xf32>
    %51 = vector.extract_strided_slice %41 {offsets = [0, 0], sizes = [128, 1], strides = [1, 1]} : vector<128x8xf32> to vector<128x1xf32>
    %52 = vector.broadcast %51 : vector<128x1xf32> to vector<128x256xf32>
    %53 = arith.addf %37, %52 : vector<128x256xf32>
    %cst_18 = arith.constant dense<0x7F800000> : vector<256xf32>
    %54 = vector.multi_reduction <minimumf>, %53, %cst_18 [0] : vector<128x256xf32> to vector<256xf32>
    %55 = vector.shape_cast %54 : vector<256xf32> to vector<1x256xf32>
    %56 = vector.extract_strided_slice %43 {offsets = [0, 0], sizes = [128, 1], strides = [1, 1]} : vector<128x8xf32> to vector<128x1xf32>
    %57 = vector.broadcast %56 : vector<128x1xf32> to vector<128x256xf32>
    %58 = arith.addf %37, %57 : vector<128x256xf32>
    %cst_19 = arith.constant dense<0x7F800000> : vector<256xf32>
    %59 = vector.multi_reduction <minimumf>, %58, %cst_19 [0] : vector<128x256xf32> to vector<256xf32>
    %60 = vector.shape_cast %59 : vector<256xf32> to vector<1x256xf32>
    %61 = vector.extract_strided_slice %45 {offsets = [0, 0], sizes = [128, 1], strides = [1, 1]} : vector<128x8xf32> to vector<128x1xf32>
    %62 = vector.broadcast %61 : vector<128x1xf32> to vector<128x256xf32>
    %63 = arith.addf %37, %62 : vector<128x256xf32>
    %cst_20 = arith.constant dense<0x7F800000> : vector<256xf32>
    %64 = vector.multi_reduction <minimumf>, %63, %cst_20 [0] : vector<128x256xf32> to vector<256xf32>
    %65 = vector.shape_cast %64 : vector<256xf32> to vector<1x256xf32>
    %66 = vector.extract_strided_slice %39 {offsets = [0, 1], sizes = [128, 1], strides = [1, 1]} : vector<128x8xf32> to vector<128x1xf32>
    %67 = vector.broadcast %66 : vector<128x1xf32> to vector<128x256xf32>
    %68 = arith.addf %37, %67 : vector<128x256xf32>
    %cst_21 = arith.constant dense<0x7F800000> : vector<256xf32>
    %69 = vector.multi_reduction <minimumf>, %68, %cst_21 [0] : vector<128x256xf32> to vector<256xf32>
    %70 = vector.shape_cast %69 : vector<256xf32> to vector<1x256xf32>
    %71 = vector.extract_strided_slice %41 {offsets = [0, 1], sizes = [128, 1], strides = [1, 1]} : vector<128x8xf32> to vector<128x1xf32>
    %72 = vector.broadcast %71 : vector<128x1xf32> to vector<128x256xf32>
    %73 = arith.addf %37, %72 : vector<128x256xf32>
    %cst_22 = arith.constant dense<0x7F800000> : vector<256xf32>
    %74 = vector.multi_reduction <minimumf>, %73, %cst_22 [0] : vector<128x256xf32> to vector<256xf32>
    %75 = vector.shape_cast %74 : vector<256xf32> to vector<1x256xf32>
    %76 = vector.extract_strided_slice %43 {offsets = [0, 1], sizes = [128, 1], strides = [1, 1]} : vector<128x8xf32> to vector<128x1xf32>
    %77 = vector.broadcast %76 : vector<128x1xf32> to vector<128x256xf32>
    %78 = arith.addf %37, %77 : vector<128x256xf32>
    %cst_23 = arith.constant dense<0x7F800000> : vector<256xf32>
    %79 = vector.multi_reduction <minimumf>, %78, %cst_23 [0] : vector<128x256xf32> to vector<256xf32>
    %80 = vector.shape_cast %79 : vector<256xf32> to vector<1x256xf32>
    %81 = vector.extract_strided_slice %45 {offsets = [0, 1], sizes = [128, 1], strides = [1, 1]} : vector<128x8xf32> to vector<128x1xf32>
    %82 = vector.broadcast %81 : vector<128x1xf32> to vector<128x256xf32>
    %83 = arith.addf %37, %82 : vector<128x256xf32>
    %cst_24 = arith.constant dense<0x7F800000> : vector<256xf32>
    %84 = vector.multi_reduction <minimumf>, %83, %cst_24 [0] : vector<128x256xf32> to vector<256xf32>
    %85 = vector.shape_cast %84 : vector<256xf32> to vector<1x256xf32>
    %86 = vector.extract_strided_slice %39 {offsets = [0, 2], sizes = [128, 1], strides = [1, 1]} : vector<128x8xf32> to vector<128x1xf32>
    %87 = vector.broadcast %86 : vector<128x1xf32> to vector<128x256xf32>
    %88 = arith.addf %37, %87 : vector<128x256xf32>
    %cst_25 = arith.constant dense<0x7F800000> : vector<256xf32>
    %89 = vector.multi_reduction <minimumf>, %88, %cst_25 [0] : vector<128x256xf32> to vector<256xf32>
    %90 = vector.shape_cast %89 : vector<256xf32> to vector<1x256xf32>
    %91 = vector.extract_strided_slice %41 {offsets = [0, 2], sizes = [128, 1], strides = [1, 1]} : vector<128x8xf32> to vector<128x1xf32>
    %92 = vector.broadcast %91 : vector<128x1xf32> to vector<128x256xf32>
    %93 = arith.addf %37, %92 : vector<128x256xf32>
    %cst_26 = arith.constant dense<0x7F800000> : vector<256xf32>
    %94 = vector.multi_reduction <minimumf>, %93, %cst_26 [0] : vector<128x256xf32> to vector<256xf32>
    %95 = vector.shape_cast %94 : vector<256xf32> to vector<1x256xf32>
    %96 = vector.extract_strided_slice %43 {offsets = [0, 2], sizes = [128, 1], strides = [1, 1]} : vector<128x8xf32> to vector<128x1xf32>
    %97 = vector.broadcast %96 : vector<128x1xf32> to vector<128x256xf32>
    %98 = arith.addf %37, %97 : vector<128x256xf32>
    %cst_27 = arith.constant dense<0x7F800000> : vector<256xf32>
    %99 = vector.multi_reduction <minimumf>, %98, %cst_27 [0] : vector<128x256xf32> to vector<256xf32>
    %100 = vector.shape_cast %99 : vector<256xf32> to vector<1x256xf32>
    %101 = vector.extract_strided_slice %45 {offsets = [0, 2], sizes = [128, 1], strides = [1, 1]} : vector<128x8xf32> to vector<128x1xf32>
    %102 = vector.broadcast %101 : vector<128x1xf32> to vector<128x256xf32>
    %103 = arith.addf %37, %102 : vector<128x256xf32>
    %cst_28 = arith.constant dense<0x7F800000> : vector<256xf32>
    %104 = vector.multi_reduction <minimumf>, %103, %cst_28 [0] : vector<128x256xf32> to vector<256xf32>
    %105 = vector.shape_cast %104 : vector<256xf32> to vector<1x256xf32>
    %106 = vector.extract_strided_slice %39 {offsets = [0, 3], sizes = [128, 1], strides = [1, 1]} : vector<128x8xf32> to vector<128x1xf32>
    %107 = vector.broadcast %106 : vector<128x1xf32> to vector<128x256xf32>
    %108 = arith.addf %37, %107 : vector<128x256xf32>
    %cst_29 = arith.constant dense<0x7F800000> : vector<256xf32>
    %109 = vector.multi_reduction <minimumf>, %108, %cst_29 [0] : vector<128x256xf32> to vector<256xf32>
    %110 = vector.shape_cast %109 : vector<256xf32> to vector<1x256xf32>
    %111 = vector.extract_strided_slice %41 {offsets = [0, 3], sizes = [128, 1], strides = [1, 1]} : vector<128x8xf32> to vector<128x1xf32>
    %112 = vector.broadcast %111 : vector<128x1xf32> to vector<128x256xf32>
    %113 = arith.addf %37, %112 : vector<128x256xf32>
    %cst_30 = arith.constant dense<0x7F800000> : vector<256xf32>
    %114 = vector.multi_reduction <minimumf>, %113, %cst_30 [0] : vector<128x256xf32> to vector<256xf32>
    %115 = vector.shape_cast %114 : vector<256xf32> to vector<1x256xf32>
    %116 = vector.extract_strided_slice %43 {offsets = [0, 3], sizes = [128, 1], strides = [1, 1]} : vector<128x8xf32> to vector<128x1xf32>
    %117 = vector.broadcast %116 : vector<128x1xf32> to vector<128x256xf32>
    %118 = arith.addf %37, %117 : vector<128x256xf32>
    %cst_31 = arith.constant dense<0x7F800000> : vector<256xf32>
    %119 = vector.multi_reduction <minimumf>, %118, %cst_31 [0] : vector<128x256xf32> to vector<256xf32>
    %120 = vector.shape_cast %119 : vector<256xf32> to vector<1x256xf32>
    %121 = vector.extract_strided_slice %45 {offsets = [0, 3], sizes = [128, 1], strides = [1, 1]} : vector<128x8xf32> to vector<128x1xf32>
    %122 = vector.broadcast %121 : vector<128x1xf32> to vector<128x256xf32>
    %123 = arith.addf %37, %122 : vector<128x256xf32>
    %cst_32 = arith.constant dense<0x7F800000> : vector<256xf32>
    %124 = vector.multi_reduction <minimumf>, %123, %cst_32 [0] : vector<128x256xf32> to vector<256xf32>
    %125 = vector.shape_cast %124 : vector<256xf32> to vector<1x256xf32>
    %126 = vector.extract_strided_slice %39 {offsets = [0, 4], sizes = [128, 1], strides = [1, 1]} : vector<128x8xf32> to vector<128x1xf32>
    %127 = vector.broadcast %126 : vector<128x1xf32> to vector<128x256xf32>
    %128 = arith.addf %37, %127 : vector<128x256xf32>
    %cst_33 = arith.constant dense<0x7F800000> : vector<256xf32>
    %129 = vector.multi_reduction <minimumf>, %128, %cst_33 [0] : vector<128x256xf32> to vector<256xf32>
    %130 = vector.shape_cast %129 : vector<256xf32> to vector<1x256xf32>
    %131 = vector.extract_strided_slice %41 {offsets = [0, 4], sizes = [128, 1], strides = [1, 1]} : vector<128x8xf32> to vector<128x1xf32>
    %132 = vector.broadcast %131 : vector<128x1xf32> to vector<128x256xf32>
    %133 = arith.addf %37, %132 : vector<128x256xf32>
    %cst_34 = arith.constant dense<0x7F800000> : vector<256xf32>
    %134 = vector.multi_reduction <minimumf>, %133, %cst_34 [0] : vector<128x256xf32> to vector<256xf32>
    %135 = vector.shape_cast %134 : vector<256xf32> to vector<1x256xf32>
    %136 = vector.extract_strided_slice %43 {offsets = [0, 4], sizes = [128, 1], strides = [1, 1]} : vector<128x8xf32> to vector<128x1xf32>
    %137 = vector.broadcast %136 : vector<128x1xf32> to vector<128x256xf32>
    %138 = arith.addf %37, %137 : vector<128x256xf32>
    %cst_35 = arith.constant dense<0x7F800000> : vector<256xf32>
    %139 = vector.multi_reduction <minimumf>, %138, %cst_35 [0] : vector<128x256xf32> to vector<256xf32>
    %140 = vector.shape_cast %139 : vector<256xf32> to vector<1x256xf32>
    %141 = vector.extract_strided_slice %45 {offsets = [0, 4], sizes = [128, 1], strides = [1, 1]} : vector<128x8xf32> to vector<128x1xf32>
    %142 = vector.broadcast %141 : vector<128x1xf32> to vector<128x256xf32>
    %143 = arith.addf %37, %142 : vector<128x256xf32>
    %cst_36 = arith.constant dense<0x7F800000> : vector<256xf32>
    %144 = vector.multi_reduction <minimumf>, %143, %cst_36 [0] : vector<128x256xf32> to vector<256xf32>
    %145 = vector.shape_cast %144 : vector<256xf32> to vector<1x256xf32>
    %146 = vector.extract_strided_slice %39 {offsets = [0, 5], sizes = [128, 1], strides = [1, 1]} : vector<128x8xf32> to vector<128x1xf32>
    %147 = vector.broadcast %146 : vector<128x1xf32> to vector<128x256xf32>
    %148 = arith.addf %37, %147 : vector<128x256xf32>
    %cst_37 = arith.constant dense<0x7F800000> : vector<256xf32>
    %149 = vector.multi_reduction <minimumf>, %148, %cst_37 [0] : vector<128x256xf32> to vector<256xf32>
    %150 = vector.shape_cast %149 : vector<256xf32> to vector<1x256xf32>
    %151 = vector.extract_strided_slice %41 {offsets = [0, 5], sizes = [128, 1], strides = [1, 1]} : vector<128x8xf32> to vector<128x1xf32>
    %152 = vector.broadcast %151 : vector<128x1xf32> to vector<128x256xf32>
    %153 = arith.addf %37, %152 : vector<128x256xf32>
    %cst_38 = arith.constant dense<0x7F800000> : vector<256xf32>
    %154 = vector.multi_reduction <minimumf>, %153, %cst_38 [0] : vector<128x256xf32> to vector<256xf32>
    %155 = vector.shape_cast %154 : vector<256xf32> to vector<1x256xf32>
    %156 = vector.extract_strided_slice %43 {offsets = [0, 5], sizes = [128, 1], strides = [1, 1]} : vector<128x8xf32> to vector<128x1xf32>
    %157 = vector.broadcast %156 : vector<128x1xf32> to vector<128x256xf32>
    %158 = arith.addf %37, %157 : vector<128x256xf32>
    %cst_39 = arith.constant dense<0x7F800000> : vector<256xf32>
    %159 = vector.multi_reduction <minimumf>, %158, %cst_39 [0] : vector<128x256xf32> to vector<256xf32>
    %160 = vector.shape_cast %159 : vector<256xf32> to vector<1x256xf32>
    %161 = vector.extract_strided_slice %45 {offsets = [0, 5], sizes = [128, 1], strides = [1, 1]} : vector<128x8xf32> to vector<128x1xf32>
    %162 = vector.broadcast %161 : vector<128x1xf32> to vector<128x256xf32>
    %163 = arith.addf %37, %162 : vector<128x256xf32>
    %cst_40 = arith.constant dense<0x7F800000> : vector<256xf32>
    %164 = vector.multi_reduction <minimumf>, %163, %cst_40 [0] : vector<128x256xf32> to vector<256xf32>
    %165 = vector.shape_cast %164 : vector<256xf32> to vector<1x256xf32>
    %166 = vector.extract_strided_slice %39 {offsets = [0, 6], sizes = [128, 1], strides = [1, 1]} : vector<128x8xf32> to vector<128x1xf32>
    %167 = vector.broadcast %166 : vector<128x1xf32> to vector<128x256xf32>
    %168 = arith.addf %37, %167 : vector<128x256xf32>
    %cst_41 = arith.constant dense<0x7F800000> : vector<256xf32>
    %169 = vector.multi_reduction <minimumf>, %168, %cst_41 [0] : vector<128x256xf32> to vector<256xf32>
    %170 = vector.shape_cast %169 : vector<256xf32> to vector<1x256xf32>
    %171 = vector.extract_strided_slice %41 {offsets = [0, 6], sizes = [128, 1], strides = [1, 1]} : vector<128x8xf32> to vector<128x1xf32>
    %172 = vector.broadcast %171 : vector<128x1xf32> to vector<128x256xf32>
    %173 = arith.addf %37, %172 : vector<128x256xf32>
    %cst_42 = arith.constant dense<0x7F800000> : vector<256xf32>
    %174 = vector.multi_reduction <minimumf>, %173, %cst_42 [0] : vector<128x256xf32> to vector<256xf32>
    %175 = vector.shape_cast %174 : vector<256xf32> to vector<1x256xf32>
    %176 = vector.extract_strided_slice %43 {offsets = [0, 6], sizes = [128, 1], strides = [1, 1]} : vector<128x8xf32> to vector<128x1xf32>
    %177 = vector.broadcast %176 : vector<128x1xf32> to vector<128x256xf32>
    %178 = arith.addf %37, %177 : vector<128x256xf32>
    %cst_43 = arith.constant dense<0x7F800000> : vector<256xf32>
    %179 = vector.multi_reduction <minimumf>, %178, %cst_43 [0] : vector<128x256xf32> to vector<256xf32>
    %180 = vector.shape_cast %179 : vector<256xf32> to vector<1x256xf32>
    %181 = vector.extract_strided_slice %45 {offsets = [0, 6], sizes = [128, 1], strides = [1, 1]} : vector<128x8xf32> to vector<128x1xf32>
    %182 = vector.broadcast %181 : vector<128x1xf32> to vector<128x256xf32>
    %183 = arith.addf %37, %182 : vector<128x256xf32>
    %cst_44 = arith.constant dense<0x7F800000> : vector<256xf32>
    %184 = vector.multi_reduction <minimumf>, %183, %cst_44 [0] : vector<128x256xf32> to vector<256xf32>
    %185 = vector.shape_cast %184 : vector<256xf32> to vector<1x256xf32>
    %186 = vector.extract_strided_slice %39 {offsets = [0, 7], sizes = [128, 1], strides = [1, 1]} : vector<128x8xf32> to vector<128x1xf32>
    %187 = vector.broadcast %186 : vector<128x1xf32> to vector<128x256xf32>
    %188 = arith.addf %37, %187 : vector<128x256xf32>
    %cst_45 = arith.constant dense<0x7F800000> : vector<256xf32>
    %189 = vector.multi_reduction <minimumf>, %188, %cst_45 [0] : vector<128x256xf32> to vector<256xf32>
    %190 = vector.shape_cast %189 : vector<256xf32> to vector<1x256xf32>
    %191 = vector.extract_strided_slice %41 {offsets = [0, 7], sizes = [128, 1], strides = [1, 1]} : vector<128x8xf32> to vector<128x1xf32>
    %192 = vector.broadcast %191 : vector<128x1xf32> to vector<128x256xf32>
    %193 = arith.addf %37, %192 : vector<128x256xf32>
    %cst_46 = arith.constant dense<0x7F800000> : vector<256xf32>
    %194 = vector.multi_reduction <minimumf>, %193, %cst_46 [0] : vector<128x256xf32> to vector<256xf32>
    %195 = vector.shape_cast %194 : vector<256xf32> to vector<1x256xf32>
    %196 = vector.extract_strided_slice %43 {offsets = [0, 7], sizes = [128, 1], strides = [1, 1]} : vector<128x8xf32> to vector<128x1xf32>
    %197 = vector.broadcast %196 : vector<128x1xf32> to vector<128x256xf32>
    %198 = arith.addf %37, %197 : vector<128x256xf32>
    %cst_47 = arith.constant dense<0x7F800000> : vector<256xf32>
    %199 = vector.multi_reduction <minimumf>, %198, %cst_47 [0] : vector<128x256xf32> to vector<256xf32>
    %200 = vector.shape_cast %199 : vector<256xf32> to vector<1x256xf32>
    %201 = vector.extract_strided_slice %45 {offsets = [0, 7], sizes = [128, 1], strides = [1, 1]} : vector<128x8xf32> to vector<128x1xf32>
    %202 = vector.broadcast %201 : vector<128x1xf32> to vector<128x256xf32>
    %203 = arith.addf %37, %202 : vector<128x256xf32>
    %cst_48 = arith.constant dense<0x7F800000> : vector<256xf32>
    %204 = vector.multi_reduction <minimumf>, %203, %cst_48 [0] : vector<128x256xf32> to vector<256xf32>
    %205 = vector.shape_cast %204 : vector<256xf32> to vector<1x256xf32>
    %c0_49 = arith.constant 0 : index
    %c0_50 = arith.constant 0 : index
    %206 = vector.load %arg11[%c0_49, %c0_50] : memref<8x256xf32, #tpu.memory_space<vmem>>, vector<8x256xf32>
    %207 = tpu.concatenate %50, %70, %90, %110, %130, %150, %170, %190 in 0 : vector<1x256xf32>, vector<1x256xf32>, vector<1x256xf32>, vector<1x256xf32>, vector<1x256xf32>, vector<1x256xf32>, vector<1x256xf32>, vector<1x256xf32> -> vector<8x256xf32>
    %208 = arith.minimumf %206, %207 : vector<8x256xf32>
    %c0_51 = arith.constant 0 : index
    %c0_52 = arith.constant 0 : index
    %209 = vector.load %arg11[%c0_51, %c0_52] : memref<8x256xf32, #tpu.memory_space<vmem>>, vector<8x256xf32>
    tpu.vector_store %arg11[%c0_51, %c0_52], %208 {strides = array<i32>} : memref<8x256xf32, #tpu.memory_space<vmem>>, vector<8x256xf32>,
    %c0_53 = arith.constant 0 : index
    %c0_54 = arith.constant 0 : index
    %210 = vector.load %arg12[%c0_53, %c0_54] : memref<8x256xf32, #tpu.memory_space<vmem>>, vector<8x256xf32>
    %211 = tpu.concatenate %55, %75, %95, %115, %135, %155, %175, %195 in 0 : vector<1x256xf32>, vector<1x256xf32>, vector<1x256xf32>, vector<1x256xf32>, vector<1x256xf32>, vector<1x256xf32>, vector<1x256xf32>, vector<1x256xf32> -> vector<8x256xf32>
    %212 = arith.minimumf %210, %211 : vector<8x256xf32>
    %c0_55 = arith.constant 0 : index
    %c0_56 = arith.constant 0 : index
    %213 = vector.load %arg12[%c0_55, %c0_56] : memref<8x256xf32, #tpu.memory_space<vmem>>, vector<8x256xf32>
    tpu.vector_store %arg12[%c0_55, %c0_56], %212 {strides = array<i32>} : memref<8x256xf32, #tpu.memory_space<vmem>>, vector<8x256xf32>,
    %c0_57 = arith.constant 0 : index
    %c0_58 = arith.constant 0 : index
    %214 = vector.load %arg13[%c0_57, %c0_58] : memref<8x256xf32, #tpu.memory_space<vmem>>, vector<8x256xf32>
    %215 = tpu.concatenate %60, %80, %100, %120, %140, %160, %180, %200 in 0 : vector<1x256xf32>, vector<1x256xf32>, vector<1x256xf32>, vector<1x256xf32>, vector<1x256xf32>, vector<1x256xf32>, vector<1x256xf32>, vector<1x256xf32> -> vector<8x256xf32>
    %216 = arith.minimumf %214, %215 : vector<8x256xf32>
    %c0_59 = arith.constant 0 : index
    %c0_60 = arith.constant 0 : index
    %217 = vector.load %arg13[%c0_59, %c0_60] : memref<8x256xf32, #tpu.memory_space<vmem>>, vector<8x256xf32>
    tpu.vector_store %arg13[%c0_59, %c0_60], %216 {strides = array<i32>} : memref<8x256xf32, #tpu.memory_space<vmem>>, vector<8x256xf32>,
    %c0_61 = arith.constant 0 : index
    %c0_62 = arith.constant 0 : index
    %218 = vector.load %arg14[%c0_61, %c0_62] : memref<8x256xf32, #tpu.memory_space<vmem>>, vector<8x256xf32>
    %219 = tpu.concatenate %65, %85, %105, %125, %145, %165, %185, %205 in 0 : vector<1x256xf32>, vector<1x256xf32>, vector<1x256xf32>, vector<1x256xf32>, vector<1x256xf32>, vector<1x256xf32>, vector<1x256xf32>, vector<1x256xf32> -> vector<8x256xf32>
    %220 = arith.minimumf %218, %219 : vector<8x256xf32>
    %c0_63 = arith.constant 0 : index
    %c0_64 = arith.constant 0 : index
    %221 = vector.load %arg14[%c0_63, %c0_64] : memref<8x256xf32, #tpu.memory_space<vmem>>, vector<8x256xf32>
    tpu.vector_store %arg14[%c0_63, %c0_64], %220 {strides = array<i32>} : memref<8x256xf32, #tpu.memory_space<vmem>>, vector<8x256xf32>,
    %c1_i32 = arith.constant 1 : i32
    %222 = arith.cmpi eq, %arg2, %c1_i32 : i32
    %223 = arith.extui %222 : i1 to i32
    %c0_i32_65 = arith.constant 0 : i32
    %224 = arith.cmpi ne, %223, %c0_i32_65 : i32
    scf.if %224 {
      %c0_66 = arith.constant 0 : index
      %c0_67 = arith.constant 0 : index
      %225 = vector.load %arg7[%c0_66, %c0_67] : memref<8x256xf32, #tpu.memory_space<vmem>>, vector<8x256xf32>
      %c0_68 = arith.constant 0 : index
      %c0_69 = arith.constant 0 : index
      %226 = vector.load %arg8[%c0_68, %c0_69] : memref<8x256xf32, #tpu.memory_space<vmem>>, vector<8x256xf32>
      %c0_70 = arith.constant 0 : index
      %c0_71 = arith.constant 0 : index
      %227 = vector.load %arg9[%c0_70, %c0_71] : memref<8x256xf32, #tpu.memory_space<vmem>>, vector<8x256xf32>
      %cst_72 = arith.constant 5.000000e-01 : f32
      %228 = vector.broadcast %cst_72 : f32 to vector<8x256xf32>
      %229 = arith.cmpf ogt, %225, %228 : vector<8x256xf32>
      %230 = arith.extui %229 : vector<8x256xi1> to vector<8x256xi32>
      %231 = arith.sitofp %230 : vector<8x256xi32> to vector<8x256xf32>
      %c0_73 = arith.constant 0 : index
      %c0_74 = arith.constant 0 : index
      %232 = vector.load %arg11[%c0_73, %c0_74] : memref<8x256xf32, #tpu.memory_space<vmem>>, vector<8x256xf32>
      %cst_75 = arith.constant 1.000000e+08 : f32
      %233 = vector.broadcast %cst_75 : f32 to vector<8x256xf32>
      %234 = arith.cmpf olt, %232, %233 : vector<8x256xf32>
      %cst_76 = arith.constant 0.000000e+00 : f32
      %235 = vector.broadcast %cst_76 : f32 to vector<8x256xf32>
      %236 = arith.select %234, %232, %235 : vector<8x256xi1>, vector<8x256xf32>
      %237 = arith.mulf %231, %236 : vector<8x256xf32>
      %cst_77 = arith.constant 1.000000e+00 : f32
      %238 = vector.broadcast %cst_77 : f32 to vector<8x256xf32>
      %239 = arith.subf %238, %231 : vector<8x256xf32>
      %c0_78 = arith.constant 0 : index
      %c0_79 = arith.constant 0 : index
      %240 = vector.load %arg12[%c0_78, %c0_79] : memref<8x256xf32, #tpu.memory_space<vmem>>, vector<8x256xf32>
      %cst_80 = arith.constant 1.000000e+08 : f32
      %241 = vector.broadcast %cst_80 : f32 to vector<8x256xf32>
      %242 = arith.cmpf olt, %240, %241 : vector<8x256xf32>
      %cst_81 = arith.constant 0.000000e+00 : f32
      %243 = vector.broadcast %cst_81 : f32 to vector<8x256xf32>
      %244 = arith.select %242, %240, %243 : vector<8x256xi1>, vector<8x256xf32>
      %245 = arith.mulf %239, %244 : vector<8x256xf32>
      %246 = arith.addf %237, %245 : vector<8x256xf32>
      %c0_82 = arith.constant 0 : index
      %c0_83 = arith.constant 0 : index
      %247 = vector.load %arg13[%c0_82, %c0_83] : memref<8x256xf32, #tpu.memory_space<vmem>>, vector<8x256xf32>
      %cst_84 = arith.constant 1.000000e+08 : f32
      %248 = vector.broadcast %cst_84 : f32 to vector<8x256xf32>
      %249 = arith.cmpf olt, %247, %248 : vector<8x256xf32>
      %cst_85 = arith.constant 0.000000e+00 : f32
      %250 = vector.broadcast %cst_85 : f32 to vector<8x256xf32>
      %251 = arith.select %249, %247, %250 : vector<8x256xi1>, vector<8x256xf32>
      %252 = arith.mulf %226, %251 : vector<8x256xf32>
      %cst_86 = arith.constant 1.000000e+00 : f32
      %253 = vector.broadcast %cst_86 : f32 to vector<8x256xf32>
      %254 = arith.subf %253, %226 : vector<8x256xf32>
      %c0_87 = arith.constant 0 : index
      %c0_88 = arith.constant 0 : index
      %255 = vector.load %arg14[%c0_87, %c0_88] : memref<8x256xf32, #tpu.memory_space<vmem>>, vector<8x256xf32>
      %cst_89 = arith.constant 1.000000e+08 : f32
      %256 = vector.broadcast %cst_89 : f32 to vector<8x256xf32>
      %257 = arith.cmpf olt, %255, %256 : vector<8x256xf32>
      %cst_90 = arith.constant 0.000000e+00 : f32
      %258 = vector.broadcast %cst_90 : f32 to vector<8x256xf32>
      %259 = arith.select %257, %255, %258 : vector<8x256xi1>, vector<8x256xf32>
      %260 = arith.mulf %254, %259 : vector<8x256xf32>
      %261 = arith.addf %252, %260 : vector<8x256xf32>
      %262 = arith.subf %225, %226 : vector<8x256xf32>
      %263 = arith.mulf %262, %262 : vector<8x256xf32>
      %264 = arith.mulf %227, %263 : vector<8x256xf32>
      %265 = arith.addf %246, %261 : vector<8x256xf32>
      %266 = arith.mulf %264, %265 : vector<8x256xf32>
      %c0_91 = arith.constant 0 : index
      %c0_92 = arith.constant 0 : index
      %267 = vector.load %arg10[%c0_91, %c0_92] : memref<8x256xf32, #tpu.memory_space<vmem>>, vector<8x256xf32>
      tpu.vector_store %arg10[%c0_91, %c0_92], %266 {strides = array<i32>} : memref<8x256xf32, #tpu.memory_space<vmem>>, vector<8x256xf32>,
    } else {
    }
    return
  }
  func.func @transform_0(%arg0: i32, %arg1: i32, %arg2: i32) -> (i32, i32, i32) {
    %c0_i32 = arith.constant 0 : i32
    %c0_i32_0 = arith.constant 0 : i32
    return %arg0, %arg2, %c0_i32 : i32, i32, i32
  }
  func.func @transform_1(%arg0: i32, %arg1: i32, %arg2: i32) -> (i32, i32, i32) {
    %c0_i32 = arith.constant 0 : i32
    %c0_i32_0 = arith.constant 0 : i32
    return %arg0, %arg2, %c0_i32 : i32, i32, i32
  }
  func.func @transform_2(%arg0: i32, %arg1: i32, %arg2: i32) -> (i32, i32, i32) {
    %c0_i32 = arith.constant 0 : i32
    %c0_i32_0 = arith.constant 0 : i32
    return %arg0, %arg2, %c0_i32 : i32, i32, i32
  }
  func.func @transform_3(%arg0: i32, %arg1: i32, %arg2: i32) -> (i32, i32, i32) {
    %c0_i32 = arith.constant 0 : i32
    %c0_i32_0 = arith.constant 0 : i32
    return %arg0, %arg2, %c0_i32 : i32, i32, i32
  }
  func.func @transform_4(%arg0: i32, %arg1: i32, %arg2: i32) -> (i32, i32) {
    %c0_i32 = arith.constant 0 : i32
    return %arg0, %arg1 : i32, i32
  }
  func.func @transform_5(%arg0: i32, %arg1: i32, %arg2: i32) -> (i32, i32) {
    %c0_i32 = arith.constant 0 : i32
    return %arg0, %arg1 : i32, i32
  }
  func.func @transform_6(%arg0: i32, %arg1: i32, %arg2: i32) -> (i32, i32) {
    %c0_i32 = arith.constant 0 : i32
    return %arg0, %arg1 : i32, i32
  }
  func.func @transform_7(%arg0: i32, %arg1: i32, %arg2: i32) -> (i32, i32) {
    %c0_i32 = arith.constant 0 : i32
    return %arg0, %arg1 : i32, i32
  }
}

</mosaic_0001>

<llo_original>
// kernel: tpu_custom_call.1
$region0: #{tpu_custom_call.1}
  #allocation0 [shape = 'u32[]', space=smem, size = 0x4, offset = 0x4, fixed_abs, tag = 'smem constant byte address 0x4 - core index']
  #allocation1 [shape = 'u32[144,128]{1,0:T(1,128)}', space=vmem, size = 0x12000, scoped, tag = 'internal scratch']
  #allocation2 [shape = 'f32[8,256]{1,0:T(8,128)}', space=vmem, size = 0x2000, scoped, tag = 'scratch operand']
  #allocation3 [shape = 'f32[8,256]{1,0:T(8,128)}', space=vmem, size = 0x2000, scoped, tag = 'scratch operand']
  #allocation4 [shape = 'f32[8,256]{1,0:T(8,128)}', space=vmem, size = 0x2000, scoped, tag = 'scratch operand']
  #allocation5 [shape = 'f32[8,256]{1,0:T(8,128)}', space=vmem, size = 0x2000, scoped, tag = 'scratch operand']
  %s0 = inlined_call_operand.vmem [shape: f32[1,256,8], index: 0, kind: input, shape index: {}]
  %s1 = inlined_call_operand.vmem [shape: f32[1,256,8], index: 1, kind: input, shape index: {}]
  %s2 = inlined_call_operand.vmem [shape: f32[1,256,8], index: 2, kind: input, shape index: {}]
  %s3 = inlined_call_operand.vmem [shape: f32[1,256,8], index: 3, kind: input, shape index: {}]
  %s4 = inlined_call_operand.vmem [shape: f32[8,256], index: 4, kind: input, shape index: {}]
  %s5 = inlined_call_operand.vmem [shape: f32[8,256], index: 5, kind: input, shape index: {}]
  %s6 = inlined_call_operand.vmem [shape: f32[8,256], index: 6, kind: input, shape index: {}]
  %s7 = inlined_call_operand.hbm [shape: f32[8,256], index: 7, kind: output, shape index: {}]
  %s8 = sld [smem:[#allocation0]]
  $region69: #{tpu_custom_call.1} parent=0
    _
  %s10 = ssub.s32 1, %s8
  %s11 = scalar_select 0, %s10, %s8
  $region1: #{tpu_custom_call.1} parent=0
    #allocation6 [shape = 'u8[8192]{0}', space=vmem, size = 0x2000, scoped, tag = 'output window, operand 0, single buffered']
    #allocation7 [shape = 's32[2]{0}', space=sflag, size = 0x8, scoped, tag = 'scoped memory for tpu_custom_call.1']
    %12 = vsyncpa [#allocation7], 0
    loop: start=0, step=1, limit=4
    $region2: #{tpu_custom_call.1} parent=1 // loop_pre_header
      _
    $region3: #{tpu_custom_call.1} parent=1 // loop_header
      %s14 = sphi 0, %s18
      %p15 = scmp.ge.s32.totalorder %s14, 4
      %s21 = sphi 0, %s40
      %s22 = sphi 0, %s36
      %s23 = sphi 0, %s32
      %s24 = sphi 0, %s21
      %s25 = sphi 0, %s22
      %s26 = sphi 0, %s23
      %s27 = sphi 0, %s24
      %s28 = sphi 0, %s25
      %s29 = sphi 0, %s26
      %s45 = sphi 0, %s47
      %s48 = sphi 0, %s45
      %s49 = sphi 0, %s48
      %s65 = sphi 0, %s49
      %s73 = sphi 0, %s75
      %s76 = sphi 0, %s73
      %s77 = sphi 0, %s76
      %s93 = sphi 0, %s77
      %s101 = sphi 0, %s103
      %s104 = sphi 0, %s101
      %s105 = sphi 0, %s104
      %s121 = sphi 0, %s105
      %s129 = sphi 0, %s131
      %s132 = sphi 0, %s129
      %s133 = sphi 0, %s132
      %s149 = sphi 0, %s133
      %s157 = sphi 0, %s159
      %s160 = sphi 0, %s157
      %s161 = sphi 0, %s160
      %s177 = sphi 0, %s161
      %s185 = sphi 0, %s187
      %s188 = sphi 0, %s185
      %s189 = sphi 0, %s188
      %s205 = sphi 0, %s189
      %s213 = sphi 0, %s215
      %s216 = sphi 0, %s213
      %s217 = sphi 0, %s216
      %s233 = sphi 0, %s217
      %s241 = sphi 0, %s243
      %s244 = sphi 0, %s241
      %s245 = sphi 0, %s244
      %s261 = sphi 0, %s245
    $region4: #{tpu_custom_call.1} parent=1 // loop_header_branch
      %17 = sbr.rel (%p15) target = $region8
    $region5: #{tpu_custom_call.1} parent=1 // loop_body
      %s19 = ssub.s32 %s14, 1
      %s20 = ssub.s32 %s14, 2
      %s30 = sadd.s32 1, %s23
      %p31 = scmp.ge.s32.totalorder %s30, 2
      %s32 = scalar_select %p31, 0, %s30
      %s33 = sadd.s32 1, %s22
      %s34 = scalar_select %p31, %s33, %s22
      %p35 = scmp.ge.s32.totalorder %s34, 1
      %s36 = scalar_select %p35, 0, %s34
      %s37 = sadd.s32 1, %s21
      %s38 = scalar_select %p35, %s37, %s21
      %p39 = scmp.ge.s32.totalorder %s38, 1
      %s40 = scalar_select %p39, 0, %s38
      %s41 = ssub.s32 %s21, %s40
      %s42 = ssub.s32 %s23, %s32
      %s43 = sor.u32 %s41, %s42
      %p44 = scmp.eq.s32.totalorder %s43, 0
      %s46 = sadd.s32 %s45, 1
      %s47 = scalar_select %p44, %s45, %s46
      %p50 = pneg %p44
      %p51 = scmp.eq.s32.totalorder %s14, 1
      %p52 = por %p50, %p51
      %p53 = scmp.ne.s32.totalorder %s45, %s48
      %p54 = scmp.eq.s32.totalorder %s14, 0
      %p55 = por %p53, %p54
      %p56 = scmp.ne.s32.totalorder %s45, %s48
      %p57 = scmp.eq.s32.totalorder %s19, 1
      %p58 = por %p56, %p57
      %p59 = scmp.ne.s32.totalorder %s48, %s49
      %p60 = scmp.eq.s32.totalorder %s19, 0
      %p61 = por %p59, %p60
      %p62 = scmp.ne.s32.totalorder %s48, %s49
      %p63 = scmp.eq.s32.totalorder %s20, 1
      %p64 = por %p62, %p63
      %p66 = scmp.ne.s32.totalorder %s49, %s65
      %p67 = scmp.eq.s32.totalorder %s20, 0
      %p68 = por %p66, %p67
      %s69 = ssub.s32 %s21, %s40
      %s70 = ssub.s32 %s23, %s32
      %s71 = sor.u32 %s69, %s70
      %p72 = scmp.eq.s32.totalorder %s71, 0
      %s74 = sadd.s32 %s73, 1
      %s75 = scalar_select %p72, %s73, %s74
      %p78 = pneg %p72
      %p79 = scmp.eq.s32.totalorder %s14, 1
      %p80 = por %p78, %p79
      %p81 = scmp.ne.s32.totalorder %s73, %s76
      %p82 = scmp.eq.s32.totalorder %s14, 0
      %p83 = por %p81, %p82
      %p84 = scmp.ne.s32.totalorder %s73, %s76
      %p85 = scmp.eq.s32.totalorder %s19, 1
      %p86 = por %p84, %p85
      %p87 = scmp.ne.s32.totalorder %s76, %s77
      %p88 = scmp.eq.s32.totalorder %s19, 0
      %p89 = por %p87, %p88
      %p90 = scmp.ne.s32.totalorder %s76, %s77
      %p91 = scmp.eq.s32.totalorder %s20, 1
      %p92 = por %p90, %p91
      %p94 = scmp.ne.s32.totalorder %s77, %s93
      %p95 = scmp.eq.s32.totalorder %s20, 0
      %p96 = por %p94, %p95
      %s97 = ssub.s32 %s21, %s40
      %s98 = ssub.s32 %s23, %s32
      %s99 = sor.u32 %s97, %s98
      %p100 = scmp.eq.s32.totalorder %s99, 0
      %s102 = sadd.s32 %s101, 1
      %s103 = scalar_select %p100, %s101, %s102
      %p106 = pneg %p100
      %p107 = scmp.eq.s32.totalorder %s14, 1
      %p108 = por %p106, %p107
      %p109 = scmp.ne.s32.totalorder %s101, %s104
      %p110 = scmp.eq.s32.totalorder %s14, 0
      %p111 = por %p109, %p110
      %p112 = scmp.ne.s32.totalorder %s101, %s104
      %p113 = scmp.eq.s32.totalorder %s19, 1
      %p114 = por %p112, %p113
      %p115 = scmp.ne.s32.totalorder %s104, %s105
      %p116 = scmp.eq.s32.totalorder %s19, 0
      %p117 = por %p115, %p116
      %p118 = scmp.ne.s32.totalorder %s104, %s105
      %p119 = scmp.eq.s32.totalorder %s20, 1
      %p120 = por %p118, %p119
      %p122 = scmp.ne.s32.totalorder %s105, %s121
      %p123 = scmp.eq.s32.totalorder %s20, 0
      %p124 = por %p122, %p123
      %s125 = ssub.s32 %s21, %s40
      %s126 = ssub.s32 %s23, %s32
      %s127 = sor.u32 %s125, %s126
      %p128 = scmp.eq.s32.totalorder %s127, 0
      %s130 = sadd.s32 %s129, 1
      %s131 = scalar_select %p128, %s129, %s130
      %p134 = pneg %p128
      %p135 = scmp.eq.s32.totalorder %s14, 1
      %p136 = por %p134, %p135
      %p137 = scmp.ne.s32.totalorder %s129, %s132
      %p138 = scmp.eq.s32.totalorder %s14, 0
      %p139 = por %p137, %p138
      %p140 = scmp.ne.s32.totalorder %s129, %s132
      %p141 = scmp.eq.s32.totalorder %s19, 1
      %p142 = por %p140, %p141
      %p143 = scmp.ne.s32.totalorder %s132, %s133
      %p144 = scmp.eq.s32.totalorder %s19, 0
      %p145 = por %p143, %p144
      %p146 = scmp.ne.s32.totalorder %s132, %s133
      %p147 = scmp.eq.s32.totalorder %s20, 1
      %p148 = por %p146, %p147
      %p150 = scmp.ne.s32.totalorder %s133, %s149
      %p151 = scmp.eq.s32.totalorder %s20, 0
      %p152 = por %p150, %p151
      %s153 = ssub.s32 %s21, %s40
      %s154 = ssub.s32 %s22, %s36
      %s155 = sor.u32 %s153, %s154
      %p156 = scmp.eq.s32.totalorder %s155, 0
      %s158 = sadd.s32 %s157, 1
      %s159 = scalar_select %p156, %s157, %s158
      %p162 = pneg %p156
      %p163 = scmp.eq.s32.totalorder %s14, 1
      %p164 = por %p162, %p163
      %p165 = scmp.ne.s32.totalorder %s157, %s160
      %p166 = scmp.eq.s32.totalorder %s14, 0
      %p167 = por %p165, %p166
      %p168 = scmp.ne.s32.totalorder %s157, %s160
      %p169 = scmp.eq.s32.totalorder %s19, 1
      %p170 = por %p168, %p169
      %p171 = scmp.ne.s32.totalorder %s160, %s161
      %p172 = scmp.eq.s32.totalorder %s19, 0
      %p173 = por %p171, %p172
      %p174 = scmp.ne.s32.totalorder %s160, %s161
      %p175 = scmp.eq.s32.totalorder %s20, 1
      %p176 = por %p174, %p175
      %p178 = scmp.ne.s32.totalorder %s161, %s177
      %p179 = scmp.eq.s32.totalorder %s20, 0
      %p180 = por %p178, %p179
      %s181 = ssub.s32 %s21, %s40
      %s182 = ssub.s32 %s22, %s36
      %s183 = sor.u32 %s181, %s182
      %p184 = scmp.eq.s32.totalorder %s183, 0
      %s186 = sadd.s32 %s185, 1
      %s187 = scalar_select %p184, %s185, %s186
      %p190 = pneg %p184
      %p191 = scmp.eq.s32.totalorder %s14, 1
      %p192 = por %p190, %p191
      %p193 = scmp.ne.s32.totalorder %s185, %s188
      %p194 = scmp.eq.s32.totalorder %s14, 0
      %p195 = por %p193, %p194
      %p196 = scmp.ne.s32.totalorder %s185, %s188
      %p197 = scmp.eq.s32.totalorder %s19, 1
      %p198 = por %p196, %p197
      %p199 = scmp.ne.s32.totalorder %s188, %s189
      %p200 = scmp.eq.s32.totalorder %s19, 0
      %p201 = por %p199, %p200
      %p202 = scmp.ne.s32.totalorder %s188, %s189
      %p203 = scmp.eq.s32.totalorder %s20, 1
      %p204 = por %p202, %p203
      %p206 = scmp.ne.s32.totalorder %s189, %s205
      %p207 = scmp.eq.s32.totalorder %s20, 0
      %p208 = por %p206, %p207
      %s209 = ssub.s32 %s21, %s40
      %s210 = ssub.s32 %s22, %s36
      %s211 = sor.u32 %s209, %s210
      %p212 = scmp.eq.s32.totalorder %s211, 0
      %s214 = sadd.s32 %s213, 1
      %s215 = scalar_select %p212, %s213, %s214
      %p218 = pneg %p212
      %p219 = scmp.eq.s32.totalorder %s14, 1
      %p220 = por %p218, %p219
      %p221 = scmp.ne.s32.totalorder %s213, %s216
      %p222 = scmp.eq.s32.totalorder %s14, 0
      %p223 = por %p221, %p222
      %p224 = scmp.ne.s32.totalorder %s213, %s216
      %p225 = scmp.eq.s32.totalorder %s19, 1
      %p226 = por %p224, %p225
      %p227 = scmp.ne.s32.totalorder %s216, %s217
      %p228 = scmp.eq.s32.totalorder %s19, 0
      %p229 = por %p227, %p228
      %p230 = scmp.ne.s32.totalorder %s216, %s217
      %p231 = scmp.eq.s32.totalorder %s20, 1
      %p232 = por %p230, %p231
      %p234 = scmp.ne.s32.totalorder %s217, %s233
      %p235 = scmp.eq.s32.totalorder %s20, 0
      %p236 = por %p234, %p235
      %s237 = ssub.s32 %s21, %s40
      %s238 = ssub.s32 %s22, %s36
      %s239 = sor.u32 %s237, %s238
      %p240 = scmp.eq.s32.totalorder %s239, 0
      %s242 = sadd.s32 %s241, 1
      %s243 = scalar_select %p240, %s241, %s242
      %p246 = pneg %p240
      %p247 = scmp.eq.s32.totalorder %s14, 1
      %p248 = por %p246, %p247
      %p249 = scmp.ne.s32.totalorder %s241, %s244
      %p250 = scmp.eq.s32.totalorder %s14, 0
      %p251 = por %p249, %p250
      %p252 = scmp.ne.s32.totalorder %s241, %s244
      %p253 = scmp.eq.s32.totalorder %s19, 1
      %p254 = por %p252, %p253
      %p255 = scmp.ne.s32.totalorder %s244, %s245
      %p256 = scmp.eq.s32.totalorder %s19, 0
      %p257 = por %p255, %p256
      %p258 = scmp.ne.s32.totalorder %s244, %s245
      %p259 = scmp.eq.s32.totalorder %s20, 1
      %p260 = por %p258, %p259
      %p262 = scmp.ne.s32.totalorder %s245, %s261
      %p263 = scmp.eq.s32.totalorder %s20, 0
      %p264 = por %p262, %p263
      %p265 = scmp.le.s32.totalorder 1, %s14
      %p266 = scmp.lt.s32.totalorder %s14, 3
      %p267 = pnand %p265, %p266
      %p268 = pneg %p267
      // Predicated region
      $region9: #{tpu_custom_call.1} parent=5 // pred_check
        _
      $region10: #{tpu_custom_call.1} parent=5 // pred_check_branch
        %270 = sbr.rel (%p267) target = $region12
      $region11: #{tpu_custom_call.1} parent=5 // pred_region
        %s271 = ssub.s32 %s14, 1
        // Predicated region
        $region13: #{tpu_custom_call.1} parent=11 // pred_check
          %p272 = pneg %p173
        $region14: #{tpu_custom_call.1} parent=11 // pred_check_branch
          %274 = sbr.rel (%p272) target = $region16
        $region15: #{tpu_custom_call.1} parent=11 // pred_region
          %s275 = smul.u32 2, %s25
          %p276 = scmp.lt.s32.totalorder %s24, 0
          %s277 = scalar_select %p276, %s24, 0
          %p278 = scmp.lt.s32.totalorder %s275, 1
          %s279 = scalar_select %p278, %s275, 1
          %s280 = smul.addr %s277, 2
          %s281 = sadd.s32 %s279, %s280
          %s282 = smul.addr %s281, 8
          %s283 = scalar_lea.vmem %s4, %s282
          %s284 = smul.u32 2, %s25
        $region16: #{tpu_custom_call.1} parent=11 // pred_fallthru
          _
        // Predicated region
        $region17: #{tpu_custom_call.1} parent=11 // pred_check
          %p285 = pneg %p201
        $region18: #{tpu_custom_call.1} parent=11 // pred_check_branch
          %287 = sbr.rel (%p285) target = $region20
        $region19: #{tpu_custom_call.1} parent=11 // pred_region
          %s288 = smul.u32 2, %s25
          %p289 = scmp.lt.s32.totalorder %s24, 0
          %s290 = scalar_select %p289, %s24, 0
          %p291 = scmp.lt.s32.totalorder %s288, 1
          %s292 = scalar_select %p291, %s288, 1
          %s293 = smul.addr %s290, 2
          %s294 = sadd.s32 %s292, %s293
          %s295 = smul.addr %s294, 8
          %s296 = scalar_lea.vmem %s5, %s295
          %s297 = smul.u32 2, %s25
        $region20: #{tpu_custom_call.1} parent=11 // pred_fallthru
          _
        // Predicated region
        $region21: #{tpu_custom_call.1} parent=11 // pred_check
          %p298 = pneg %p229
        $region22: #{tpu_custom_call.1} parent=11 // pred_check_branch
          %300 = sbr.rel (%p298) target = $region24
        $region23: #{tpu_custom_call.1} parent=11 // pred_region
          %s301 = smul.u32 2, %s25
          %p302 = scmp.lt.s32.totalorder %s24, 0
          %s303 = scalar_select %p302, %s24, 0
          %p304 = scmp.lt.s32.totalorder %s301, 1
          %s305 = scalar_select %p304, %s301, 1
          %s306 = smul.addr %s303, 2
          %s307 = sadd.s32 %s305, %s306
          %s308 = smul.addr %s307, 8
          %s309 = scalar_lea.vmem %s6, %s308
          %s310 = smul.u32 2, %s25
        $region24: #{tpu_custom_call.1} parent=11 // pred_fallthru
          _
      $region12: #{tpu_custom_call.1} parent=5 // pred_fallthru
        _
      %p311 = scmp.lt.s32.totalorder %s14, 2
      // Predicated region
      $region25: #{tpu_custom_call.1} parent=5 // pred_check
        %p312 = pneg %p311
      $region26: #{tpu_custom_call.1} parent=5 // pred_check_branch
        %314 = sbr.rel (%p312) target = $region28
      $region27: #{tpu_custom_call.1} parent=5 // pred_region
        // Predicated region
        $region29: #{tpu_custom_call.1} parent=27 // pred_check
          %p315 = pneg %p55
        $region30: #{tpu_custom_call.1} parent=27 // pred_check_branch
          %317 = sbr.rel (%p315) target = $region32
        $region31: #{tpu_custom_call.1} parent=27 // pred_region
          %s318 = smul.u32 16, %s23
          %p319 = scmp.lt.s32.totalorder %s21, 0
          %s320 = scalar_select %p319, %s21, 0
          %p321 = scmp.lt.s32.totalorder %s318, 31
          %s322 = scalar_select %p321, %s318, 31
          %s323 = smul.addr %s320, 32
          %s324 = sadd.s32 %s322, %s323
          %s325 = smul.addr %s324, 8
          %s326 = scalar_lea.vmem %s0, %s325
          %s327 = smul.u32 16, %s23
        $region32: #{tpu_custom_call.1} parent=27 // pred_fallthru
          _
        // Predicated region
        $region33: #{tpu_custom_call.1} parent=27 // pred_check
          %p328 = pneg %p83
        $region34: #{tpu_custom_call.1} parent=27 // pred_check_branch
          %330 = sbr.rel (%p328) target = $region36
        $region35: #{tpu_custom_call.1} parent=27 // pred_region
          %s331 = smul.u32 16, %s23
          %p332 = scmp.lt.s32.totalorder %s21, 0
          %s333 = scalar_select %p332, %s21, 0
          %p334 = scmp.lt.s32.totalorder %s331, 31
          %s335 = scalar_select %p334, %s331, 31
          %s336 = smul.addr %s333, 32
          %s337 = sadd.s32 %s335, %s336
          %s338 = smul.addr %s337, 8
          %s339 = scalar_lea.vmem %s1, %s338
          %s340 = smul.u32 16, %s23
        $region36: #{tpu_custom_call.1} parent=27 // pred_fallthru
          _
        // Predicated region
        $region37: #{tpu_custom_call.1} parent=27 // pred_check
          %p341 = pneg %p111
        $region38: #{tpu_custom_call.1} parent=27 // pred_check_branch
          %343 = sbr.rel (%p341) target = $region40
        $region39: #{tpu_custom_call.1} parent=27 // pred_region
          %s344 = smul.u32 16, %s23
          %p345 = scmp.lt.s32.totalorder %s21, 0
          %s346 = scalar_select %p345, %s21, 0
          %p347 = scmp.lt.s32.totalorder %s344, 31
          %s348 = scalar_select %p347, %s344, 31
          %s349 = smul.addr %s346, 32
          %s350 = sadd.s32 %s348, %s349
          %s351 = smul.addr %s350, 8
          %s352 = scalar_lea.vmem %s2, %s351
          %s353 = smul.u32 16, %s23
        $region40: #{tpu_custom_call.1} parent=27 // pred_fallthru
          _
        // Predicated region
        $region41: #{tpu_custom_call.1} parent=27 // pred_check
          %p354 = pneg %p139
        $region42: #{tpu_custom_call.1} parent=27 // pred_check_branch
          %356 = sbr.rel (%p354) target = $region44
        $region43: #{tpu_custom_call.1} parent=27 // pred_region
          %s357 = smul.u32 16, %s23
          %p358 = scmp.lt.s32.totalorder %s21, 0
          %s359 = scalar_select %p358, %s21, 0
          %p360 = scmp.lt.s32.totalorder %s357, 31
          %s361 = scalar_select %p360, %s357, 31
          %s362 = smul.addr %s359, 32
          %s363 = sadd.s32 %s361, %s362
          %s364 = smul.addr %s363, 8
          %s365 = scalar_lea.vmem %s3, %s364
          %s366 = smul.u32 16, %s23
        $region44: #{tpu_custom_call.1} parent=27 // pred_fallthru
          _
      $region28: #{tpu_custom_call.1} parent=5 // pred_fallthru
        _
      %p367 = scmp.le.s32.totalorder 1, %s14
      %p368 = scmp.lt.s32.totalorder %s14, 3
      %p369 = pnand %p367, %p368
      %p370 = pneg %p369
      // Predicated region
      $region45: #{tpu_custom_call.1} parent=5 // pred_check
        _
      $region46: #{tpu_custom_call.1} parent=5 // pred_check_branch
        %372 = sbr.rel (%p369) target = $region48
      $region47: #{tpu_custom_call.1} parent=5 // pred_region
        %s373 = ssub.s32 %s14, 1
        %s374 = smul.u32 16, %s26
        %p375 = scmp.lt.s32.totalorder %s24, 0
        %s376 = scalar_select %p375, %s24, 0
        %p377 = scmp.lt.s32.totalorder %s374, 31
        %s378 = scalar_select %p377, %s374, 31
        %s379 = smul.addr %s376, 32
        %s380 = sadd.s32 %s378, %s379
        %s381 = smul.addr %s380, 8
        %s382 = scalar_lea.vmem %s0, %s381
        %p383 = pneg %p61
        %p384 = pneg %p58
        %s385 = smul.u32 16, %s26
        %p386 = scmp.lt.s32.totalorder %s24, 0
        %s387 = scalar_select %p386, %s24, 0
        %p388 = scmp.lt.s32.totalorder %s385, 31
        %s389 = scalar_select %p388, %s385, 31
        %s390 = smul.addr %s387, 32
        %s391 = sadd.s32 %s389, %s390
        %s392 = smul.addr %s391, 8
        %s393 = scalar_lea.vmem %s1, %s392
        %p394 = pneg %p89
        %p395 = pneg %p86
        %s396 = smul.u32 16, %s26
        %p397 = scmp.lt.s32.totalorder %s24, 0
        %s398 = scalar_select %p397, %s24, 0
        %p399 = scmp.lt.s32.totalorder %s396, 31
        %s400 = scalar_select %p399, %s396, 31
        %s401 = smul.addr %s398, 32
        %s402 = sadd.s32 %s400, %s401
        %s403 = smul.addr %s402, 8
        %s404 = scalar_lea.vmem %s2, %s403
        %p405 = pneg %p117
        %p406 = pneg %p114
        %s407 = smul.u32 16, %s26
        %p408 = scmp.lt.s32.totalorder %s24, 0
        %s409 = scalar_select %p408, %s24, 0
        %p410 = scmp.lt.s32.totalorder %s407, 31
        %s411 = scalar_select %p410, %s407, 31
        %s412 = smul.addr %s409, 32
        %s413 = sadd.s32 %s411, %s412
        %s414 = smul.addr %s413, 8
        %s415 = scalar_lea.vmem %s3, %s414
        %p416 = pneg %p145
        %p417 = pneg %p142
        %s418 = smul.u32 2, %s25
        %p419 = scmp.lt.s32.totalorder %s24, 0
        %s420 = scalar_select %p419, %s24, 0
        %p421 = scmp.lt.s32.totalorder %s418, 1
        %s422 = scalar_select %p421, %s418, 1
        %s423 = smul.addr %s420, 2
        %s424 = sadd.s32 %s422, %s423
        %s425 = smul.addr %s424, 8
        %s426 = scalar_lea.vmem %s4, %s425
        %p427 = pneg %p173
        %p428 = pneg %p170
        %s429 = smul.u32 2, %s25
        %p430 = scmp.lt.s32.totalorder %s24, 0
        %s431 = scalar_select %p430, %s24, 0
        %p432 = scmp.lt.s32.totalorder %s429, 1
        %s433 = scalar_select %p432, %s429, 1
        %s434 = smul.addr %s431, 2
        %s435 = sadd.s32 %s433, %s434
        %s436 = smul.addr %s435, 8
        %s437 = scalar_lea.vmem %s5, %s436
        %p438 = pneg %p201
        %p439 = pneg %p198
        %s440 = smul.u32 2, %s25
        %p441 = scmp.lt.s32.totalorder %s24, 0
        %s442 = scalar_select %p441, %s24, 0
        %p443 = scmp.lt.s32.totalorder %s440, 1
        %s444 = scalar_select %p443, %s440, 1
        %s445 = smul.addr %s442, 2
        %s446 = sadd.s32 %s444, %s445
        %s447 = smul.addr %s446, 8
        %s448 = scalar_lea.vmem %s6, %s447
        %p449 = pneg %p229
        %p450 = pneg %p226
        %p451 = pneg %p257
        %p452 = pneg %p254
        %s453 = smul.u32 16, %s26
        %p454 = scmp.lt.s32.totalorder %s24, 0
        %s455 = scalar_select %p454, %s24, 0
        %p456 = scmp.lt.s32.totalorder %s453, 31
        %s457 = scalar_select %p456, %s453, 31
        %s458 = smul.addr %s455, 32
        %s459 = sadd.s32 %s457, %s458
        %s460 = smul.addr %s459, 8
        %s461 = scalar_lea.vmem %s0, %s460
        %s462 = smul.u32 16, %s26
        %s463 = smul.u32 16, %s26
        %p464 = scmp.lt.s32.totalorder %s24, 0
        %s465 = scalar_select %p464, %s24, 0
        %p466 = scmp.lt.s32.totalorder %s463, 31
        %s467 = scalar_select %p466, %s463, 31
        %s468 = smul.addr %s465, 32
        %s469 = sadd.s32 %s467, %s468
        %s470 = smul.addr %s469, 8
        %s471 = scalar_lea.vmem %s1, %s470
        %s472 = smul.u32 16, %s26
        %s473 = smul.u32 16, %s26
        %p474 = scmp.lt.s32.totalorder %s24, 0
        %s475 = scalar_select %p474, %s24, 0
        %p476 = scmp.lt.s32.totalorder %s473, 31
        %s477 = scalar_select %p476, %s473, 31
        %s478 = smul.addr %s475, 32
        %s479 = sadd.s32 %s477, %s478
        %s480 = smul.addr %s479, 8
        %s481 = scalar_lea.vmem %s2, %s480
        %s482 = smul.u32 16, %s26
        %s483 = smul.u32 16, %s26
        %p484 = scmp.lt.s32.totalorder %s24, 0
        %s485 = scalar_select %p484, %s24, 0
        %p486 = scmp.lt.s32.totalorder %s483, 31
        %s487 = scalar_select %p486, %s483, 31
        %s488 = smul.addr %s485, 32
        %s489 = sadd.s32 %s487, %s488
        %s490 = smul.addr %s489, 8
        %s491 = scalar_lea.vmem %s3, %s490
        %s492 = smul.u32 16, %s26
        %s493 = smul.u32 2, %s25
        %p494 = scmp.lt.s32.totalorder %s24, 0
        %s495 = scalar_select %p494, %s24, 0
        %p496 = scmp.lt.s32.totalorder %s493, 1
        %s497 = scalar_select %p496, %s493, 1
        %s498 = smul.addr %s495, 2
        %s499 = sadd.s32 %s497, %s498
        %s500 = smul.addr %s499, 8
        %s501 = scalar_lea.vmem %s4, %s500
        %s502 = smul.u32 2, %s25
        %s503 = smul.u32 2, %s25
        %p504 = scmp.lt.s32.totalorder %s24, 0
        %s505 = scalar_select %p504, %s24, 0
        %p506 = scmp.lt.s32.totalorder %s503, 1
        %s507 = scalar_select %p506, %s503, 1
        %s508 = smul.addr %s505, 2
        %s509 = sadd.s32 %s507, %s508
        %s510 = smul.addr %s509, 8
        %s511 = scalar_lea.vmem %s5, %s510
        %s512 = smul.u32 2, %s25
        %s513 = smul.u32 2, %s25
        %p514 = scmp.lt.s32.totalorder %s24, 0
        %s515 = scalar_select %p514, %s24, 0
        %p516 = scmp.lt.s32.totalorder %s513, 1
        %s517 = scalar_select %p516, %s513, 1
        %s518 = smul.addr %s515, 2
        %s519 = sadd.s32 %s517, %s518
        %s520 = smul.addr %s519, 8
        %s521 = scalar_lea.vmem %s6, %s520
        %s522 = smul.u32 2, %s25
        %s523 = smul.u32 2, %s25
        %p524 = scmp.eq.s32.totalorder %s26, 0
        // Predicated region
        $region49: #{tpu_custom_call.1} parent=47 // pred_check
          %p525 = pneg %p524
        $region50: #{tpu_custom_call.1} parent=47 // pred_check_branch
          %527 = sbr.rel (%p525) target = $region52
        $region51: #{tpu_custom_call.1} parent=47 // pred_region
          %528 = vst [vmem:[#allocation2] sm:$0xff] 1e+09
          %529 = vst [vmem:[#allocation2 + $0x8] sm:$0xff] 1e+09
          %530 = vst [vmem:[#allocation3] sm:$0xff] 1e+09
          %531 = vst [vmem:[#allocation3 + $0x8] sm:$0xff] 1e+09
          %532 = vst [vmem:[#allocation4] sm:$0xff] 1e+09
          %533 = vst [vmem:[#allocation4 + $0x8] sm:$0xff] 1e+09
          %534 = vst [vmem:[#allocation5] sm:$0xff] 1e+09
          %535 = vst [vmem:[#allocation5 + $0x8] sm:$0xff] 1e+09
        $region52: #{tpu_custom_call.1} parent=47 // pred_fallthru
          _
        %s536 = smul.u32 %s26, 128
        %s537 = smul.u32 %s25, 256
        %v538 = vlaneseq
        %v539 = vshrl.u32 %v538, 7
        %v540 = vadd.s32 %v539, 8
        %v541 = vadd.s32 %v539, 16
        %v542 = vadd.s32 %v539, 24
        %v543 = vadd.s32 %v539, 32
        %v544 = vadd.s32 %v539, 40
        %v545 = vadd.s32 %v539, 48
        %v546 = vadd.s32 %v539, 56
        %v547 = vadd.s32 %v539, 64
        %v548 = vadd.s32 %v539, 72
        %v549 = vadd.s32 %v539, 80
        %v550 = vadd.s32 %v539, 88
        %v551 = vadd.s32 %v539, 96
        %v552 = vadd.s32 %v539, 104
        %v553 = vadd.s32 %v539, 112
        %v554 = vadd.s32 %v539, 120
        %v555 = vstv %s536
        %v556 = vadd.s32 %v555, %v539
        %v557 = vadd.s32 %v555, %v540
        %v558 = vadd.s32 %v555, %v541
        %v559 = vadd.s32 %v555, %v542
        %v560 = vadd.s32 %v555, %v543
        %v561 = vadd.s32 %v555, %v544
        %v562 = vadd.s32 %v555, %v545
        %v563 = vadd.s32 %v555, %v546
        %v564 = vadd.s32 %v555, %v547
        %v565 = vadd.s32 %v555, %v548
        %v566 = vadd.s32 %v555, %v549
        %v567 = vadd.s32 %v555, %v550
        %v568 = vadd.s32 %v555, %v551
        %v569 = vadd.s32 %v555, %v552
        %v570 = vadd.s32 %v555, %v553
        %v571 = vadd.s32 %v555, %v554
        %v572 = vcvt.s32.f32 %v556
        %v573 = vcvt.s32.f32 %v557
        %v574 = vcvt.s32.f32 %v558
        %v575 = vcvt.s32.f32 %v559
        %v576 = vcvt.s32.f32 %v560
        %v577 = vcvt.s32.f32 %v561
        %v578 = vcvt.s32.f32 %v562
        %v579 = vcvt.s32.f32 %v563
        %v580 = vcvt.s32.f32 %v564
        %v581 = vcvt.s32.f32 %v565
        %v582 = vcvt.s32.f32 %v566
        %v583 = vcvt.s32.f32 %v567
        %v584 = vcvt.s32.f32 %v568
        %v585 = vcvt.s32.f32 %v569
        %v586 = vcvt.s32.f32 %v570
        %v587 = vcvt.s32.f32 %v571
        %v588 = vlaneseq
        %v589 = vand.u32 %v588, 127
        %v590 = vadd.s32 %v589, 128
        %v591 = vstv %s537
        %v592 = vadd.s32 %v591, %v589
        %v593 = vadd.s32 %v591, %v590
        %v594 = vcvt.s32.f32 %v592
        %v595 = vcvt.s32.f32 %v593
        %v596 = vadd.f32 %v572, 0.5
        %v597 = vadd.f32 %v573, 0.5
        %v598 = vadd.f32 %v574, 0.5
        %v599 = vadd.f32 %v575, 0.5
        %v600 = vadd.f32 %v576, 0.5
        %v601 = vadd.f32 %v577, 0.5
        %v602 = vadd.f32 %v578, 0.5
        %v603 = vadd.f32 %v579, 0.5
        %v604 = vadd.f32 %v580, 0.5
        %v605 = vadd.f32 %v581, 0.5
        %v606 = vadd.f32 %v582, 0.5
        %v607 = vadd.f32 %v583, 0.5
        %v608 = vadd.f32 %v584, 0.5
        %v609 = vadd.f32 %v585, 0.5
        %v610 = vadd.f32 %v586, 0.5
        %v611 = vadd.f32 %v587, 0.5
        %v612 = vmul.f32 %v596, 0.0625
        %v613 = vmul.f32 %v597, 0.0625
        %v614 = vmul.f32 %v598, 0.0625
        %v615 = vmul.f32 %v599, 0.0625
        %v616 = vmul.f32 %v600, 0.0625
        %v617 = vmul.f32 %v601, 0.0625
        %v618 = vmul.f32 %v602, 0.0625
        %v619 = vmul.f32 %v603, 0.0625
        %v620 = vmul.f32 %v604, 0.0625
        %v621 = vmul.f32 %v605, 0.0625
        %v622 = vmul.f32 %v606, 0.0625
        %v623 = vmul.f32 %v607, 0.0625
        %v624 = vmul.f32 %v608, 0.0625
        %v625 = vmul.f32 %v609, 0.0625
        %v626 = vmul.f32 %v610, 0.0625
        %v627 = vmul.f32 %v611, 0.0625
        %v628 = vfloor.f32 %v612
        %v629 = vfloor.f32 %v613
        %v630 = vfloor.f32 %v614
        %v631 = vfloor.f32 %v615
        %v632 = vfloor.f32 %v616
        %v633 = vfloor.f32 %v617
        %v634 = vfloor.f32 %v618
        %v635 = vfloor.f32 %v619
        %v636 = vfloor.f32 %v620
        %v637 = vfloor.f32 %v621
        %v638 = vfloor.f32 %v622
        %v639 = vfloor.f32 %v623
        %v640 = vfloor.f32 %v624
        %v641 = vfloor.f32 %v625
        %v642 = vfloor.f32 %v626
        %v643 = vfloor.f32 %v627
        %v644 = vmul.f32 %v628, 16.0
        %v645 = vmul.f32 %v629, 16.0
        %v646 = vmul.f32 %v630, 16.0
        %v647 = vmul.f32 %v631, 16.0
        %v648 = vmul.f32 %v632, 16.0
        %v649 = vmul.f32 %v633, 16.0
        %v650 = vmul.f32 %v634, 16.0
        %v651 = vmul.f32 %v635, 16.0
        %v652 = vmul.f32 %v636, 16.0
        %v653 = vmul.f32 %v637, 16.0
        %v654 = vmul.f32 %v638, 16.0
        %v655 = vmul.f32 %v639, 16.0
        %v656 = vmul.f32 %v640, 16.0
        %v657 = vmul.f32 %v641, 16.0
        %v658 = vmul.f32 %v642, 16.0
        %v659 = vmul.f32 %v643, 16.0
        %v660 = vsub.f32 %v572, %v644
        %v661 = vsub.f32 %v573, %v645
        %v662 = vsub.f32 %v574, %v646
        %v663 = vsub.f32 %v575, %v647
        %v664 = vsub.f32 %v576, %v648
        %v665 = vsub.f32 %v577, %v649
        %v666 = vsub.f32 %v578, %v650
        %v667 = vsub.f32 %v579, %v651
        %v668 = vsub.f32 %v580, %v652
        %v669 = vsub.f32 %v581, %v653
        %v670 = vsub.f32 %v582, %v654
        %v671 = vsub.f32 %v583, %v655
        %v672 = vsub.f32 %v584, %v656
        %v673 = vsub.f32 %v585, %v657
        %v674 = vsub.f32 %v586, %v658
        %v675 = vsub.f32 %v587, %v659
        %v676 = vadd.f32 %v594, 0.5
        %v677 = vadd.f32 %v595, 0.5
        %v678 = vmul.f32 %v676, 0.0625
        %v679 = vmul.f32 %v677, 0.0625
        %v680 = vfloor.f32 %v678
        %v681 = vfloor.f32 %v679
        %v682 = vmul.f32 %v680, 16.0
        %v683 = vmul.f32 %v681, 16.0
        %v684 = vsub.f32 %v594, %v682
        %v685 = vsub.f32 %v595, %v683
        %v686 = vsub.f32 %v628, %v680
        %v687 = vsub.f32 %v628, %v681
        %v688 = vsub.f32 %v629, %v680
        %v689 = vsub.f32 %v629, %v681
        %v690 = vsub.f32 %v630, %v680
        %v691 = vsub.f32 %v630, %v681
        %v692 = vsub.f32 %v631, %v680
        %v693 = vsub.f32 %v631, %v681
        %v694 = vsub.f32 %v632, %v680
        %v695 = vsub.f32 %v632, %v681
        %v696 = vsub.f32 %v633, %v680
        %v697 = vsub.f32 %v633, %v681
        %v698 = vsub.f32 %v634, %v680
        %v699 = vsub.f32 %v634, %v681
        %v700 = vsub.f32 %v635, %v680
        %v701 = vsub.f32 %v635, %v681
        %v702 = vsub.f32 %v636, %v680
        %v703 = vsub.f32 %v636, %v681
        %v704 = vsub.f32 %v637, %v680
        %v705 = vsub.f32 %v637, %v681
        %v706 = vsub.f32 %v638, %v680
        %v707 = vsub.f32 %v638, %v681
        %v708 = vsub.f32 %v639, %v680
        %v709 = vsub.f32 %v639, %v681
        %v710 = vsub.f32 %v640, %v680
        %v711 = vsub.f32 %v640, %v681
        %v712 = vsub.f32 %v641, %v680
        %v713 = vsub.f32 %v641, %v681
        %v714 = vsub.f32 %v642, %v680
        %v715 = vsub.f32 %v642, %v681
        %v716 = vsub.f32 %v643, %v680
        %v717 = vsub.f32 %v643, %v681
        %v718 = vsub.f32 %v660, %v684
        %v719 = vsub.f32 %v660, %v685
        %v720 = vsub.f32 %v661, %v684
        %v721 = vsub.f32 %v661, %v685
        %v722 = vsub.f32 %v662, %v684
        %v723 = vsub.f32 %v662, %v685
        %v724 = vsub.f32 %v663, %v684
        %v725 = vsub.f32 %v663, %v685
        %v726 = vsub.f32 %v664, %v684
        %v727 = vsub.f32 %v664, %v685
        %v728 = vsub.f32 %v665, %v684
        %v729 = vsub.f32 %v665, %v685
        %v730 = vsub.f32 %v666, %v684
        %v731 = vsub.f32 %v666, %v685
        %v732 = vsub.f32 %v667, %v684
        %v733 = vsub.f32 %v667, %v685
        %v734 = vsub.f32 %v668, %v684
        %v735 = vsub.f32 %v668, %v685
        %v736 = vsub.f32 %v669, %v684
        %v737 = vsub.f32 %v669, %v685
        %v738 = vsub.f32 %v670, %v684
        %v739 = vsub.f32 %v670, %v685
        %v740 = vsub.f32 %v671, %v684
        %v741 = vsub.f32 %v671, %v685
        %v742 = vsub.f32 %v672, %v684
        %v743 = vsub.f32 %v672, %v685
        %v744 = vsub.f32 %v673, %v684
        %v745 = vsub.f32 %v673, %v685
        %v746 = vsub.f32 %v674, %v684
        %v747 = vsub.f32 %v674, %v685
        %v748 = vsub.f32 %v675, %v684
        %v749 = vsub.f32 %v675, %v685
        %v750 = vmul.f32 %v686, %v686
        %v751 = vmul.f32 %v687, %v687
        %v752 = vmul.f32 %v688, %v688
        %v753 = vmul.f32 %v689, %v689
        %v754 = vmul.f32 %v690, %v690
        %v755 = vmul.f32 %v691, %v691
        %v756 = vmul.f32 %v692, %v692
        %v757 = vmul.f32 %v693, %v693
        %v758 = vmul.f32 %v694, %v694
        %v759 = vmul.f32 %v695, %v695
        %v760 = vmul.f32 %v696, %v696
        %v761 = vmul.f32 %v697, %v697
        %v762 = vmul.f32 %v698, %v698
        %v763 = vmul.f32 %v699, %v699
        %v764 = vmul.f32 %v700, %v700
        %v765 = vmul.f32 %v701, %v701
        %v766 = vmul.f32 %v702, %v702
        %v767 = vmul.f32 %v703, %v703
        %v768 = vmul.f32 %v704, %v704
        %v769 = vmul.f32 %v705, %v705
        %v770 = vmul.f32 %v706, %v706
        %v771 = vmul.f32 %v707, %v707
        %v772 = vmul.f32 %v708, %v708
        %v773 = vmul.f32 %v709, %v709
        %v774 = vmul.f32 %v710, %v710
        %v775 = vmul.f32 %v711, %v711
        %v776 = vmul.f32 %v712, %v712
        %v777 = vmul.f32 %v713, %v713
        %v778 = vmul.f32 %v714, %v714
        %v779 = vmul.f32 %v715, %v715
        %v780 = vmul.f32 %v716, %v716
        %v781 = vmul.f32 %v717, %v717
        %v782 = vmul.f32 %v718, %v718
        %v783 = vmul.f32 %v719, %v719
        %v784 = vmul.f32 %v720, %v720
        %v785 = vmul.f32 %v721, %v721
        %v786 = vmul.f32 %v722, %v722
        %v787 = vmul.f32 %v723, %v723
        %v788 = vmul.f32 %v724, %v724
        %v789 = vmul.f32 %v725, %v725
        %v790 = vmul.f32 %v726, %v726
        %v791 = vmul.f32 %v727, %v727
        %v792 = vmul.f32 %v728, %v728
        %v793 = vmul.f32 %v729, %v729
        %v794 = vmul.f32 %v730, %v730
        %v795 = vmul.f32 %v731, %v731
        %v796 = vmul.f32 %v732, %v732
        %v797 = vmul.f32 %v733, %v733
        %v798 = vmul.f32 %v734, %v734
        %v799 = vmul.f32 %v735, %v735
        %v800 = vmul.f32 %v736, %v736
        %v801 = vmul.f32 %v737, %v737
        %v802 = vmul.f32 %v738, %v738
        %v803 = vmul.f32 %v739, %v739
        %v804 = vmul.f32 %v740, %v740
        %v805 = vmul.f32 %v741, %v741
        %v806 = vmul.f32 %v742, %v742
        %v807 = vmul.f32 %v743, %v743
        %v808 = vmul.f32 %v744, %v744
        %v809 = vmul.f32 %v745, %v745
        %v810 = vmul.f32 %v746, %v746
        %v811 = vmul.f32 %v747, %v747
        %v812 = vmul.f32 %v748, %v748
        %v813 = vmul.f32 %v749, %v749
        %v814 = vadd.f32 %v750, %v782
        %v815 = vadd.f32 %v751, %v783
        %v816 = vadd.f32 %v752, %v784
        %v817 = vadd.f32 %v753, %v785
        %v818 = vadd.f32 %v754, %v786
        %v819 = vadd.f32 %v755, %v787
        %v820 = vadd.f32 %v756, %v788
        %v821 = vadd.f32 %v757, %v789
        %v822 = vadd.f32 %v758, %v790
        %v823 = vadd.f32 %v759, %v791
        %v824 = vadd.f32 %v760, %v792
        %v825 = vadd.f32 %v761, %v793
        %v826 = vadd.f32 %v762, %v794
        %v827 = vadd.f32 %v763, %v795
        %v828 = vadd.f32 %v764, %v796
        %v829 = vadd.f32 %v765, %v797
        %v830 = vadd.f32 %v766, %v798
        %v831 = vadd.f32 %v767, %v799
        %v832 = vadd.f32 %v768, %v800
        %v833 = vadd.f32 %v769, %v801
        %v834 = vadd.f32 %v770, %v802
        %v835 = vadd.f32 %v771, %v803
        %v836 = vadd.f32 %v772, %v804
        %v837 = vadd.f32 %v773, %v805
        %v838 = vadd.f32 %v774, %v806
        %v839 = vadd.f32 %v775, %v807
        %v840 = vadd.f32 %v776, %v808
        %v841 = vadd.f32 %v777, %v809
        %v842 = vadd.f32 %v778, %v810
        %v843 = vadd.f32 %v779, %v811
        %v844 = vadd.f32 %v780, %v812
        %v845 = vadd.f32 %v781, %v813
        %v846 = vld [vmem:[%s461] sm:$0xff]
        %v847 = vld [vmem:[%s461 + $0x8] sm:$0xff]
        %v848 = vld [vmem:[%s461 + $0x10] sm:$0xff]
        %v849 = vld [vmem:[%s461 + $0x18] sm:$0xff]
        %v850 = vld [vmem:[%s461 + $0x20] sm:$0xff]
        %v851 = vld [vmem:[%s461 + $0x28] sm:$0xff]
        %v852 = vld [vmem:[%s461 + $0x30] sm:$0xff]
        %v853 = vld [vmem:[%s461 + $0x38] sm:$0xff]
        %v854 = vld [vmem:[%s461 + $0x40] sm:$0xff]
        %v855 = vld [vmem:[%s461 + $0x48] sm:$0xff]
        %v856 = vld [vmem:[%s461 + $0x50] sm:$0xff]
        %v857 = vld [vmem:[%s461 + $0x58] sm:$0xff]
        %v858 = vld [vmem:[%s461 + $0x60] sm:$0xff]
        %v859 = vld [vmem:[%s461 + $0x68] sm:$0xff]
        %v860 = vld [vmem:[%s461 + $0x70] sm:$0xff]
        %v861 = vld [vmem:[%s461 + $0x78] sm:$0xff]
        %v862 = vld [vmem:[%s471] sm:$0xff]
        %v863 = vld [vmem:[%s471 + $0x8] sm:$0xff]
        %v864 = vld [vmem:[%s471 + $0x10] sm:$0xff]
        %v865 = vld [vmem:[%s471 + $0x18] sm:$0xff]
        %v866 = vld [vmem:[%s471 + $0x20] sm:$0xff]
        %v867 = vld [vmem:[%s471 + $0x28] sm:$0xff]
        %v868 = vld [vmem:[%s471 + $0x30] sm:$0xff]
        %v869 = vld [vmem:[%s471 + $0x38] sm:$0xff]
        %v870 = vld [vmem:[%s471 + $0x40] sm:$0xff]
        %v871 = vld [vmem:[%s471 + $0x48] sm:$0xff]
        %v872 = vld [vmem:[%s471 + $0x50] sm:$0xff]
        %v873 = vld [vmem:[%s471 + $0x58] sm:$0xff]
        %v874 = vld [vmem:[%s471 + $0x60] sm:$0xff]
        %v875 = vld [vmem:[%s471 + $0x68] sm:$0xff]
        %v876 = vld [vmem:[%s471 + $0x70] sm:$0xff]
        %v877 = vld [vmem:[%s471 + $0x78] sm:$0xff]
        %v878 = vld [vmem:[%s481] sm:$0xff]
        %v879 = vld [vmem:[%s481 + $0x8] sm:$0xff]
        %v880 = vld [vmem:[%s481 + $0x10] sm:$0xff]
        %v881 = vld [vmem:[%s481 + $0x18] sm:$0xff]
        %v882 = vld [vmem:[%s481 + $0x20] sm:$0xff]
        %v883 = vld [vmem:[%s481 + $0x28] sm:$0xff]
        %v884 = vld [vmem:[%s481 + $0x30] sm:$0xff]
        %v885 = vld [vmem:[%s481 + $0x38] sm:$0xff]
        %v886 = vld [vmem:[%s481 + $0x40] sm:$0xff]
        %v887 = vld [vmem:[%s481 + $0x48] sm:$0xff]
        %v888 = vld [vmem:[%s481 + $0x50] sm:$0xff]
        %v889 = vld [vmem:[%s481 + $0x58] sm:$0xff]
        %v890 = vld [vmem:[%s481 + $0x60] sm:$0xff]
        %v891 = vld [vmem:[%s481 + $0x68] sm:$0xff]
        %v892 = vld [vmem:[%s481 + $0x70] sm:$0xff]
        %v893 = vld [vmem:[%s481 + $0x78] sm:$0xff]
        %v894 = vld [vmem:[%s491] sm:$0xff]
        %v895 = vld [vmem:[%s491 + $0x8] sm:$0xff]
        %v896 = vld [vmem:[%s491 + $0x10] sm:$0xff]
        %v897 = vld [vmem:[%s491 + $0x18] sm:$0xff]
        %v898 = vld [vmem:[%s491 + $0x20] sm:$0xff]
        %v899 = vld [vmem:[%s491 + $0x28] sm:$0xff]
        %v900 = vld [vmem:[%s491 + $0x30] sm:$0xff]
        %v901 = vld [vmem:[%s491 + $0x38] sm:$0xff]
        %v902 = vld [vmem:[%s491 + $0x40] sm:$0xff]
        %v903 = vld [vmem:[%s491 + $0x48] sm:$0xff]
        %v904 = vld [vmem:[%s491 + $0x50] sm:$0xff]
        %v905 = vld [vmem:[%s491 + $0x58] sm:$0xff]
        %v906 = vld [vmem:[%s491 + $0x60] sm:$0xff]
        %v907 = vld [vmem:[%s491 + $0x68] sm:$0xff]
        %v908 = vld [vmem:[%s491 + $0x70] sm:$0xff]
        %v909 = vld [vmem:[%s491 + $0x78] sm:$0xff]
        %911 = vset.pattern.permute.xlu0 0
        %912 = vperm.xlu0 %911, %v846
        %v913 = vpop.permute.xlu0 %912
        %916 = vset.pattern.permute.xlu0 0
        %917 = vperm.xlu0 %916, %v847
        %v918 = vpop.permute.xlu0 %917
        %921 = vset.pattern.permute.xlu0 0
        %922 = vperm.xlu0 %921, %v848
        %v923 = vpop.permute.xlu0 %922
        %926 = vset.pattern.permute.xlu0 0
        %927 = vperm.xlu0 %926, %v849
        %v928 = vpop.permute.xlu0 %927
        %931 = vset.pattern.permute.xlu0 0
        %932 = vperm.xlu0 %931, %v850
        %v933 = vpop.permute.xlu0 %932
        %936 = vset.pattern.permute.xlu0 0
        %937 = vperm.xlu0 %936, %v851
        %v938 = vpop.permute.xlu0 %937
        %941 = vset.pattern.permute.xlu0 0
        %942 = vperm.xlu0 %941, %v852
        %v943 = vpop.permute.xlu0 %942
        %946 = vset.pattern.permute.xlu0 0
        %947 = vperm.xlu0 %946, %v853
        %v948 = vpop.permute.xlu0 %947
        %951 = vset.pattern.permute.xlu0 0
        %952 = vperm.xlu0 %951, %v854
        %v953 = vpop.permute.xlu0 %952
        %956 = vset.pattern.permute.xlu0 0
        %957 = vperm.xlu0 %956, %v855
        %v958 = vpop.permute.xlu0 %957
        %961 = vset.pattern.permute.xlu0 0
        %962 = vperm.xlu0 %961, %v856
        %v963 = vpop.permute.xlu0 %962
        %966 = vset.pattern.permute.xlu0 0
        %967 = vperm.xlu0 %966, %v857
        %v968 = vpop.permute.xlu0 %967
        %971 = vset.pattern.permute.xlu0 0
        %972 = vperm.xlu0 %971, %v858
        %v973 = vpop.permute.xlu0 %972
        %976 = vset.pattern.permute.xlu0 0
        %977 = vperm.xlu0 %976, %v859
        %v978 = vpop.permute.xlu0 %977
        %981 = vset.pattern.permute.xlu0 0
        %982 = vperm.xlu0 %981, %v860
        %v983 = vpop.permute.xlu0 %982
        %986 = vset.pattern.permute.xlu0 0
        %987 = vperm.xlu0 %986, %v861
        %v988 = vpop.permute.xlu0 %987
        %v990 = vadd.f32 %v814, %v913
        %v991 = vadd.f32 %v815, %v913
        %v992 = vadd.f32 %v816, %v918
        %v993 = vadd.f32 %v817, %v918
        %v994 = vadd.f32 %v818, %v923
        %v995 = vadd.f32 %v819, %v923
        %v996 = vadd.f32 %v820, %v928
        %v997 = vadd.f32 %v821, %v928
        %v998 = vadd.f32 %v822, %v933
        %v999 = vadd.f32 %v823, %v933
        %v1000 = vadd.f32 %v824, %v938
        %v1001 = vadd.f32 %v825, %v938
        %v1002 = vadd.f32 %v826, %v943
        %v1003 = vadd.f32 %v827, %v943
        %v1004 = vadd.f32 %v828, %v948
        %v1005 = vadd.f32 %v829, %v948
        %v1006 = vadd.f32 %v830, %v953
        %v1007 = vadd.f32 %v831, %v953
        %v1008 = vadd.f32 %v832, %v958
        %v1009 = vadd.f32 %v833, %v958
        %v1010 = vadd.f32 %v834, %v963
        %v1011 = vadd.f32 %v835, %v963
        %v1012 = vadd.f32 %v836, %v968
        %v1013 = vadd.f32 %v837, %v968
        %v1014 = vadd.f32 %v838, %v973
        %v1015 = vadd.f32 %v839, %v973
        %v1016 = vadd.f32 %v840, %v978
        %v1017 = vadd.f32 %v841, %v978
        %v1018 = vadd.f32 %v842, %v983
        %v1019 = vadd.f32 %v843, %v983
        %v1020 = vadd.f32 %v844, %v988
        %v1021 = vadd.f32 %v845, %v988
        %v1022 = vmin.f32 %v990, %v994
        %v1023 = vmin.f32 %v992, %v996
        %v1024 = vmin.f32 %v1022, %v998
        %v1025 = vmin.f32 %v1023, %v1000
        %v1026 = vmin.f32 %v1024, %v1002
        %v1027 = vmin.f32 %v1025, %v1004
        %v1028 = vmin.f32 %v1026, %v1006
        %v1029 = vmin.f32 %v1027, %v1008
        %v1030 = vmin.f32 %v1028, %v1010
        %v1031 = vmin.f32 %v1029, %v1012
        %v1032 = vmin.f32 %v1030, %v1014
        %v1033 = vmin.f32 %v1031, %v1016
        %v1034 = vmin.f32 %v1032, %v1018
        %v1035 = vmin.f32 %v1033, %v1020
        %v1036 = vmin.f32 %v1034, %v1035
        %v1037 = vrot.slane %v1036, 4
        %v1038 = vmin.f32 %v1036, %v1037
        %v1039 = vrot.slane %v1038, 2
        %v1040 = vmin.f32 %v1038, %v1039
        %v1041 = vrot.slane %v1040, 1
        %v1042 = vmin.f32 %v1040, %v1041
        %v1043 = vmin.f32 %v991, %v995
        %v1044 = vmin.f32 %v993, %v997
        %v1045 = vmin.f32 %v1043, %v999
        %v1046 = vmin.f32 %v1044, %v1001
        %v1047 = vmin.f32 %v1045, %v1003
        %v1048 = vmin.f32 %v1046, %v1005
        %v1049 = vmin.f32 %v1047, %v1007
        %v1050 = vmin.f32 %v1048, %v1009
        %v1051 = vmin.f32 %v1049, %v1011
        %v1052 = vmin.f32 %v1050, %v1013
        %v1053 = vmin.f32 %v1051, %v1015
        %v1054 = vmin.f32 %v1052, %v1017
        %v1055 = vmin.f32 %v1053, %v1019
        %v1056 = vmin.f32 %v1054, %v1021
        %v1057 = vmin.f32 %v1055, %v1056
        %v1058 = vrot.slane %v1057, 4
        %v1059 = vmin.f32 %v1057, %v1058
        %v1060 = vrot.slane %v1059, 2
        %v1061 = vmin.f32 %v1059, %v1060
        %v1062 = vrot.slane %v1061, 1
        %v1063 = vmin.f32 %v1061, %v1062
        %1065 = vset.pattern.permute.xlu0 0
        %1066 = vperm.xlu0 %1065, %v862
        %v1067 = vpop.permute.xlu0 %1066
        %1070 = vset.pattern.permute.xlu0 0
        %1071 = vperm.xlu0 %1070, %v863
        %v1072 = vpop.permute.xlu0 %1071
        %1075 = vset.pattern.permute.xlu0 0
        %1076 = vperm.xlu0 %1075, %v864
        %v1077 = vpop.permute.xlu0 %1076
        %1080 = vset.pattern.permute.xlu0 0
        %1081 = vperm.xlu0 %1080, %v865
        %v1082 = vpop.permute.xlu0 %1081
        %1085 = vset.pattern.permute.xlu0 0
        %1086 = vperm.xlu0 %1085, %v866
        %v1087 = vpop.permute.xlu0 %1086
        %1090 = vset.pattern.permute.xlu0 0
        %1091 = vperm.xlu0 %1090, %v867
        %v1092 = vpop.permute.xlu0 %1091
        %1095 = vset.pattern.permute.xlu0 0
        %1096 = vperm.xlu0 %1095, %v868
        %v1097 = vpop.permute.xlu0 %1096
        %1100 = vset.pattern.permute.xlu0 0
        %1101 = vperm.xlu0 %1100, %v869
        %v1102 = vpop.permute.xlu0 %1101
        %1105 = vset.pattern.permute.xlu0 0
        %1106 = vperm.xlu0 %1105, %v870
        %v1107 = vpop.permute.xlu0 %1106
        %1110 = vset.pattern.permute.xlu0 0
        %1111 = vperm.xlu0 %1110, %v871
        %v1112 = vpop.permute.xlu0 %1111
        %1115 = vset.pattern.permute.xlu0 0
        %1116 = vperm.xlu0 %1115, %v872
        %v1117 = vpop.permute.xlu0 %1116
        %1120 = vset.pattern.permute.xlu0 0
        %1121 = vperm.xlu0 %1120, %v873
        %v1122 = vpop.permute.xlu0 %1121
        %1125 = vset.pattern.permute.xlu0 0
        %1126 = vperm.xlu0 %1125, %v874
        %v1127 = vpop.permute.xlu0 %1126
        %1130 = vset.pattern.permute.xlu0 0
        %1131 = vperm.xlu0 %1130, %v875
        %v1132 = vpop.permute.xlu0 %1131
        %1135 = vset.pattern.permute.xlu0 0
        %1136 = vperm.xlu0 %1135, %v876
        %v1137 = vpop.permute.xlu0 %1136
        %1140 = vset.pattern.permute.xlu0 0
        %1141 = vperm.xlu0 %1140, %v877
        %v1142 = vpop.permute.xlu0 %1141
        %v1144 = vadd.f32 %v814, %v1067
        %v1145 = vadd.f32 %v815, %v1067
        %v1146 = vadd.f32 %v816, %v1072
        %v1147 = vadd.f32 %v817, %v1072
        %v1148 = vadd.f32 %v818, %v1077
        %v1149 = vadd.f32 %v819, %v1077
        %v1150 = vadd.f32 %v820, %v1082
        %v1151 = vadd.f32 %v821, %v1082
        %v1152 = vadd.f32 %v822, %v1087
        %v1153 = vadd.f32 %v823, %v1087
        %v1154 = vadd.f32 %v824, %v1092
        %v1155 = vadd.f32 %v825, %v1092
        %v1156 = vadd.f32 %v826, %v1097
        %v1157 = vadd.f32 %v827, %v1097
        %v1158 = vadd.f32 %v828, %v1102
        %v1159 = vadd.f32 %v829, %v1102
        %v1160 = vadd.f32 %v830, %v1107
        %v1161 = vadd.f32 %v831, %v1107
        %v1162 = vadd.f32 %v832, %v1112
        %v1163 = vadd.f32 %v833, %v1112
        %v1164 = vadd.f32 %v834, %v1117
        %v1165 = vadd.f32 %v835, %v1117
        %v1166 = vadd.f32 %v836, %v1122
        %v1167 = vadd.f32 %v837, %v1122
        %v1168 = vadd.f32 %v838, %v1127
        %v1169 = vadd.f32 %v839, %v1127
        %v1170 = vadd.f32 %v840, %v1132
        %v1171 = vadd.f32 %v841, %v1132
        %v1172 = vadd.f32 %v842, %v1137
        %v1173 = vadd.f32 %v843, %v1137
        %v1174 = vadd.f32 %v844, %v1142
        %v1175 = vadd.f32 %v845, %v1142
        %v1176 = vmin.f32 %v1144, %v1148
        %v1177 = vmin.f32 %v1146, %v1150
        %v1178 = vmin.f32 %v1176, %v1152
        %v1179 = vmin.f32 %v1177, %v1154
        %v1180 = vmin.f32 %v1178, %v1156
        %v1181 = vmin.f32 %v1179, %v1158
        %v1182 = vmin.f32 %v1180, %v1160
        %v1183 = vmin.f32 %v1181, %v1162
        %v1184 = vmin.f32 %v1182, %v1164
        %v1185 = vmin.f32 %v1183, %v1166
        %v1186 = vmin.f32 %v1184, %v1168
        %v1187 = vmin.f32 %v1185, %v1170
        %v1188 = vmin.f32 %v1186, %v1172
        %v1189 = vmin.f32 %v1187, %v1174
        %v1190 = vmin.f32 %v1188, %v1189
        %v1191 = vrot.slane %v1190, 4
        %v1192 = vmin.f32 %v1190, %v1191
        %v1193 = vrot.slane %v1192, 2
        %v1194 = vmin.f32 %v1192, %v1193
        %v1195 = vrot.slane %v1194, 1
        %v1196 = vmin.f32 %v1194, %v1195
        %v1197 = vmin.f32 %v1145, %v1149
        %v1198 = vmin.f32 %v1147, %v1151
        %v1199 = vmin.f32 %v1197, %v1153
        %v1200 = vmin.f32 %v1198, %v1155
        %v1201 = vmin.f32 %v1199, %v1157
        %v1202 = vmin.f32 %v1200, %v1159
        %v1203 = vmin.f32 %v1201, %v1161
        %v1204 = vmin.f32 %v1202, %v1163
        %v1205 = vmin.f32 %v1203, %v1165
        %v1206 = vmin.f32 %v1204, %v1167
        %v1207 = vmin.f32 %v1205, %v1169
        %v1208 = vmin.f32 %v1206, %v1171
        %v1209 = vmin.f32 %v1207, %v1173
        %v1210 = vmin.f32 %v1208, %v1175
        %v1211 = vmin.f32 %v1209, %v1210
        %v1212 = vrot.slane %v1211, 4
        %v1213 = vmin.f32 %v1211, %v1212
        %v1214 = vrot.slane %v1213, 2
        %v1215 = vmin.f32 %v1213, %v1214
        %v1216 = vrot.slane %v1215, 1
        %v1217 = vmin.f32 %v1215, %v1216
        %1219 = vset.pattern.permute.xlu0 0
        %1220 = vperm.xlu0 %1219, %v878
        %v1221 = vpop.permute.xlu0 %1220
        %1224 = vset.pattern.permute.xlu0 0
        %1225 = vperm.xlu0 %1224, %v879
        %v1226 = vpop.permute.xlu0 %1225
        %1229 = vset.pattern.permute.xlu0 0
        %1230 = vperm.xlu0 %1229, %v880
        %v1231 = vpop.permute.xlu0 %1230
        %1234 = vset.pattern.permute.xlu0 0
        %1235 = vperm.xlu0 %1234, %v881
        %v1236 = vpop.permute.xlu0 %1235
        %1239 = vset.pattern.permute.xlu0 0
        %1240 = vperm.xlu0 %1239, %v882
        %v1241 = vpop.permute.xlu0 %1240
        %1244 = vset.pattern.permute.xlu0 0
        %1245 = vperm.xlu0 %1244, %v883
        %v1246 = vpop.permute.xlu0 %1245
        %1249 = vset.pattern.permute.xlu0 0
        %1250 = vperm.xlu0 %1249, %v884
        %v1251 = vpop.permute.xlu0 %1250
        %1254 = vset.pattern.permute.xlu0 0
        %1255 = vperm.xlu0 %1254, %v885
        %v1256 = vpop.permute.xlu0 %1255
        %1259 = vset.pattern.permute.xlu0 0
        %1260 = vperm.xlu0 %1259, %v886
        %v1261 = vpop.permute.xlu0 %1260
        %1264 = vset.pattern.permute.xlu0 0
        %1265 = vperm.xlu0 %1264, %v887
        %v1266 = vpop.permute.xlu0 %1265
        %1269 = vset.pattern.permute.xlu0 0
        %1270 = vperm.xlu0 %1269, %v888
        %v1271 = vpop.permute.xlu0 %1270
        %1274 = vset.pattern.permute.xlu0 0
        %1275 = vperm.xlu0 %1274, %v889
        %v1276 = vpop.permute.xlu0 %1275
        %1279 = vset.pattern.permute.xlu0 0
        %1280 = vperm.xlu0 %1279, %v890
        %v1281 = vpop.permute.xlu0 %1280
        %1284 = vset.pattern.permute.xlu0 0
        %1285 = vperm.xlu0 %1284, %v891
        %v1286 = vpop.permute.xlu0 %1285
        %1289 = vset.pattern.permute.xlu0 0
        %1290 = vperm.xlu0 %1289, %v892
        %v1291 = vpop.permute.xlu0 %1290
        %1294 = vset.pattern.permute.xlu0 0
        %1295 = vperm.xlu0 %1294, %v893
        %v1296 = vpop.permute.xlu0 %1295
        %v1298 = vadd.f32 %v814, %v1221
        %v1299 = vadd.f32 %v815, %v1221
        %v1300 = vadd.f32 %v816, %v1226
        %v1301 = vadd.f32 %v817, %v1226
        %v1302 = vadd.f32 %v818, %v1231
        %v1303 = vadd.f32 %v819, %v1231
        %v1304 = vadd.f32 %v820, %v1236
        %v1305 = vadd.f32 %v821, %v1236
        %v1306 = vadd.f32 %v822, %v1241
        %v1307 = vadd.f32 %v823, %v1241
        %v1308 = vadd.f32 %v824, %v1246
        %v1309 = vadd.f32 %v825, %v1246
        %v1310 = vadd.f32 %v826, %v1251
        %v1311 = vadd.f32 %v827, %v1251
        %v1312 = vadd.f32 %v828, %v1256
        %v1313 = vadd.f32 %v829, %v1256
        %v1314 = vadd.f32 %v830, %v1261
        %v1315 = vadd.f32 %v831, %v1261
        %v1316 = vadd.f32 %v832, %v1266
        %v1317 = vadd.f32 %v833, %v1266
        %v1318 = vadd.f32 %v834, %v1271
        %v1319 = vadd.f32 %v835, %v1271
        %v1320 = vadd.f32 %v836, %v1276
        %v1321 = vadd.f32 %v837, %v1276
        %v1322 = vadd.f32 %v838, %v1281
        %v1323 = vadd.f32 %v839, %v1281
        %v1324 = vadd.f32 %v840, %v1286
        %v1325 = vadd.f32 %v841, %v1286
        %v1326 = vadd.f32 %v842, %v1291
        %v1327 = vadd.f32 %v843, %v1291
        %v1328 = vadd.f32 %v844, %v1296
        %v1329 = vadd.f32 %v845, %v1296
        %v1330 = vmin.f32 %v1298, %v1302
        %v1331 = vmin.f32 %v1300, %v1304
        %v1332 = vmin.f32 %v1330, %v1306
        %v1333 = vmin.f32 %v1331, %v1308
        %v1334 = vmin.f32 %v1332, %v1310
        %v1335 = vmin.f32 %v1333, %v1312
        %v1336 = vmin.f32 %v1334, %v1314
        %v1337 = vmin.f32 %v1335, %v1316
        %v1338 = vmin.f32 %v1336, %v1318
        %v1339 = vmin.f32 %v1337, %v1320
        %v1340 = vmin.f32 %v1338, %v1322
        %v1341 = vmin.f32 %v1339, %v1324
        %v1342 = vmin.f32 %v1340, %v1326
        %v1343 = vmin.f32 %v1341, %v1328
        %v1344 = vmin.f32 %v1342, %v1343
        %v1345 = vrot.slane %v1344, 4
        %v1346 = vmin.f32 %v1344, %v1345
        %v1347 = vrot.slane %v1346, 2
        %v1348 = vmin.f32 %v1346, %v1347
        %v1349 = vrot.slane %v1348, 1
        %v1350 = vmin.f32 %v1348, %v1349
        %v1351 = vmin.f32 %v1299, %v1303
        %v1352 = vmin.f32 %v1301, %v1305
        %v1353 = vmin.f32 %v1351, %v1307
        %v1354 = vmin.f32 %v1352, %v1309
        %v1355 = vmin.f32 %v1353, %v1311
        %v1356 = vmin.f32 %v1354, %v1313
        %v1357 = vmin.f32 %v1355, %v1315
        %v1358 = vmin.f32 %v1356, %v1317
        %v1359 = vmin.f32 %v1357, %v1319
        %v1360 = vmin.f32 %v1358, %v1321
        %v1361 = vmin.f32 %v1359, %v1323
        %v1362 = vmin.f32 %v1360, %v1325
        %v1363 = vmin.f32 %v1361, %v1327
        %v1364 = vmin.f32 %v1362, %v1329
        %v1365 = vmin.f32 %v1363, %v1364
        %v1366 = vrot.slane %v1365, 4
        %v1367 = vmin.f32 %v1365, %v1366
        %v1368 = vrot.slane %v1367, 2
        %v1369 = vmin.f32 %v1367, %v1368
        %v1370 = vrot.slane %v1369, 1
        %v1371 = vmin.f32 %v1369, %v1370
        %1373 = vset.pattern.permute.xlu0 0
        %1374 = vperm.xlu0 %1373, %v894
        %v1375 = vpop.permute.xlu0 %1374
        %1378 = vset.pattern.permute.xlu0 0
        %1379 = vperm.xlu0 %1378, %v895
        %v1380 = vpop.permute.xlu0 %1379
        %1383 = vset.pattern.permute.xlu0 0
        %1384 = vperm.xlu0 %1383, %v896
        %v1385 = vpop.permute.xlu0 %1384
        %1388 = vset.pattern.permute.xlu0 0
        %1389 = vperm.xlu0 %1388, %v897
        %v1390 = vpop.permute.xlu0 %1389
        %1393 = vset.pattern.permute.xlu0 0
        %1394 = vperm.xlu0 %1393, %v898
        %v1395 = vpop.permute.xlu0 %1394
        %1398 = vset.pattern.permute.xlu0 0
        %1399 = vperm.xlu0 %1398, %v899
        %v1400 = vpop.permute.xlu0 %1399
        %1403 = vset.pattern.permute.xlu0 0
        %1404 = vperm.xlu0 %1403, %v900
        %v1405 = vpop.permute.xlu0 %1404
        %1408 = vset.pattern.permute.xlu0 0
        %1409 = vperm.xlu0 %1408, %v901
        %v1410 = vpop.permute.xlu0 %1409
        %1413 = vset.pattern.permute.xlu0 0
        %1414 = vperm.xlu0 %1413, %v902
        %v1415 = vpop.permute.xlu0 %1414
        %1418 = vset.pattern.permute.xlu0 0
        %1419 = vperm.xlu0 %1418, %v903
        %v1420 = vpop.permute.xlu0 %1419
        %1423 = vset.pattern.permute.xlu0 0
        %1424 = vperm.xlu0 %1423, %v904
        %v1425 = vpop.permute.xlu0 %1424
        %1428 = vset.pattern.permute.xlu0 0
        %1429 = vperm.xlu0 %1428, %v905
        %v1430 = vpop.permute.xlu0 %1429
        %1433 = vset.pattern.permute.xlu0 0
        %1434 = vperm.xlu0 %1433, %v906
        %v1435 = vpop.permute.xlu0 %1434
        %1438 = vset.pattern.permute.xlu0 0
        %1439 = vperm.xlu0 %1438, %v907
        %v1440 = vpop.permute.xlu0 %1439
        %1443 = vset.pattern.permute.xlu0 0
        %1444 = vperm.xlu0 %1443, %v908
        %v1445 = vpop.permute.xlu0 %1444
        %1448 = vset.pattern.permute.xlu0 0
        %1449 = vperm.xlu0 %1448, %v909
        %v1450 = vpop.permute.xlu0 %1449
        %v1452 = vadd.f32 %v814, %v1375
        %v1453 = vadd.f32 %v815, %v1375
        %v1454 = vadd.f32 %v816, %v1380
        %v1455 = vadd.f32 %v817, %v1380
        %v1456 = vadd.f32 %v818, %v1385
        %v1457 = vadd.f32 %v819, %v1385
        %v1458 = vadd.f32 %v820, %v1390
        %v1459 = vadd.f32 %v821, %v1390
        %v1460 = vadd.f32 %v822, %v1395
        %v1461 = vadd.f32 %v823, %v1395
        %v1462 = vadd.f32 %v824, %v1400
        %v1463 = vadd.f32 %v825, %v1400
        %v1464 = vadd.f32 %v826, %v1405
        %v1465 = vadd.f32 %v827, %v1405
        %v1466 = vadd.f32 %v828, %v1410
        %v1467 = vadd.f32 %v829, %v1410
        %v1468 = vadd.f32 %v830, %v1415
        %v1469 = vadd.f32 %v831, %v1415
        %v1470 = vadd.f32 %v832, %v1420
        %v1471 = vadd.f32 %v833, %v1420
        %v1472 = vadd.f32 %v834, %v1425
        %v1473 = vadd.f32 %v835, %v1425
        %v1474 = vadd.f32 %v836, %v1430
        %v1475 = vadd.f32 %v837, %v1430
        %v1476 = vadd.f32 %v838, %v1435
        %v1477 = vadd.f32 %v839, %v1435
        %v1478 = vadd.f32 %v840, %v1440
        %v1479 = vadd.f32 %v841, %v1440
        %v1480 = vadd.f32 %v842, %v1445
        %v1481 = vadd.f32 %v843, %v1445
        %v1482 = vadd.f32 %v844, %v1450
        %v1483 = vadd.f32 %v845, %v1450
        %v1484 = vmin.f32 %v1452, %v1456
        %v1485 = vmin.f32 %v1454, %v1458
        %v1486 = vmin.f32 %v1484, %v1460
        %v1487 = vmin.f32 %v1485, %v1462
        %v1488 = vmin.f32 %v1486, %v1464
        %v1489 = vmin.f32 %v1487, %v1466
        %v1490 = vmin.f32 %v1488, %v1468
        %v1491 = vmin.f32 %v1489, %v1470
        %v1492 = vmin.f32 %v1490, %v1472
        %v1493 = vmin.f32 %v1491, %v1474
        %v1494 = vmin.f32 %v1492, %v1476
        %v1495 = vmin.f32 %v1493, %v1478
        %v1496 = vmin.f32 %v1494, %v1480
        %v1497 = vmin.f32 %v1495, %v1482
        %v1498 = vmin.f32 %v1496, %v1497
        %v1499 = vrot.slane %v1498, 4
        %v1500 = vmin.f32 %v1498, %v1499
        %v1501 = vrot.slane %v1500, 2
        %v1502 = vmin.f32 %v1500, %v1501
        %v1503 = vrot.slane %v1502, 1
        %v1504 = vmin.f32 %v1502, %v1503
        %v1505 = vmin.f32 %v1453, %v1457
        %v1506 = vmin.f32 %v1455, %v1459
        %v1507 = vmin.f32 %v1505, %v1461
        %v1508 = vmin.f32 %v1506, %v1463
        %v1509 = vmin.f32 %v1507, %v1465
        %v1510 = vmin.f32 %v1508, %v1467
        %v1511 = vmin.f32 %v1509, %v1469
        %v1512 = vmin.f32 %v1510, %v1471
        %v1513 = vmin.f32 %v1511, %v1473
        %v1514 = vmin.f32 %v1512, %v1475
        %v1515 = vmin.f32 %v1513, %v1477
        %v1516 = vmin.f32 %v1514, %v1479
        %v1517 = vmin.f32 %v1515, %v1481
        %v1518 = vmin.f32 %v1516, %v1483
        %v1519 = vmin.f32 %v1517, %v1518
        %v1520 = vrot.slane %v1519, 4
        %v1521 = vmin.f32 %v1519, %v1520
        %v1522 = vrot.slane %v1521, 2
        %v1523 = vmin.f32 %v1521, %v1522
        %v1524 = vrot.slane %v1523, 1
        %v1525 = vmin.f32 %v1523, %v1524
        %1526 = vset.pattern.permute.xlu0 1
        %1527 = vperm.xlu0 %1526, %v846
        %v1528 = vpop.permute.xlu0 %1527
        %1530 = vset.pattern.permute.xlu0 1
        %1531 = vperm.xlu0 %1530, %v847
        %v1532 = vpop.permute.xlu0 %1531
        %1534 = vset.pattern.permute.xlu0 1
        %1535 = vperm.xlu0 %1534, %v848
        %v1536 = vpop.permute.xlu0 %1535
        %1538 = vset.pattern.permute.xlu0 1
        %1539 = vperm.xlu0 %1538, %v849
        %v1540 = vpop.permute.xlu0 %1539
        %1542 = vset.pattern.permute.xlu0 1
        %1543 = vperm.xlu0 %1542, %v850
        %v1544 = vpop.permute.xlu0 %1543
        %1546 = vset.pattern.permute.xlu0 1
        %1547 = vperm.xlu0 %1546, %v851
        %v1548 = vpop.permute.xlu0 %1547
        %1550 = vset.pattern.permute.xlu0 1
        %1551 = vperm.xlu0 %1550, %v852
        %v1552 = vpop.permute.xlu0 %1551
        %1554 = vset.pattern.permute.xlu0 1
        %1555 = vperm.xlu0 %1554, %v853
        %v1556 = vpop.permute.xlu0 %1555
        %1558 = vset.pattern.permute.xlu0 1
        %1559 = vperm.xlu0 %1558, %v854
        %v1560 = vpop.permute.xlu0 %1559
        %1562 = vset.pattern.permute.xlu0 1
        %1563 = vperm.xlu0 %1562, %v855
        %v1564 = vpop.permute.xlu0 %1563
        %1566 = vset.pattern.permute.xlu0 1
        %1567 = vperm.xlu0 %1566, %v856
        %v1568 = vpop.permute.xlu0 %1567
        %1570 = vset.pattern.permute.xlu0 1
        %1571 = vperm.xlu0 %1570, %v857
        %v1572 = vpop.permute.xlu0 %1571
        %1574 = vset.pattern.permute.xlu0 1
        %1575 = vperm.xlu0 %1574, %v858
        %v1576 = vpop.permute.xlu0 %1575
        %1578 = vset.pattern.permute.xlu0 1
        %1579 = vperm.xlu0 %1578, %v859
        %v1580 = vpop.permute.xlu0 %1579
        %1582 = vset.pattern.permute.xlu0 1
        %1583 = vperm.xlu0 %1582, %v860
        %v1584 = vpop.permute.xlu0 %1583
        %1586 = vset.pattern.permute.xlu0 1
        %1587 = vperm.xlu0 %1586, %v861
        %v1588 = vpop.permute.xlu0 %1587
        %v1590 = vadd.f32 %v814, %v1528
        %v1591 = vadd.f32 %v815, %v1528
        %v1592 = vadd.f32 %v816, %v1532
        %v1593 = vadd.f32 %v817, %v1532
        %v1594 = vadd.f32 %v818, %v1536
        %v1595 = vadd.f32 %v819, %v1536
        %v1596 = vadd.f32 %v820, %v1540
        %v1597 = vadd.f32 %v821, %v1540
        %v1598 = vadd.f32 %v822, %v1544
        %v1599 = vadd.f32 %v823, %v1544
        %v1600 = vadd.f32 %v824, %v1548
        %v1601 = vadd.f32 %v825, %v1548
        %v1602 = vadd.f32 %v826, %v1552
        %v1603 = vadd.f32 %v827, %v1552
        %v1604 = vadd.f32 %v828, %v1556
        %v1605 = vadd.f32 %v829, %v1556
        %v1606 = vadd.f32 %v830, %v1560
        %v1607 = vadd.f32 %v831, %v1560
        %v1608 = vadd.f32 %v832, %v1564
        %v1609 = vadd.f32 %v833, %v1564
        %v1610 = vadd.f32 %v834, %v1568
        %v1611 = vadd.f32 %v835, %v1568
        %v1612 = vadd.f32 %v836, %v1572
        %v1613 = vadd.f32 %v837, %v1572
        %v1614 = vadd.f32 %v838, %v1576
        %v1615 = vadd.f32 %v839, %v1576
        %v1616 = vadd.f32 %v840, %v1580
        %v1617 = vadd.f32 %v841, %v1580
        %v1618 = vadd.f32 %v842, %v1584
        %v1619 = vadd.f32 %v843, %v1584
        %v1620 = vadd.f32 %v844, %v1588
        %v1621 = vadd.f32 %v845, %v1588
        %v1622 = vmin.f32 %v1590, %v1594
        %v1623 = vmin.f32 %v1592, %v1596
        %v1624 = vmin.f32 %v1622, %v1598
        %v1625 = vmin.f32 %v1623, %v1600
        %v1626 = vmin.f32 %v1624, %v1602
        %v1627 = vmin.f32 %v1625, %v1604
        %v1628 = vmin.f32 %v1626, %v1606
        %v1629 = vmin.f32 %v1627, %v1608
        %v1630 = vmin.f32 %v1628, %v1610
        %v1631 = vmin.f32 %v1629, %v1612
        %v1632 = vmin.f32 %v1630, %v1614
        %v1633 = vmin.f32 %v1631, %v1616
        %v1634 = vmin.f32 %v1632, %v1618
        %v1635 = vmin.f32 %v1633, %v1620
        %v1636 = vmin.f32 %v1634, %v1635
        %v1637 = vrot.slane %v1636, 4
        %v1638 = vmin.f32 %v1636, %v1637
        %v1639 = vrot.slane %v1638, 2
        %v1640 = vmin.f32 %v1638, %v1639
        %v1641 = vrot.slane %v1640, 1
        %v1642 = vmin.f32 %v1640, %v1641
        %v1643 = vmin.f32 %v1591, %v1595
        %v1644 = vmin.f32 %v1593, %v1597
        %v1645 = vmin.f32 %v1643, %v1599
        %v1646 = vmin.f32 %v1644, %v1601
        %v1647 = vmin.f32 %v1645, %v1603
        %v1648 = vmin.f32 %v1646, %v1605
        %v1649 = vmin.f32 %v1647, %v1607
        %v1650 = vmin.f32 %v1648, %v1609
        %v1651 = vmin.f32 %v1649, %v1611
        %v1652 = vmin.f32 %v1650, %v1613
        %v1653 = vmin.f32 %v1651, %v1615
        %v1654 = vmin.f32 %v1652, %v1617
        %v1655 = vmin.f32 %v1653, %v1619
        %v1656 = vmin.f32 %v1654, %v1621
        %v1657 = vmin.f32 %v1655, %v1656
        %v1658 = vrot.slane %v1657, 4
        %v1659 = vmin.f32 %v1657, %v1658
        %v1660 = vrot.slane %v1659, 2
        %v1661 = vmin.f32 %v1659, %v1660
        %v1662 = vrot.slane %v1661, 1
        %v1663 = vmin.f32 %v1661, %v1662
        %1664 = vset.pattern.permute.xlu0 1
        %1665 = vperm.xlu0 %1664, %v862
        %v1666 = vpop.permute.xlu0 %1665
        %1668 = vset.pattern.permute.xlu0 1
        %1669 = vperm.xlu0 %1668, %v863
        %v1670 = vpop.permute.xlu0 %1669
        %1672 = vset.pattern.permute.xlu0 1
        %1673 = vperm.xlu0 %1672, %v864
        %v1674 = vpop.permute.xlu0 %1673
        %1676 = vset.pattern.permute.xlu0 1
        %1677 = vperm.xlu0 %1676, %v865
        %v1678 = vpop.permute.xlu0 %1677
        %1680 = vset.pattern.permute.xlu0 1
        %1681 = vperm.xlu0 %1680, %v866
        %v1682 = vpop.permute.xlu0 %1681
        %1684 = vset.pattern.permute.xlu0 1
        %1685 = vperm.xlu0 %1684, %v867
        %v1686 = vpop.permute.xlu0 %1685
        %1688 = vset.pattern.permute.xlu0 1
        %1689 = vperm.xlu0 %1688, %v868
        %v1690 = vpop.permute.xlu0 %1689
        %1692 = vset.pattern.permute.xlu0 1
        %1693 = vperm.xlu0 %1692, %v869
        %v1694 = vpop.permute.xlu0 %1693
        %1696 = vset.pattern.permute.xlu0 1
        %1697 = vperm.xlu0 %1696, %v870
        %v1698 = vpop.permute.xlu0 %1697
        %1700 = vset.pattern.permute.xlu0 1
        %1701 = vperm.xlu0 %1700, %v871
        %v1702 = vpop.permute.xlu0 %1701
        %1704 = vset.pattern.permute.xlu0 1
        %1705 = vperm.xlu0 %1704, %v872
        %v1706 = vpop.permute.xlu0 %1705
        %1708 = vset.pattern.permute.xlu0 1
        %1709 = vperm.xlu0 %1708, %v873
        %v1710 = vpop.permute.xlu0 %1709
        %1712 = vset.pattern.permute.xlu0 1
        %1713 = vperm.xlu0 %1712, %v874
        %v1714 = vpop.permute.xlu0 %1713
        %1716 = vset.pattern.permute.xlu0 1
        %1717 = vperm.xlu0 %1716, %v875
        %v1718 = vpop.permute.xlu0 %1717
        %1720 = vset.pattern.permute.xlu0 1
        %1721 = vperm.xlu0 %1720, %v876
        %v1722 = vpop.permute.xlu0 %1721
        %1724 = vset.pattern.permute.xlu0 1
        %1725 = vperm.xlu0 %1724, %v877
        %v1726 = vpop.permute.xlu0 %1725
        %v1728 = vadd.f32 %v814, %v1666
        %v1729 = vadd.f32 %v815, %v1666
        %v1730 = vadd.f32 %v816, %v1670
        %v1731 = vadd.f32 %v817, %v1670
        %v1732 = vadd.f32 %v818, %v1674
        %v1733 = vadd.f32 %v819, %v1674
        %v1734 = vadd.f32 %v820, %v1678
        %v1735 = vadd.f32 %v821, %v1678
        %v1736 = vadd.f32 %v822, %v1682
        %v1737 = vadd.f32 %v823, %v1682
        %v1738 = vadd.f32 %v824, %v1686
        %v1739 = vadd.f32 %v825, %v1686
        %v1740 = vadd.f32 %v826, %v1690
        %v1741 = vadd.f32 %v827, %v1690
        %v1742 = vadd.f32 %v828, %v1694
        %v1743 = vadd.f32 %v829, %v1694
        %v1744 = vadd.f32 %v830, %v1698
        %v1745 = vadd.f32 %v831, %v1698
        %v1746 = vadd.f32 %v832, %v1702
        %v1747 = vadd.f32 %v833, %v1702
        %v1748 = vadd.f32 %v834, %v1706
        %v1749 = vadd.f32 %v835, %v1706
        %v1750 = vadd.f32 %v836, %v1710
        %v1751 = vadd.f32 %v837, %v1710
        %v1752 = vadd.f32 %v838, %v1714
        %v1753 = vadd.f32 %v839, %v1714
        %v1754 = vadd.f32 %v840, %v1718
        %v1755 = vadd.f32 %v841, %v1718
        %v1756 = vadd.f32 %v842, %v1722
        %v1757 = vadd.f32 %v843, %v1722
        %v1758 = vadd.f32 %v844, %v1726
        %v1759 = vadd.f32 %v845, %v1726
        %v1760 = vmin.f32 %v1728, %v1732
        %v1761 = vmin.f32 %v1730, %v1734
        %v1762 = vmin.f32 %v1760, %v1736
        %v1763 = vmin.f32 %v1761, %v1738
        %v1764 = vmin.f32 %v1762, %v1740
        %v1765 = vmin.f32 %v1763, %v1742
        %v1766 = vmin.f32 %v1764, %v1744
        %v1767 = vmin.f32 %v1765, %v1746
        %v1768 = vmin.f32 %v1766, %v1748
        %v1769 = vmin.f32 %v1767, %v1750
        %v1770 = vmin.f32 %v1768, %v1752
        %v1771 = vmin.f32 %v1769, %v1754
        %v1772 = vmin.f32 %v1770, %v1756
        %v1773 = vmin.f32 %v1771, %v1758
        %v1774 = vmin.f32 %v1772, %v1773
        %v1775 = vrot.slane %v1774, 4
        %v1776 = vmin.f32 %v1774, %v1775
        %v1777 = vrot.slane %v1776, 2
        %v1778 = vmin.f32 %v1776, %v1777
        %v1779 = vrot.slane %v1778, 1
        %v1780 = vmin.f32 %v1778, %v1779
        %v1781 = vmin.f32 %v1729, %v1733
        %v1782 = vmin.f32 %v1731, %v1735
        %v1783 = vmin.f32 %v1781, %v1737
        %v1784 = vmin.f32 %v1782, %v1739
        %v1785 = vmin.f32 %v1783, %v1741
        %v1786 = vmin.f32 %v1784, %v1743
        %v1787 = vmin.f32 %v1785, %v1745
        %v1788 = vmin.f32 %v1786, %v1747
        %v1789 = vmin.f32 %v1787, %v1749
        %v1790 = vmin.f32 %v1788, %v1751
        %v1791 = vmin.f32 %v1789, %v1753
        %v1792 = vmin.f32 %v1790, %v1755
        %v1793 = vmin.f32 %v1791, %v1757
        %v1794 = vmin.f32 %v1792, %v1759
        %v1795 = vmin.f32 %v1793, %v1794
        %v1796 = vrot.slane %v1795, 4
        %v1797 = vmin.f32 %v1795, %v1796
        %v1798 = vrot.slane %v1797, 2
        %v1799 = vmin.f32 %v1797, %v1798
        %v1800 = vrot.slane %v1799, 1
        %v1801 = vmin.f32 %v1799, %v1800
        %1802 = vset.pattern.permute.xlu0 1
        %1803 = vperm.xlu0 %1802, %v878
        %v1804 = vpop.permute.xlu0 %1803
        %1806 = vset.pattern.permute.xlu0 1
        %1807 = vperm.xlu0 %1806, %v879
        %v1808 = vpop.permute.xlu0 %1807
        %1810 = vset.pattern.permute.xlu0 1
        %1811 = vperm.xlu0 %1810, %v880
        %v1812 = vpop.permute.xlu0 %1811
        %1814 = vset.pattern.permute.xlu0 1
        %1815 = vperm.xlu0 %1814, %v881
        %v1816 = vpop.permute.xlu0 %1815
        %1818 = vset.pattern.permute.xlu0 1
        %1819 = vperm.xlu0 %1818, %v882
        %v1820 = vpop.permute.xlu0 %1819
        %1822 = vset.pattern.permute.xlu0 1
        %1823 = vperm.xlu0 %1822, %v883
        %v1824 = vpop.permute.xlu0 %1823
        %1826 = vset.pattern.permute.xlu0 1
        %1827 = vperm.xlu0 %1826, %v884
        %v1828 = vpop.permute.xlu0 %1827
        %1830 = vset.pattern.permute.xlu0 1
        %1831 = vperm.xlu0 %1830, %v885
        %v1832 = vpop.permute.xlu0 %1831
        %1834 = vset.pattern.permute.xlu0 1
        %1835 = vperm.xlu0 %1834, %v886
        %v1836 = vpop.permute.xlu0 %1835
        %1838 = vset.pattern.permute.xlu0 1
        %1839 = vperm.xlu0 %1838, %v887
        %v1840 = vpop.permute.xlu0 %1839
        %1842 = vset.pattern.permute.xlu0 1
        %1843 = vperm.xlu0 %1842, %v888
        %v1844 = vpop.permute.xlu0 %1843
        %1846 = vset.pattern.permute.xlu0 1
        %1847 = vperm.xlu0 %1846, %v889
        %v1848 = vpop.permute.xlu0 %1847
        %1850 = vset.pattern.permute.xlu0 1
        %1851 = vperm.xlu0 %1850, %v890
        %v1852 = vpop.permute.xlu0 %1851
        %1854 = vset.pattern.permute.xlu0 1
        %1855 = vperm.xlu0 %1854, %v891
        %v1856 = vpop.permute.xlu0 %1855
        %1858 = vset.pattern.permute.xlu0 1
        %1859 = vperm.xlu0 %1858, %v892
        %v1860 = vpop.permute.xlu0 %1859
        %1862 = vset.pattern.permute.xlu0 1
        %1863 = vperm.xlu0 %1862, %v893
        %v1864 = vpop.permute.xlu0 %1863
        %v1866 = vadd.f32 %v814, %v1804
        %v1867 = vadd.f32 %v815, %v1804
        %v1868 = vadd.f32 %v816, %v1808
        %v1869 = vadd.f32 %v817, %v1808
        %v1870 = vadd.f32 %v818, %v1812
        %v1871 = vadd.f32 %v819, %v1812
        %v1872 = vadd.f32 %v820, %v1816
        %v1873 = vadd.f32 %v821, %v1816
        %v1874 = vadd.f32 %v822, %v1820
        %v1875 = vadd.f32 %v823, %v1820
        %v1876 = vadd.f32 %v824, %v1824
        %v1877 = vadd.f32 %v825, %v1824
        %v1878 = vadd.f32 %v826, %v1828
        %v1879 = vadd.f32 %v827, %v1828
        %v1880 = vadd.f32 %v828, %v1832
        %v1881 = vadd.f32 %v829, %v1832
        %v1882 = vadd.f32 %v830, %v1836
        %v1883 = vadd.f32 %v831, %v1836
        %v1884 = vadd.f32 %v832, %v1840
        %v1885 = vadd.f32 %v833, %v1840
        %v1886 = vadd.f32 %v834, %v1844
        %v1887 = vadd.f32 %v835, %v1844
        %v1888 = vadd.f32 %v836, %v1848
        %v1889 = vadd.f32 %v837, %v1848
        %v1890 = vadd.f32 %v838, %v1852
        %v1891 = vadd.f32 %v839, %v1852
        %v1892 = vadd.f32 %v840, %v1856
        %v1893 = vadd.f32 %v841, %v1856
        %v1894 = vadd.f32 %v842, %v1860
        %v1895 = vadd.f32 %v843, %v1860
        %v1896 = vadd.f32 %v844, %v1864
        %v1897 = vadd.f32 %v845, %v1864
        %v1898 = vmin.f32 %v1866, %v1870
        %v1899 = vmin.f32 %v1868, %v1872
        %v1900 = vmin.f32 %v1898, %v1874
        %v1901 = vmin.f32 %v1899, %v1876
        %v1902 = vmin.f32 %v1900, %v1878
        %v1903 = vmin.f32 %v1901, %v1880
        %v1904 = vmin.f32 %v1902, %v1882
        %v1905 = vmin.f32 %v1903, %v1884
        %v1906 = vmin.f32 %v1904, %v1886
        %v1907 = vmin.f32 %v1905, %v1888
        %v1908 = vmin.f32 %v1906, %v1890
        %v1909 = vmin.f32 %v1907, %v1892
        %v1910 = vmin.f32 %v1908, %v1894
        %v1911 = vmin.f32 %v1909, %v1896
        %v1912 = vmin.f32 %v1910, %v1911
        %v1913 = vrot.slane %v1912, 4
        %v1914 = vmin.f32 %v1912, %v1913
        %v1915 = vrot.slane %v1914, 2
        %v1916 = vmin.f32 %v1914, %v1915
        %v1917 = vrot.slane %v1916, 1
        %v1918 = vmin.f32 %v1916, %v1917
        %v1919 = vmin.f32 %v1867, %v1871
        %v1920 = vmin.f32 %v1869, %v1873
        %v1921 = vmin.f32 %v1919, %v1875
        %v1922 = vmin.f32 %v1920, %v1877
        %v1923 = vmin.f32 %v1921, %v1879
        %v1924 = vmin.f32 %v1922, %v1881
        %v1925 = vmin.f32 %v1923, %v1883
        %v1926 = vmin.f32 %v1924, %v1885
        %v1927 = vmin.f32 %v1925, %v1887
        %v1928 = vmin.f32 %v1926, %v1889
        %v1929 = vmin.f32 %v1927, %v1891
        %v1930 = vmin.f32 %v1928, %v1893
        %v1931 = vmin.f32 %v1929, %v1895
        %v1932 = vmin.f32 %v1930, %v1897
        %v1933 = vmin.f32 %v1931, %v1932
        %v1934 = vrot.slane %v1933, 4
        %v1935 = vmin.f32 %v1933, %v1934
        %v1936 = vrot.slane %v1935, 2
        %v1937 = vmin.f32 %v1935, %v1936
        %v1938 = vrot.slane %v1937, 1
        %v1939 = vmin.f32 %v1937, %v1938
        %1940 = vset.pattern.permute.xlu0 1
        %1941 = vperm.xlu0 %1940, %v894
        %v1942 = vpop.permute.xlu0 %1941
        %1944 = vset.pattern.permute.xlu0 1
        %1945 = vperm.xlu0 %1944, %v895
        %v1946 = vpop.permute.xlu0 %1945
        %1948 = vset.pattern.permute.xlu0 1
        %1949 = vperm.xlu0 %1948, %v896
        %v1950 = vpop.permute.xlu0 %1949
        %1952 = vset.pattern.permute.xlu0 1
        %1953 = vperm.xlu0 %1952, %v897
        %v1954 = vpop.permute.xlu0 %1953
        %1956 = vset.pattern.permute.xlu0 1
        %1957 = vperm.xlu0 %1956, %v898
        %v1958 = vpop.permute.xlu0 %1957
        %1960 = vset.pattern.permute.xlu0 1
        %1961 = vperm.xlu0 %1960, %v899
        %v1962 = vpop.permute.xlu0 %1961
        %1964 = vset.pattern.permute.xlu0 1
        %1965 = vperm.xlu0 %1964, %v900
        %v1966 = vpop.permute.xlu0 %1965
        %1968 = vset.pattern.permute.xlu0 1
        %1969 = vperm.xlu0 %1968, %v901
        %v1970 = vpop.permute.xlu0 %1969
        %1972 = vset.pattern.permute.xlu0 1
        %1973 = vperm.xlu0 %1972, %v902
        %v1974 = vpop.permute.xlu0 %1973
        %1976 = vset.pattern.permute.xlu0 1
        %1977 = vperm.xlu0 %1976, %v903
        %v1978 = vpop.permute.xlu0 %1977
        %1980 = vset.pattern.permute.xlu0 1
        %1981 = vperm.xlu0 %1980, %v904
        %v1982 = vpop.permute.xlu0 %1981
        %1984 = vset.pattern.permute.xlu0 1
        %1985 = vperm.xlu0 %1984, %v905
        %v1986 = vpop.permute.xlu0 %1985
        %1988 = vset.pattern.permute.xlu0 1
        %1989 = vperm.xlu0 %1988, %v906
        %v1990 = vpop.permute.xlu0 %1989
        %1992 = vset.pattern.permute.xlu0 1
        %1993 = vperm.xlu0 %1992, %v907
        %v1994 = vpop.permute.xlu0 %1993
        %1996 = vset.pattern.permute.xlu0 1
        %1997 = vperm.xlu0 %1996, %v908
        %v1998 = vpop.permute.xlu0 %1997
        %2000 = vset.pattern.permute.xlu0 1
        %2001 = vperm.xlu0 %2000, %v909
        %v2002 = vpop.permute.xlu0 %2001
        %v2004 = vadd.f32 %v814, %v1942
        %v2005 = vadd.f32 %v815, %v1942
        %v2006 = vadd.f32 %v816, %v1946
        %v2007 = vadd.f32 %v817, %v1946
        %v2008 = vadd.f32 %v818, %v1950
        %v2009 = vadd.f32 %v819, %v1950
        %v2010 = vadd.f32 %v820, %v1954
        %v2011 = vadd.f32 %v821, %v1954
        %v2012 = vadd.f32 %v822, %v1958
        %v2013 = vadd.f32 %v823, %v1958
        %v2014 = vadd.f32 %v824, %v1962
        %v2015 = vadd.f32 %v825, %v1962
        %v2016 = vadd.f32 %v826, %v1966
        %v2017 = vadd.f32 %v827, %v1966
        %v2018 = vadd.f32 %v828, %v1970
        %v2019 = vadd.f32 %v829, %v1970
        %v2020 = vadd.f32 %v830, %v1974
        %v2021 = vadd.f32 %v831, %v1974
        %v2022 = vadd.f32 %v832, %v1978
        %v2023 = vadd.f32 %v833, %v1978
        %v2024 = vadd.f32 %v834, %v1982
        %v2025 = vadd.f32 %v835, %v1982
        %v2026 = vadd.f32 %v836, %v1986
        %v2027 = vadd.f32 %v837, %v1986
        %v2028 = vadd.f32 %v838, %v1990
        %v2029 = vadd.f32 %v839, %v1990
        %v2030 = vadd.f32 %v840, %v1994
        %v2031 = vadd.f32 %v841, %v1994
        %v2032 = vadd.f32 %v842, %v1998
        %v2033 = vadd.f32 %v843, %v1998
        %v2034 = vadd.f32 %v844, %v2002
        %v2035 = vadd.f32 %v845, %v2002
        %v2036 = vmin.f32 %v2004, %v2008
        %v2037 = vmin.f32 %v2006, %v2010
        %v2038 = vmin.f32 %v2036, %v2012
        %v2039 = vmin.f32 %v2037, %v2014
        %v2040 = vmin.f32 %v2038, %v2016
        %v2041 = vmin.f32 %v2039, %v2018
        %v2042 = vmin.f32 %v2040, %v2020
        %v2043 = vmin.f32 %v2041, %v2022
        %v2044 = vmin.f32 %v2042, %v2024
        %v2045 = vmin.f32 %v2043, %v2026
        %v2046 = vmin.f32 %v2044, %v2028
        %v2047 = vmin.f32 %v2045, %v2030
        %v2048 = vmin.f32 %v2046, %v2032
        %v2049 = vmin.f32 %v2047, %v2034
        %v2050 = vmin.f32 %v2048, %v2049
        %v2051 = vrot.slane %v2050, 4
        %v2052 = vmin.f32 %v2050, %v2051
        %v2053 = vrot.slane %v2052, 2
        %v2054 = vmin.f32 %v2052, %v2053
        %v2055 = vrot.slane %v2054, 1
        %v2056 = vmin.f32 %v2054, %v2055
        %v2057 = vmin.f32 %v2005, %v2009
        %v2058 = vmin.f32 %v2007, %v2011
        %v2059 = vmin.f32 %v2057, %v2013
        %v2060 = vmin.f32 %v2058, %v2015
        %v2061 = vmin.f32 %v2059, %v2017
        %v2062 = vmin.f32 %v2060, %v2019
        %v2063 = vmin.f32 %v2061, %v2021
        %v2064 = vmin.f32 %v2062, %v2023
        %v2065 = vmin.f32 %v2063, %v2025
        %v2066 = vmin.f32 %v2064, %v2027
        %v2067 = vmin.f32 %v2065, %v2029
        %v2068 = vmin.f32 %v2066, %v2031
        %v2069 = vmin.f32 %v2067, %v2033
        %v2070 = vmin.f32 %v2068, %v2035
        %v2071 = vmin.f32 %v2069, %v2070
        %v2072 = vrot.slane %v2071, 4
        %v2073 = vmin.f32 %v2071, %v2072
        %v2074 = vrot.slane %v2073, 2
        %v2075 = vmin.f32 %v2073, %v2074
        %v2076 = vrot.slane %v2075, 1
        %v2077 = vmin.f32 %v2075, %v2076
        %2078 = vset.pattern.permute.xlu0 2
        %2079 = vperm.xlu0 %2078, %v846
        %v2080 = vpop.permute.xlu0 %2079
        %2082 = vset.pattern.permute.xlu0 2
        %2083 = vperm.xlu0 %2082, %v847
        %v2084 = vpop.permute.xlu0 %2083
        %2086 = vset.pattern.permute.xlu0 2
        %2087 = vperm.xlu0 %2086, %v848
        %v2088 = vpop.permute.xlu0 %2087
        %2090 = vset.pattern.permute.xlu0 2
        %2091 = vperm.xlu0 %2090, %v849
        %v2092 = vpop.permute.xlu0 %2091
        %2094 = vset.pattern.permute.xlu0 2
        %2095 = vperm.xlu0 %2094, %v850
        %v2096 = vpop.permute.xlu0 %2095
        %2098 = vset.pattern.permute.xlu0 2
        %2099 = vperm.xlu0 %2098, %v851
        %v2100 = vpop.permute.xlu0 %2099
        %2102 = vset.pattern.permute.xlu0 2
        %2103 = vperm.xlu0 %2102, %v852
        %v2104 = vpop.permute.xlu0 %2103
        %2106 = vset.pattern.permute.xlu0 2
        %2107 = vperm.xlu0 %2106, %v853
        %v2108 = vpop.permute.xlu0 %2107
        %2110 = vset.pattern.permute.xlu0 2
        %2111 = vperm.xlu0 %2110, %v854
        %v2112 = vpop.permute.xlu0 %2111
        %2114 = vset.pattern.permute.xlu0 2
        %2115 = vperm.xlu0 %2114, %v855
        %v2116 = vpop.permute.xlu0 %2115
        %2118 = vset.pattern.permute.xlu0 2
        %2119 = vperm.xlu0 %2118, %v856
        %v2120 = vpop.permute.xlu0 %2119
        %2122 = vset.pattern.permute.xlu0 2
        %2123 = vperm.xlu0 %2122, %v857
        %v2124 = vpop.permute.xlu0 %2123
        %2126 = vset.pattern.permute.xlu0 2
        %2127 = vperm.xlu0 %2126, %v858
        %v2128 = vpop.permute.xlu0 %2127
        %2130 = vset.pattern.permute.xlu0 2
        %2131 = vperm.xlu0 %2130, %v859
        %v2132 = vpop.permute.xlu0 %2131
        %2134 = vset.pattern.permute.xlu0 2
        %2135 = vperm.xlu0 %2134, %v860
        %v2136 = vpop.permute.xlu0 %2135
        %2138 = vset.pattern.permute.xlu0 2
        %2139 = vperm.xlu0 %2138, %v861
        %v2140 = vpop.permute.xlu0 %2139
        %v2142 = vadd.f32 %v814, %v2080
        %v2143 = vadd.f32 %v815, %v2080
        %v2144 = vadd.f32 %v816, %v2084
        %v2145 = vadd.f32 %v817, %v2084
        %v2146 = vadd.f32 %v818, %v2088
        %v2147 = vadd.f32 %v819, %v2088
        %v2148 = vadd.f32 %v820, %v2092
        %v2149 = vadd.f32 %v821, %v2092
        %v2150 = vadd.f32 %v822, %v2096
        %v2151 = vadd.f32 %v823, %v2096
        %v2152 = vadd.f32 %v824, %v2100
        %v2153 = vadd.f32 %v825, %v2100
        %v2154 = vadd.f32 %v826, %v2104
        %v2155 = vadd.f32 %v827, %v2104
        %v2156 = vadd.f32 %v828, %v2108
        %v2157 = vadd.f32 %v829, %v2108
        %v2158 = vadd.f32 %v830, %v2112
        %v2159 = vadd.f32 %v831, %v2112
        %v2160 = vadd.f32 %v832, %v2116
        %v2161 = vadd.f32 %v833, %v2116
        %v2162 = vadd.f32 %v834, %v2120
        %v2163 = vadd.f32 %v835, %v2120
        %v2164 = vadd.f32 %v836, %v2124
        %v2165 = vadd.f32 %v837, %v2124
        %v2166 = vadd.f32 %v838, %v2128
        %v2167 = vadd.f32 %v839, %v2128
        %v2168 = vadd.f32 %v840, %v2132
        %v2169 = vadd.f32 %v841, %v2132
        %v2170 = vadd.f32 %v842, %v2136
        %v2171 = vadd.f32 %v843, %v2136
        %v2172 = vadd.f32 %v844, %v2140
        %v2173 = vadd.f32 %v845, %v2140
        %v2174 = vmin.f32 %v2142, %v2146
        %v2175 = vmin.f32 %v2144, %v2148
        %v2176 = vmin.f32 %v2174, %v2150
        %v2177 = vmin.f32 %v2175, %v2152
        %v2178 = vmin.f32 %v2176, %v2154
        %v2179 = vmin.f32 %v2177, %v2156
        %v2180 = vmin.f32 %v2178, %v2158
        %v2181 = vmin.f32 %v2179, %v2160
        %v2182 = vmin.f32 %v2180, %v2162
        %v2183 = vmin.f32 %v2181, %v2164
        %v2184 = vmin.f32 %v2182, %v2166
        %v2185 = vmin.f32 %v2183, %v2168
        %v2186 = vmin.f32 %v2184, %v2170
        %v2187 = vmin.f32 %v2185, %v2172
        %v2188 = vmin.f32 %v2186, %v2187
        %v2189 = vrot.slane %v2188, 4
        %v2190 = vmin.f32 %v2188, %v2189
        %v2191 = vrot.slane %v2190, 2
        %v2192 = vmin.f32 %v2190, %v2191
        %v2193 = vrot.slane %v2192, 1
        %v2194 = vmin.f32 %v2192, %v2193
        %v2195 = vmin.f32 %v2143, %v2147
        %v2196 = vmin.f32 %v2145, %v2149
        %v2197 = vmin.f32 %v2195, %v2151
        %v2198 = vmin.f32 %v2196, %v2153
        %v2199 = vmin.f32 %v2197, %v2155
        %v2200 = vmin.f32 %v2198, %v2157
        %v2201 = vmin.f32 %v2199, %v2159
        %v2202 = vmin.f32 %v2200, %v2161
        %v2203 = vmin.f32 %v2201, %v2163
        %v2204 = vmin.f32 %v2202, %v2165
        %v2205 = vmin.f32 %v2203, %v2167
        %v2206 = vmin.f32 %v2204, %v2169
        %v2207 = vmin.f32 %v2205, %v2171
        %v2208 = vmin.f32 %v2206, %v2173
        %v2209 = vmin.f32 %v2207, %v2208
        %v2210 = vrot.slane %v2209, 4
        %v2211 = vmin.f32 %v2209, %v2210
        %v2212 = vrot.slane %v2211, 2
        %v2213 = vmin.f32 %v2211, %v2212
        %v2214 = vrot.slane %v2213, 1
        %v2215 = vmin.f32 %v2213, %v2214
        %2216 = vset.pattern.permute.xlu0 2
        %2217 = vperm.xlu0 %2216, %v862
        %v2218 = vpop.permute.xlu0 %2217
        %2220 = vset.pattern.permute.xlu0 2
        %2221 = vperm.xlu0 %2220, %v863
        %v2222 = vpop.permute.xlu0 %2221
        %2224 = vset.pattern.permute.xlu0 2
        %2225 = vperm.xlu0 %2224, %v864
        %v2226 = vpop.permute.xlu0 %2225
        %2228 = vset.pattern.permute.xlu0 2
        %2229 = vperm.xlu0 %2228, %v865
        %v2230 = vpop.permute.xlu0 %2229
        %2232 = vset.pattern.permute.xlu0 2
        %2233 = vperm.xlu0 %2232, %v866
        %v2234 = vpop.permute.xlu0 %2233
        %2236 = vset.pattern.permute.xlu0 2
        %2237 = vperm.xlu0 %2236, %v867
        %v2238 = vpop.permute.xlu0 %2237
        %2240 = vset.pattern.permute.xlu0 2
        %2241 = vperm.xlu0 %2240, %v868
        %v2242 = vpop.permute.xlu0 %2241
        %2244 = vset.pattern.permute.xlu0 2
        %2245 = vperm.xlu0 %2244, %v869
        %v2246 = vpop.permute.xlu0 %2245
        %2248 = vset.pattern.permute.xlu0 2
        %2249 = vperm.xlu0 %2248, %v870
        %v2250 = vpop.permute.xlu0 %2249
        %2252 = vset.pattern.permute.xlu0 2
        %2253 = vperm.xlu0 %2252, %v871
        %v2254 = vpop.permute.xlu0 %2253
        %2256 = vset.pattern.permute.xlu0 2
        %2257 = vperm.xlu0 %2256, %v872
        %v2258 = vpop.permute.xlu0 %2257
        %2260 = vset.pattern.permute.xlu0 2
        %2261 = vperm.xlu0 %2260, %v873
        %v2262 = vpop.permute.xlu0 %2261
        %2264 = vset.pattern.permute.xlu0 2
        %2265 = vperm.xlu0 %2264, %v874
        %v2266 = vpop.permute.xlu0 %2265
        %2268 = vset.pattern.permute.xlu0 2
        %2269 = vperm.xlu0 %2268, %v875
        %v2270 = vpop.permute.xlu0 %2269
        %2272 = vset.pattern.permute.xlu0 2
        %2273 = vperm.xlu0 %2272, %v876
        %v2274 = vpop.permute.xlu0 %2273
        %2276 = vset.pattern.permute.xlu0 2
        %2277 = vperm.xlu0 %2276, %v877
        %v2278 = vpop.permute.xlu0 %2277
        %v2280 = vadd.f32 %v814, %v2218
        %v2281 = vadd.f32 %v815, %v2218
        %v2282 = vadd.f32 %v816, %v2222
        %v2283 = vadd.f32 %v817, %v2222
        %v2284 = vadd.f32 %v818, %v2226
        %v2285 = vadd.f32 %v819, %v2226
        %v2286 = vadd.f32 %v820, %v2230
        %v2287 = vadd.f32 %v821, %v2230
        %v2288 = vadd.f32 %v822, %v2234
        %v2289 = vadd.f32 %v823, %v2234
        %v2290 = vadd.f32 %v824, %v2238
        %v2291 = vadd.f32 %v825, %v2238
        %v2292 = vadd.f32 %v826, %v2242
        %v2293 = vadd.f32 %v827, %v2242
        %v2294 = vadd.f32 %v828, %v2246
        %v2295 = vadd.f32 %v829, %v2246
        %v2296 = vadd.f32 %v830, %v2250
        %v2297 = vadd.f32 %v831, %v2250
        %v2298 = vadd.f32 %v832, %v2254
        %v2299 = vadd.f32 %v833, %v2254
        %v2300 = vadd.f32 %v834, %v2258
        %v2301 = vadd.f32 %v835, %v2258
        %v2302 = vadd.f32 %v836, %v2262
        %v2303 = vadd.f32 %v837, %v2262
        %v2304 = vadd.f32 %v838, %v2266
        %v2305 = vadd.f32 %v839, %v2266
        %v2306 = vadd.f32 %v840, %v2270
        %v2307 = vadd.f32 %v841, %v2270
        %v2308 = vadd.f32 %v842, %v2274
        %v2309 = vadd.f32 %v843, %v2274
        %v2310 = vadd.f32 %v844, %v2278
        %v2311 = vadd.f32 %v845, %v2278
        %v2312 = vmin.f32 %v2280, %v2284
        %v2313 = vmin.f32 %v2282, %v2286
        %v2314 = vmin.f32 %v2312, %v2288
        %v2315 = vmin.f32 %v2313, %v2290
        %v2316 = vmin.f32 %v2314, %v2292
        %v2317 = vmin.f32 %v2315, %v2294
        %v2318 = vmin.f32 %v2316, %v2296
        %v2319 = vmin.f32 %v2317, %v2298
        %v2320 = vmin.f32 %v2318, %v2300
        %v2321 = vmin.f32 %v2319, %v2302
        %v2322 = vmin.f32 %v2320, %v2304
        %v2323 = vmin.f32 %v2321, %v2306
        %v2324 = vmin.f32 %v2322, %v2308
        %v2325 = vmin.f32 %v2323, %v2310
        %v2326 = vmin.f32 %v2324, %v2325
        %v2327 = vrot.slane %v2326, 4
        %v2328 = vmin.f32 %v2326, %v2327
        %v2329 = vrot.slane %v2328, 2
        %v2330 = vmin.f32 %v2328, %v2329
        %v2331 = vrot.slane %v2330, 1
        %v2332 = vmin.f32 %v2330, %v2331
        %v2333 = vmin.f32 %v2281, %v2285
        %v2334 = vmin.f32 %v2283, %v2287
        %v2335 = vmin.f32 %v2333, %v2289
        %v2336 = vmin.f32 %v2334, %v2291
        %v2337 = vmin.f32 %v2335, %v2293
        %v2338 = vmin.f32 %v2336, %v2295
        %v2339 = vmin.f32 %v2337, %v2297
        %v2340 = vmin.f32 %v2338, %v2299
        %v2341 = vmin.f32 %v2339, %v2301
        %v2342 = vmin.f32 %v2340, %v2303
        %v2343 = vmin.f32 %v2341, %v2305
        %v2344 = vmin.f32 %v2342, %v2307
        %v2345 = vmin.f32 %v2343, %v2309
        %v2346 = vmin.f32 %v2344, %v2311
        %v2347 = vmin.f32 %v2345, %v2346
        %v2348 = vrot.slane %v2347, 4
        %v2349 = vmin.f32 %v2347, %v2348
        %v2350 = vrot.slane %v2349, 2
        %v2351 = vmin.f32 %v2349, %v2350
        %v2352 = vrot.slane %v2351, 1
        %v2353 = vmin.f32 %v2351, %v2352
        %2354 = vset.pattern.permute.xlu0 2
        %2355 = vperm.xlu0 %2354, %v878
        %v2356 = vpop.permute.xlu0 %2355
        %2358 = vset.pattern.permute.xlu0 2
        %2359 = vperm.xlu0 %2358, %v879
        %v2360 = vpop.permute.xlu0 %2359
        %2362 = vset.pattern.permute.xlu0 2
        %2363 = vperm.xlu0 %2362, %v880
        %v2364 = vpop.permute.xlu0 %2363
        %2366 = vset.pattern.permute.xlu0 2
        %2367 = vperm.xlu0 %2366, %v881
        %v2368 = vpop.permute.xlu0 %2367
        %2370 = vset.pattern.permute.xlu0 2
        %2371 = vperm.xlu0 %2370, %v882
        %v2372 = vpop.permute.xlu0 %2371
        %2374 = vset.pattern.permute.xlu0 2
        %2375 = vperm.xlu0 %2374, %v883
        %v2376 = vpop.permute.xlu0 %2375
        %2378 = vset.pattern.permute.xlu0 2
        %2379 = vperm.xlu0 %2378, %v884
        %v2380 = vpop.permute.xlu0 %2379
        %2382 = vset.pattern.permute.xlu0 2
        %2383 = vperm.xlu0 %2382, %v885
        %v2384 = vpop.permute.xlu0 %2383
        %2386 = vset.pattern.permute.xlu0 2
        %2387 = vperm.xlu0 %2386, %v886
        %v2388 = vpop.permute.xlu0 %2387
        %2390 = vset.pattern.permute.xlu0 2
        %2391 = vperm.xlu0 %2390, %v887
        %v2392 = vpop.permute.xlu0 %2391
        %2394 = vset.pattern.permute.xlu0 2
        %2395 = vperm.xlu0 %2394, %v888
        %v2396 = vpop.permute.xlu0 %2395
        %2398 = vset.pattern.permute.xlu0 2
        %2399 = vperm.xlu0 %2398, %v889
        %v2400 = vpop.permute.xlu0 %2399
        %2402 = vset.pattern.permute.xlu0 2
        %2403 = vperm.xlu0 %2402, %v890
        %v2404 = vpop.permute.xlu0 %2403
        %2406 = vset.pattern.permute.xlu0 2
        %2407 = vperm.xlu0 %2406, %v891
        %v2408 = vpop.permute.xlu0 %2407
        %2410 = vset.pattern.permute.xlu0 2
        %2411 = vperm.xlu0 %2410, %v892
        %v2412 = vpop.permute.xlu0 %2411
        %2414 = vset.pattern.permute.xlu0 2
        %2415 = vperm.xlu0 %2414, %v893
        %v2416 = vpop.permute.xlu0 %2415
        %v2418 = vadd.f32 %v814, %v2356
        %v2419 = vadd.f32 %v815, %v2356
        %v2420 = vadd.f32 %v816, %v2360
        %v2421 = vadd.f32 %v817, %v2360
        %v2422 = vadd.f32 %v818, %v2364
        %v2423 = vadd.f32 %v819, %v2364
        %v2424 = vadd.f32 %v820, %v2368
        %v2425 = vadd.f32 %v821, %v2368
        %v2426 = vadd.f32 %v822, %v2372
        %v2427 = vadd.f32 %v823, %v2372
        %v2428 = vadd.f32 %v824, %v2376
        %v2429 = vadd.f32 %v825, %v2376
        %v2430 = vadd.f32 %v826, %v2380
        %v2431 = vadd.f32 %v827, %v2380
        %v2432 = vadd.f32 %v828, %v2384
        %v2433 = vadd.f32 %v829, %v2384
        %v2434 = vadd.f32 %v830, %v2388
        %v2435 = vadd.f32 %v831, %v2388
        %v2436 = vadd.f32 %v832, %v2392
        %v2437 = vadd.f32 %v833, %v2392
        %v2438 = vadd.f32 %v834, %v2396
        %v2439 = vadd.f32 %v835, %v2396
        %v2440 = vadd.f32 %v836, %v2400
        %v2441 = vadd.f32 %v837, %v2400
        %v2442 = vadd.f32 %v838, %v2404
        %v2443 = vadd.f32 %v839, %v2404
        %v2444 = vadd.f32 %v840, %v2408
        %v2445 = vadd.f32 %v841, %v2408
        %v2446 = vadd.f32 %v842, %v2412
        %v2447 = vadd.f32 %v843, %v2412
        %v2448 = vadd.f32 %v844, %v2416
        %v2449 = vadd.f32 %v845, %v2416
        %v2450 = vmin.f32 %v2418, %v2422
        %v2451 = vmin.f32 %v2420, %v2424
        %v2452 = vmin.f32 %v2450, %v2426
        %v2453 = vmin.f32 %v2451, %v2428
        %v2454 = vmin.f32 %v2452, %v2430
        %v2455 = vmin.f32 %v2453, %v2432
        %v2456 = vmin.f32 %v2454, %v2434
        %v2457 = vmin.f32 %v2455, %v2436
        %v2458 = vmin.f32 %v2456, %v2438
        %v2459 = vmin.f32 %v2457, %v2440
        %v2460 = vmin.f32 %v2458, %v2442
        %v2461 = vmin.f32 %v2459, %v2444
        %v2462 = vmin.f32 %v2460, %v2446
        %v2463 = vmin.f32 %v2461, %v2448
        %v2464 = vmin.f32 %v2462, %v2463
        %v2465 = vrot.slane %v2464, 4
        %v2466 = vmin.f32 %v2464, %v2465
        %v2467 = vrot.slane %v2466, 2
        %v2468 = vmin.f32 %v2466, %v2467
        %v2469 = vrot.slane %v2468, 1
        %v2470 = vmin.f32 %v2468, %v2469
        %v2471 = vmin.f32 %v2419, %v2423
        %v2472 = vmin.f32 %v2421, %v2425
        %v2473 = vmin.f32 %v2471, %v2427
        %v2474 = vmin.f32 %v2472, %v2429
        %v2475 = vmin.f32 %v2473, %v2431
        %v2476 = vmin.f32 %v2474, %v2433
        %v2477 = vmin.f32 %v2475, %v2435
        %v2478 = vmin.f32 %v2476, %v2437
        %v2479 = vmin.f32 %v2477, %v2439
        %v2480 = vmin.f32 %v2478, %v2441
        %v2481 = vmin.f32 %v2479, %v2443
        %v2482 = vmin.f32 %v2480, %v2445
        %v2483 = vmin.f32 %v2481, %v2447
        %v2484 = vmin.f32 %v2482, %v2449
        %v2485 = vmin.f32 %v2483, %v2484
        %v2486 = vrot.slane %v2485, 4
        %v2487 = vmin.f32 %v2485, %v2486
        %v2488 = vrot.slane %v2487, 2
        %v2489 = vmin.f32 %v2487, %v2488
        %v2490 = vrot.slane %v2489, 1
        %v2491 = vmin.f32 %v2489, %v2490
        %2492 = vset.pattern.permute.xlu0 2
        %2493 = vperm.xlu0 %2492, %v894
        %v2494 = vpop.permute.xlu0 %2493
        %2496 = vset.pattern.permute.xlu0 2
        %2497 = vperm.xlu0 %2496, %v895
        %v2498 = vpop.permute.xlu0 %2497
        %2500 = vset.pattern.permute.xlu0 2
        %2501 = vperm.xlu0 %2500, %v896
        %v2502 = vpop.permute.xlu0 %2501
        %2504 = vset.pattern.permute.xlu0 2
        %2505 = vperm.xlu0 %2504, %v897
        %v2506 = vpop.permute.xlu0 %2505
        %2508 = vset.pattern.permute.xlu0 2
        %2509 = vperm.xlu0 %2508, %v898
        %v2510 = vpop.permute.xlu0 %2509
        %2512 = vset.pattern.permute.xlu0 2
        %2513 = vperm.xlu0 %2512, %v899
        %v2514 = vpop.permute.xlu0 %2513
        %2516 = vset.pattern.permute.xlu0 2
        %2517 = vperm.xlu0 %2516, %v900
        %v2518 = vpop.permute.xlu0 %2517
        %2520 = vset.pattern.permute.xlu0 2
        %2521 = vperm.xlu0 %2520, %v901
        %v2522 = vpop.permute.xlu0 %2521
        %2524 = vset.pattern.permute.xlu0 2
        %2525 = vperm.xlu0 %2524, %v902
        %v2526 = vpop.permute.xlu0 %2525
        %2528 = vset.pattern.permute.xlu0 2
        %2529 = vperm.xlu0 %2528, %v903
        %v2530 = vpop.permute.xlu0 %2529
        %2532 = vset.pattern.permute.xlu0 2
        %2533 = vperm.xlu0 %2532, %v904
        %v2534 = vpop.permute.xlu0 %2533
        %2536 = vset.pattern.permute.xlu0 2
        %2537 = vperm.xlu0 %2536, %v905
        %v2538 = vpop.permute.xlu0 %2537
        %2540 = vset.pattern.permute.xlu0 2
        %2541 = vperm.xlu0 %2540, %v906
        %v2542 = vpop.permute.xlu0 %2541
        %2544 = vset.pattern.permute.xlu0 2
        %2545 = vperm.xlu0 %2544, %v907
        %v2546 = vpop.permute.xlu0 %2545
        %2548 = vset.pattern.permute.xlu0 2
        %2549 = vperm.xlu0 %2548, %v908
        %v2550 = vpop.permute.xlu0 %2549
        %2552 = vset.pattern.permute.xlu0 2
        %2553 = vperm.xlu0 %2552, %v909
        %v2554 = vpop.permute.xlu0 %2553
        %v2556 = vadd.f32 %v814, %v2494
        %v2557 = vadd.f32 %v815, %v2494
        %v2558 = vadd.f32 %v816, %v2498
        %v2559 = vadd.f32 %v817, %v2498
        %v2560 = vadd.f32 %v818, %v2502
        %v2561 = vadd.f32 %v819, %v2502
        %v2562 = vadd.f32 %v820, %v2506
        %v2563 = vadd.f32 %v821, %v2506
        %v2564 = vadd.f32 %v822, %v2510
        %v2565 = vadd.f32 %v823, %v2510
        %v2566 = vadd.f32 %v824, %v2514
        %v2567 = vadd.f32 %v825, %v2514
        %v2568 = vadd.f32 %v826, %v2518
        %v2569 = vadd.f32 %v827, %v2518
        %v2570 = vadd.f32 %v828, %v2522
        %v2571 = vadd.f32 %v829, %v2522
        %v2572 = vadd.f32 %v830, %v2526
        %v2573 = vadd.f32 %v831, %v2526
        %v2574 = vadd.f32 %v832, %v2530
        %v2575 = vadd.f32 %v833, %v2530
        %v2576 = vadd.f32 %v834, %v2534
        %v2577 = vadd.f32 %v835, %v2534
        %v2578 = vadd.f32 %v836, %v2538
        %v2579 = vadd.f32 %v837, %v2538
        %v2580 = vadd.f32 %v838, %v2542
        %v2581 = vadd.f32 %v839, %v2542
        %v2582 = vadd.f32 %v840, %v2546
        %v2583 = vadd.f32 %v841, %v2546
        %v2584 = vadd.f32 %v842, %v2550
        %v2585 = vadd.f32 %v843, %v2550
        %v2586 = vadd.f32 %v844, %v2554
        %v2587 = vadd.f32 %v845, %v2554
        %v2588 = vmin.f32 %v2556, %v2560
        %v2589 = vmin.f32 %v2558, %v2562
        %v2590 = vmin.f32 %v2588, %v2564
        %v2591 = vmin.f32 %v2589, %v2566
        %v2592 = vmin.f32 %v2590, %v2568
        %v2593 = vmin.f32 %v2591, %v2570
        %v2594 = vmin.f32 %v2592, %v2572
        %v2595 = vmin.f32 %v2593, %v2574
        %v2596 = vmin.f32 %v2594, %v2576
        %v2597 = vmin.f32 %v2595, %v2578
        %v2598 = vmin.f32 %v2596, %v2580
        %v2599 = vmin.f32 %v2597, %v2582
        %v2600 = vmin.f32 %v2598, %v2584
        %v2601 = vmin.f32 %v2599, %v2586
        %v2602 = vmin.f32 %v2600, %v2601
        %v2603 = vrot.slane %v2602, 4
        %v2604 = vmin.f32 %v2602, %v2603
        %v2605 = vrot.slane %v2604, 2
        %v2606 = vmin.f32 %v2604, %v2605
        %v2607 = vrot.slane %v2606, 1
        %v2608 = vmin.f32 %v2606, %v2607
        %v2609 = vmin.f32 %v2557, %v2561
        %v2610 = vmin.f32 %v2559, %v2563
        %v2611 = vmin.f32 %v2609, %v2565
        %v2612 = vmin.f32 %v2610, %v2567
        %v2613 = vmin.f32 %v2611, %v2569
        %v2614 = vmin.f32 %v2612, %v2571
        %v2615 = vmin.f32 %v2613, %v2573
        %v2616 = vmin.f32 %v2614, %v2575
        %v2617 = vmin.f32 %v2615, %v2577
        %v2618 = vmin.f32 %v2616, %v2579
        %v2619 = vmin.f32 %v2617, %v2581
        %v2620 = vmin.f32 %v2618, %v2583
        %v2621 = vmin.f32 %v2619, %v2585
        %v2622 = vmin.f32 %v2620, %v2587
        %v2623 = vmin.f32 %v2621, %v2622
        %v2624 = vrot.slane %v2623, 4
        %v2625 = vmin.f32 %v2623, %v2624
        %v2626 = vrot.slane %v2625, 2
        %v2627 = vmin.f32 %v2625, %v2626
        %v2628 = vrot.slane %v2627, 1
        %v2629 = vmin.f32 %v2627, %v2628
        %2630 = vset.pattern.permute.xlu0 3
        %2631 = vperm.xlu0 %2630, %v846
        %v2632 = vpop.permute.xlu0 %2631
        %2634 = vset.pattern.permute.xlu0 3
        %2635 = vperm.xlu0 %2634, %v847
        %v2636 = vpop.permute.xlu0 %2635
        %2638 = vset.pattern.permute.xlu0 3
        %2639 = vperm.xlu0 %2638, %v848
        %v2640 = vpop.permute.xlu0 %2639
        %2642 = vset.pattern.permute.xlu0 3
        %2643 = vperm.xlu0 %2642, %v849
        %v2644 = vpop.permute.xlu0 %2643
        %2646 = vset.pattern.permute.xlu0 3
        %2647 = vperm.xlu0 %2646, %v850
        %v2648 = vpop.permute.xlu0 %2647
        %2650 = vset.pattern.permute.xlu0 3
        %2651 = vperm.xlu0 %2650, %v851
        %v2652 = vpop.permute.xlu0 %2651
        %2654 = vset.pattern.permute.xlu0 3
        %2655 = vperm.xlu0 %2654, %v852
        %v2656 = vpop.permute.xlu0 %2655
        %2658 = vset.pattern.permute.xlu0 3
        %2659 = vperm.xlu0 %2658, %v853
        %v2660 = vpop.permute.xlu0 %2659
        %2662 = vset.pattern.permute.xlu0 3
        %2663 = vperm.xlu0 %2662, %v854
        %v2664 = vpop.permute.xlu0 %2663
        %2666 = vset.pattern.permute.xlu0 3
        %2667 = vperm.xlu0 %2666, %v855
        %v2668 = vpop.permute.xlu0 %2667
        %2670 = vset.pattern.permute.xlu0 3
        %2671 = vperm.xlu0 %2670, %v856
        %v2672 = vpop.permute.xlu0 %2671
        %2674 = vset.pattern.permute.xlu0 3
        %2675 = vperm.xlu0 %2674, %v857
        %v2676 = vpop.permute.xlu0 %2675
        %2678 = vset.pattern.permute.xlu0 3
        %2679 = vperm.xlu0 %2678, %v858
        %v2680 = vpop.permute.xlu0 %2679
        %2682 = vset.pattern.permute.xlu0 3
        %2683 = vperm.xlu0 %2682, %v859
        %v2684 = vpop.permute.xlu0 %2683
        %2686 = vset.pattern.permute.xlu0 3
        %2687 = vperm.xlu0 %2686, %v860
        %v2688 = vpop.permute.xlu0 %2687
        %2690 = vset.pattern.permute.xlu0 3
        %2691 = vperm.xlu0 %2690, %v861
        %v2692 = vpop.permute.xlu0 %2691
        %v2694 = vadd.f32 %v814, %v2632
        %v2695 = vadd.f32 %v815, %v2632
        %v2696 = vadd.f32 %v816, %v2636
        %v2697 = vadd.f32 %v817, %v2636
        %v2698 = vadd.f32 %v818, %v2640
        %v2699 = vadd.f32 %v819, %v2640
        %v2700 = vadd.f32 %v820, %v2644
        %v2701 = vadd.f32 %v821, %v2644
        %v2702 = vadd.f32 %v822, %v2648
        %v2703 = vadd.f32 %v823, %v2648
        %v2704 = vadd.f32 %v824, %v2652
        %v2705 = vadd.f32 %v825, %v2652
        %v2706 = vadd.f32 %v826, %v2656
        %v2707 = vadd.f32 %v827, %v2656
        %v2708 = vadd.f32 %v828, %v2660
        %v2709 = vadd.f32 %v829, %v2660
        %v2710 = vadd.f32 %v830, %v2664
        %v2711 = vadd.f32 %v831, %v2664
        %v2712 = vadd.f32 %v832, %v2668
        %v2713 = vadd.f32 %v833, %v2668
        %v2714 = vadd.f32 %v834, %v2672
        %v2715 = vadd.f32 %v835, %v2672
        %v2716 = vadd.f32 %v836, %v2676
        %v2717 = vadd.f32 %v837, %v2676
        %v2718 = vadd.f32 %v838, %v2680
        %v2719 = vadd.f32 %v839, %v2680
        %v2720 = vadd.f32 %v840, %v2684
        %v2721 = vadd.f32 %v841, %v2684
        %v2722 = vadd.f32 %v842, %v2688
        %v2723 = vadd.f32 %v843, %v2688
        %v2724 = vadd.f32 %v844, %v2692
        %v2725 = vadd.f32 %v845, %v2692
        %v2726 = vmin.f32 %v2694, %v2698
        %v2727 = vmin.f32 %v2696, %v2700
        %v2728 = vmin.f32 %v2726, %v2702
        %v2729 = vmin.f32 %v2727, %v2704
        %v2730 = vmin.f32 %v2728, %v2706
        %v2731 = vmin.f32 %v2729, %v2708
        %v2732 = vmin.f32 %v2730, %v2710
        %v2733 = vmin.f32 %v2731, %v2712
        %v2734 = vmin.f32 %v2732, %v2714
        %v2735 = vmin.f32 %v2733, %v2716
        %v2736 = vmin.f32 %v2734, %v2718
        %v2737 = vmin.f32 %v2735, %v2720
        %v2738 = vmin.f32 %v2736, %v2722
        %v2739 = vmin.f32 %v2737, %v2724
        %v2740 = vmin.f32 %v2738, %v2739
        %v2741 = vrot.slane %v2740, 4
        %v2742 = vmin.f32 %v2740, %v2741
        %v2743 = vrot.slane %v2742, 2
        %v2744 = vmin.f32 %v2742, %v2743
        %v2745 = vrot.slane %v2744, 1
        %v2746 = vmin.f32 %v2744, %v2745
        %v2747 = vmin.f32 %v2695, %v2699
        %v2748 = vmin.f32 %v2697, %v2701
        %v2749 = vmin.f32 %v2747, %v2703
        %v2750 = vmin.f32 %v2748, %v2705
        %v2751 = vmin.f32 %v2749, %v2707
        %v2752 = vmin.f32 %v2750, %v2709
        %v2753 = vmin.f32 %v2751, %v2711
        %v2754 = vmin.f32 %v2752, %v2713
        %v2755 = vmin.f32 %v2753, %v2715
        %v2756 = vmin.f32 %v2754, %v2717
        %v2757 = vmin.f32 %v2755, %v2719
        %v2758 = vmin.f32 %v2756, %v2721
        %v2759 = vmin.f32 %v2757, %v2723
        %v2760 = vmin.f32 %v2758, %v2725
        %v2761 = vmin.f32 %v2759, %v2760
        %v2762 = vrot.slane %v2761, 4
        %v2763 = vmin.f32 %v2761, %v2762
        %v2764 = vrot.slane %v2763, 2
        %v2765 = vmin.f32 %v2763, %v2764
        %v2766 = vrot.slane %v2765, 1
        %v2767 = vmin.f32 %v2765, %v2766
        %2768 = vset.pattern.permute.xlu0 3
        %2769 = vperm.xlu0 %2768, %v862
        %v2770 = vpop.permute.xlu0 %2769
        %2772 = vset.pattern.permute.xlu0 3
        %2773 = vperm.xlu0 %2772, %v863
        %v2774 = vpop.permute.xlu0 %2773
        %2776 = vset.pattern.permute.xlu0 3
        %2777 = vperm.xlu0 %2776, %v864
        %v2778 = vpop.permute.xlu0 %2777
        %2780 = vset.pattern.permute.xlu0 3
        %2781 = vperm.xlu0 %2780, %v865
        %v2782 = vpop.permute.xlu0 %2781
        %2784 = vset.pattern.permute.xlu0 3
        %2785 = vperm.xlu0 %2784, %v866
        %v2786 = vpop.permute.xlu0 %2785
        %2788 = vset.pattern.permute.xlu0 3
        %2789 = vperm.xlu0 %2788, %v867
        %v2790 = vpop.permute.xlu0 %2789
        %2792 = vset.pattern.permute.xlu0 3
        %2793 = vperm.xlu0 %2792, %v868
        %v2794 = vpop.permute.xlu0 %2793
        %2796 = vset.pattern.permute.xlu0 3
        %2797 = vperm.xlu0 %2796, %v869
        %v2798 = vpop.permute.xlu0 %2797
        %2800 = vset.pattern.permute.xlu0 3
        %2801 = vperm.xlu0 %2800, %v870
        %v2802 = vpop.permute.xlu0 %2801
        %2804 = vset.pattern.permute.xlu0 3
        %2805 = vperm.xlu0 %2804, %v871
        %v2806 = vpop.permute.xlu0 %2805
        %2808 = vset.pattern.permute.xlu0 3
        %2809 = vperm.xlu0 %2808, %v872
        %v2810 = vpop.permute.xlu0 %2809
        %2812 = vset.pattern.permute.xlu0 3
        %2813 = vperm.xlu0 %2812, %v873
        %v2814 = vpop.permute.xlu0 %2813
        %2816 = vset.pattern.permute.xlu0 3
        %2817 = vperm.xlu0 %2816, %v874
        %v2818 = vpop.permute.xlu0 %2817
        %2820 = vset.pattern.permute.xlu0 3
        %2821 = vperm.xlu0 %2820, %v875
        %v2822 = vpop.permute.xlu0 %2821
        %2824 = vset.pattern.permute.xlu0 3
        %2825 = vperm.xlu0 %2824, %v876
        %v2826 = vpop.permute.xlu0 %2825
        %2828 = vset.pattern.permute.xlu0 3
        %2829 = vperm.xlu0 %2828, %v877
        %v2830 = vpop.permute.xlu0 %2829
        %v2832 = vadd.f32 %v814, %v2770
        %v2833 = vadd.f32 %v815, %v2770
        %v2834 = vadd.f32 %v816, %v2774
        %v2835 = vadd.f32 %v817, %v2774
        %v2836 = vadd.f32 %v818, %v2778
        %v2837 = vadd.f32 %v819, %v2778
        %v2838 = vadd.f32 %v820, %v2782
        %v2839 = vadd.f32 %v821, %v2782
        %v2840 = vadd.f32 %v822, %v2786
        %v2841 = vadd.f32 %v823, %v2786
        %v2842 = vadd.f32 %v824, %v2790
        %v2843 = vadd.f32 %v825, %v2790
        %v2844 = vadd.f32 %v826, %v2794
        %v2845 = vadd.f32 %v827, %v2794
        %v2846 = vadd.f32 %v828, %v2798
        %v2847 = vadd.f32 %v829, %v2798
        %v2848 = vadd.f32 %v830, %v2802
        %v2849 = vadd.f32 %v831, %v2802
        %v2850 = vadd.f32 %v832, %v2806
        %v2851 = vadd.f32 %v833, %v2806
        %v2852 = vadd.f32 %v834, %v2810
        %v2853 = vadd.f32 %v835, %v2810
        %v2854 = vadd.f32 %v836, %v2814
        %v2855 = vadd.f32 %v837, %v2814
        %v2856 = vadd.f32 %v838, %v2818
        %v2857 = vadd.f32 %v839, %v2818
        %v2858 = vadd.f32 %v840, %v2822
        %v2859 = vadd.f32 %v841, %v2822
        %v2860 = vadd.f32 %v842, %v2826
        %v2861 = vadd.f32 %v843, %v2826
        %v2862 = vadd.f32 %v844, %v2830
        %v2863 = vadd.f32 %v845, %v2830
        %v2864 = vmin.f32 %v2832, %v2836
        %v2865 = vmin.f32 %v2834, %v2838
        %v2866 = vmin.f32 %v2864, %v2840
        %v2867 = vmin.f32 %v2865, %v2842
        %v2868 = vmin.f32 %v2866, %v2844
        %v2869 = vmin.f32 %v2867, %v2846
        %v2870 = vmin.f32 %v2868, %v2848
        %v2871 = vmin.f32 %v2869, %v2850
        %v2872 = vmin.f32 %v2870, %v2852
        %v2873 = vmin.f32 %v2871, %v2854
        %v2874 = vmin.f32 %v2872, %v2856
        %v2875 = vmin.f32 %v2873, %v2858
        %v2876 = vmin.f32 %v2874, %v2860
        %v2877 = vmin.f32 %v2875, %v2862
        %v2878 = vmin.f32 %v2876, %v2877
        %v2879 = vrot.slane %v2878, 4
        %v2880 = vmin.f32 %v2878, %v2879
        %v2881 = vrot.slane %v2880, 2
        %v2882 = vmin.f32 %v2880, %v2881
        %v2883 = vrot.slane %v2882, 1
        %v2884 = vmin.f32 %v2882, %v2883
        %v2885 = vmin.f32 %v2833, %v2837
        %v2886 = vmin.f32 %v2835, %v2839
        %v2887 = vmin.f32 %v2885, %v2841
        %v2888 = vmin.f32 %v2886, %v2843
        %v2889 = vmin.f32 %v2887, %v2845
        %v2890 = vmin.f32 %v2888, %v2847
        %v2891 = vmin.f32 %v2889, %v2849
        %v2892 = vmin.f32 %v2890, %v2851
        %v2893 = vmin.f32 %v2891, %v2853
        %v2894 = vmin.f32 %v2892, %v2855
        %v2895 = vmin.f32 %v2893, %v2857
        %v2896 = vmin.f32 %v2894, %v2859
        %v2897 = vmin.f32 %v2895, %v2861
        %v2898 = vmin.f32 %v2896, %v2863
        %v2899 = vmin.f32 %v2897, %v2898
        %v2900 = vrot.slane %v2899, 4
        %v2901 = vmin.f32 %v2899, %v2900
        %v2902 = vrot.slane %v2901, 2
        %v2903 = vmin.f32 %v2901, %v2902
        %v2904 = vrot.slane %v2903, 1
        %v2905 = vmin.f32 %v2903, %v2904
        %2906 = vset.pattern.permute.xlu0 3
        %2907 = vperm.xlu0 %2906, %v878
        %v2908 = vpop.permute.xlu0 %2907
        %2910 = vset.pattern.permute.xlu0 3
        %2911 = vperm.xlu0 %2910, %v879
        %v2912 = vpop.permute.xlu0 %2911
        %2914 = vset.pattern.permute.xlu0 3
        %2915 = vperm.xlu0 %2914, %v880
        %v2916 = vpop.permute.xlu0 %2915
        %2918 = vset.pattern.permute.xlu0 3
        %2919 = vperm.xlu0 %2918, %v881
        %v2920 = vpop.permute.xlu0 %2919
        %2922 = vset.pattern.permute.xlu0 3
        %2923 = vperm.xlu0 %2922, %v882
        %v2924 = vpop.permute.xlu0 %2923
        %2926 = vset.pattern.permute.xlu0 3
        %2927 = vperm.xlu0 %2926, %v883
        %v2928 = vpop.permute.xlu0 %2927
        %2930 = vset.pattern.permute.xlu0 3
        %2931 = vperm.xlu0 %2930, %v884
        %v2932 = vpop.permute.xlu0 %2931
        %2934 = vset.pattern.permute.xlu0 3
        %2935 = vperm.xlu0 %2934, %v885
        %v2936 = vpop.permute.xlu0 %2935
        %2938 = vset.pattern.permute.xlu0 3
        %2939 = vperm.xlu0 %2938, %v886
        %v2940 = vpop.permute.xlu0 %2939
        %2942 = vset.pattern.permute.xlu0 3
        %2943 = vperm.xlu0 %2942, %v887
        %v2944 = vpop.permute.xlu0 %2943
        %2946 = vset.pattern.permute.xlu0 3
        %2947 = vperm.xlu0 %2946, %v888
        %v2948 = vpop.permute.xlu0 %2947
        %2950 = vset.pattern.permute.xlu0 3
        %2951 = vperm.xlu0 %2950, %v889
        %v2952 = vpop.permute.xlu0 %2951
        %2954 = vset.pattern.permute.xlu0 3
        %2955 = vperm.xlu0 %2954, %v890
        %v2956 = vpop.permute.xlu0 %2955
        %2958 = vset.pattern.permute.xlu0 3
        %2959 = vperm.xlu0 %2958, %v891
        %v2960 = vpop.permute.xlu0 %2959
        %2962 = vset.pattern.permute.xlu0 3
        %2963 = vperm.xlu0 %2962, %v892
        %v2964 = vpop.permute.xlu0 %2963
        %2966 = vset.pattern.permute.xlu0 3
        %2967 = vperm.xlu0 %2966, %v893
        %v2968 = vpop.permute.xlu0 %2967
        %v2970 = vadd.f32 %v814, %v2908
        %v2971 = vadd.f32 %v815, %v2908
        %v2972 = vadd.f32 %v816, %v2912
        %v2973 = vadd.f32 %v817, %v2912
        %v2974 = vadd.f32 %v818, %v2916
        %v2975 = vadd.f32 %v819, %v2916
        %v2976 = vadd.f32 %v820, %v2920
        %v2977 = vadd.f32 %v821, %v2920
        %v2978 = vadd.f32 %v822, %v2924
        %v2979 = vadd.f32 %v823, %v2924
        %v2980 = vadd.f32 %v824, %v2928
        %v2981 = vadd.f32 %v825, %v2928
        %v2982 = vadd.f32 %v826, %v2932
        %v2983 = vadd.f32 %v827, %v2932
        %v2984 = vadd.f32 %v828, %v2936
        %v2985 = vadd.f32 %v829, %v2936
        %v2986 = vadd.f32 %v830, %v2940
        %v2987 = vadd.f32 %v831, %v2940
        %v2988 = vadd.f32 %v832, %v2944
        %v2989 = vadd.f32 %v833, %v2944
        %v2990 = vadd.f32 %v834, %v2948
        %v2991 = vadd.f32 %v835, %v2948
        %v2992 = vadd.f32 %v836, %v2952
        %v2993 = vadd.f32 %v837, %v2952
        %v2994 = vadd.f32 %v838, %v2956
        %v2995 = vadd.f32 %v839, %v2956
        %v2996 = vadd.f32 %v840, %v2960
        %v2997 = vadd.f32 %v841, %v2960
        %v2998 = vadd.f32 %v842, %v2964
        %v2999 = vadd.f32 %v843, %v2964
        %v3000 = vadd.f32 %v844, %v2968
        %v3001 = vadd.f32 %v845, %v2968
        %v3002 = vmin.f32 %v2970, %v2974
        %v3003 = vmin.f32 %v2972, %v2976
        %v3004 = vmin.f32 %v3002, %v2978
        %v3005 = vmin.f32 %v3003, %v2980
        %v3006 = vmin.f32 %v3004, %v2982
        %v3007 = vmin.f32 %v3005, %v2984
        %v3008 = vmin.f32 %v3006, %v2986
        %v3009 = vmin.f32 %v3007, %v2988
        %v3010 = vmin.f32 %v3008, %v2990
        %v3011 = vmin.f32 %v3009, %v2992
        %v3012 = vmin.f32 %v3010, %v2994
        %v3013 = vmin.f32 %v3011, %v2996
        %v3014 = vmin.f32 %v3012, %v2998
        %v3015 = vmin.f32 %v3013, %v3000
        %v3016 = vmin.f32 %v3014, %v3015
        %v3017 = vrot.slane %v3016, 4
        %v3018 = vmin.f32 %v3016, %v3017
        %v3019 = vrot.slane %v3018, 2
        %v3020 = vmin.f32 %v3018, %v3019
        %v3021 = vrot.slane %v3020, 1
        %v3022 = vmin.f32 %v3020, %v3021
        %v3023 = vmin.f32 %v2971, %v2975
        %v3024 = vmin.f32 %v2973, %v2977
        %v3025 = vmin.f32 %v3023, %v2979
        %v3026 = vmin.f32 %v3024, %v2981
        %v3027 = vmin.f32 %v3025, %v2983
        %v3028 = vmin.f32 %v3026, %v2985
        %v3029 = vmin.f32 %v3027, %v2987
        %v3030 = vmin.f32 %v3028, %v2989
        %v3031 = vmin.f32 %v3029, %v2991
        %v3032 = vmin.f32 %v3030, %v2993
        %v3033 = vmin.f32 %v3031, %v2995
        %v3034 = vmin.f32 %v3032, %v2997
        %v3035 = vmin.f32 %v3033, %v2999
        %v3036 = vmin.f32 %v3034, %v3001
        %v3037 = vmin.f32 %v3035, %v3036
        %v3038 = vrot.slane %v3037, 4
        %v3039 = vmin.f32 %v3037, %v3038
        %v3040 = vrot.slane %v3039, 2
        %v3041 = vmin.f32 %v3039, %v3040
        %v3042 = vrot.slane %v3041, 1
        %v3043 = vmin.f32 %v3041, %v3042
        %3044 = vset.pattern.permute.xlu0 3
        %3045 = vperm.xlu0 %3044, %v894
        %v3046 = vpop.permute.xlu0 %3045
        %3048 = vset.pattern.permute.xlu0 3
        %3049 = vperm.xlu0 %3048, %v895
        %v3050 = vpop.permute.xlu0 %3049
        %3052 = vset.pattern.permute.xlu0 3
        %3053 = vperm.xlu0 %3052, %v896
        %v3054 = vpop.permute.xlu0 %3053
        %3056 = vset.pattern.permute.xlu0 3
        %3057 = vperm.xlu0 %3056, %v897
        %v3058 = vpop.permute.xlu0 %3057
        %3060 = vset.pattern.permute.xlu0 3
        %3061 = vperm.xlu0 %3060, %v898
        %v3062 = vpop.permute.xlu0 %3061
        %3064 = vset.pattern.permute.xlu0 3
        %3065 = vperm.xlu0 %3064, %v899
        %v3066 = vpop.permute.xlu0 %3065
        %3068 = vset.pattern.permute.xlu0 3
        %3069 = vperm.xlu0 %3068, %v900
        %v3070 = vpop.permute.xlu0 %3069
        %3072 = vset.pattern.permute.xlu0 3
        %3073 = vperm.xlu0 %3072, %v901
        %v3074 = vpop.permute.xlu0 %3073
        %3076 = vset.pattern.permute.xlu0 3
        %3077 = vperm.xlu0 %3076, %v902
        %v3078 = vpop.permute.xlu0 %3077
        %3080 = vset.pattern.permute.xlu0 3
        %3081 = vperm.xlu0 %3080, %v903
        %v3082 = vpop.permute.xlu0 %3081
        %3084 = vset.pattern.permute.xlu0 3
        %3085 = vperm.xlu0 %3084, %v904
        %v3086 = vpop.permute.xlu0 %3085
        %3088 = vset.pattern.permute.xlu0 3
        %3089 = vperm.xlu0 %3088, %v905
        %v3090 = vpop.permute.xlu0 %3089
        %3092 = vset.pattern.permute.xlu0 3
        %3093 = vperm.xlu0 %3092, %v906
        %v3094 = vpop.permute.xlu0 %3093
        %3096 = vset.pattern.permute.xlu0 3
        %3097 = vperm.xlu0 %3096, %v907
        %v3098 = vpop.permute.xlu0 %3097
        %3100 = vset.pattern.permute.xlu0 3
        %3101 = vperm.xlu0 %3100, %v908
        %v3102 = vpop.permute.xlu0 %3101
        %3104 = vset.pattern.permute.xlu0 3
        %3105 = vperm.xlu0 %3104, %v909
        %v3106 = vpop.permute.xlu0 %3105
        %v3108 = vadd.f32 %v814, %v3046
        %v3109 = vadd.f32 %v815, %v3046
        %v3110 = vadd.f32 %v816, %v3050
        %v3111 = vadd.f32 %v817, %v3050
        %v3112 = vadd.f32 %v818, %v3054
        %v3113 = vadd.f32 %v819, %v3054
        %v3114 = vadd.f32 %v820, %v3058
        %v3115 = vadd.f32 %v821, %v3058
        %v3116 = vadd.f32 %v822, %v3062
        %v3117 = vadd.f32 %v823, %v3062
        %v3118 = vadd.f32 %v824, %v3066
        %v3119 = vadd.f32 %v825, %v3066
        %v3120 = vadd.f32 %v826, %v3070
        %v3121 = vadd.f32 %v827, %v3070
        %v3122 = vadd.f32 %v828, %v3074
        %v3123 = vadd.f32 %v829, %v3074
        %v3124 = vadd.f32 %v830, %v3078
        %v3125 = vadd.f32 %v831, %v3078
        %v3126 = vadd.f32 %v832, %v3082
        %v3127 = vadd.f32 %v833, %v3082
        %v3128 = vadd.f32 %v834, %v3086
        %v3129 = vadd.f32 %v835, %v3086
        %v3130 = vadd.f32 %v836, %v3090
        %v3131 = vadd.f32 %v837, %v3090
        %v3132 = vadd.f32 %v838, %v3094
        %v3133 = vadd.f32 %v839, %v3094
        %v3134 = vadd.f32 %v840, %v3098
        %v3135 = vadd.f32 %v841, %v3098
        %v3136 = vadd.f32 %v842, %v3102
        %v3137 = vadd.f32 %v843, %v3102
        %v3138 = vadd.f32 %v844, %v3106
        %v3139 = vadd.f32 %v845, %v3106
        %v3140 = vmin.f32 %v3108, %v3112
        %v3141 = vmin.f32 %v3110, %v3114
        %v3142 = vmin.f32 %v3140, %v3116
        %v3143 = vmin.f32 %v3141, %v3118
        %v3144 = vmin.f32 %v3142, %v3120
        %v3145 = vmin.f32 %v3143, %v3122
        %v3146 = vmin.f32 %v3144, %v3124
        %v3147 = vmin.f32 %v3145, %v3126
        %v3148 = vmin.f32 %v3146, %v3128
        %v3149 = vmin.f32 %v3147, %v3130
        %v3150 = vmin.f32 %v3148, %v3132
        %v3151 = vmin.f32 %v3149, %v3134
        %v3152 = vmin.f32 %v3150, %v3136
        %v3153 = vmin.f32 %v3151, %v3138
        %v3154 = vmin.f32 %v3152, %v3153
        %v3155 = vrot.slane %v3154, 4
        %v3156 = vmin.f32 %v3154, %v3155
        %v3157 = vrot.slane %v3156, 2
        %v3158 = vmin.f32 %v3156, %v3157
        %v3159 = vrot.slane %v3158, 1
        %v3160 = vmin.f32 %v3158, %v3159
        %v3161 = vmin.f32 %v3109, %v3113
        %v3162 = vmin.f32 %v3111, %v3115
        %v3163 = vmin.f32 %v3161, %v3117
        %v3164 = vmin.f32 %v3162, %v3119
        %v3165 = vmin.f32 %v3163, %v3121
        %v3166 = vmin.f32 %v3164, %v3123
        %v3167 = vmin.f32 %v3165, %v3125
        %v3168 = vmin.f32 %v3166, %v3127
        %v3169 = vmin.f32 %v3167, %v3129
        %v3170 = vmin.f32 %v3168, %v3131
        %v3171 = vmin.f32 %v3169, %v3133
        %v3172 = vmin.f32 %v3170, %v3135
        %v3173 = vmin.f32 %v3171, %v3137
        %v3174 = vmin.f32 %v3172, %v3139
        %v3175 = vmin.f32 %v3173, %v3174
        %v3176 = vrot.slane %v3175, 4
        %v3177 = vmin.f32 %v3175, %v3176
        %v3178 = vrot.slane %v3177, 2
        %v3179 = vmin.f32 %v3177, %v3178
        %v3180 = vrot.slane %v3179, 1
        %v3181 = vmin.f32 %v3179, %v3180
        %3182 = vset.pattern.permute.xlu0 4
        %3183 = vperm.xlu0 %3182, %v846
        %v3184 = vpop.permute.xlu0 %3183
        %3186 = vset.pattern.permute.xlu0 4
        %3187 = vperm.xlu0 %3186, %v847
        %v3188 = vpop.permute.xlu0 %3187
        %3190 = vset.pattern.permute.xlu0 4
        %3191 = vperm.xlu0 %3190, %v848
        %v3192 = vpop.permute.xlu0 %3191
        %3194 = vset.pattern.permute.xlu0 4
        %3195 = vperm.xlu0 %3194, %v849
        %v3196 = vpop.permute.xlu0 %3195
        %3198 = vset.pattern.permute.xlu0 4
        %3199 = vperm.xlu0 %3198, %v850
        %v3200 = vpop.permute.xlu0 %3199
        %3202 = vset.pattern.permute.xlu0 4
        %3203 = vperm.xlu0 %3202, %v851
        %v3204 = vpop.permute.xlu0 %3203
        %3206 = vset.pattern.permute.xlu0 4
        %3207 = vperm.xlu0 %3206, %v852
        %v3208 = vpop.permute.xlu0 %3207
        %3210 = vset.pattern.permute.xlu0 4
        %3211 = vperm.xlu0 %3210, %v853
        %v3212 = vpop.permute.xlu0 %3211
        %3214 = vset.pattern.permute.xlu0 4
        %3215 = vperm.xlu0 %3214, %v854
        %v3216 = vpop.permute.xlu0 %3215
        %3218 = vset.pattern.permute.xlu0 4
        %3219 = vperm.xlu0 %3218, %v855
        %v3220 = vpop.permute.xlu0 %3219
        %3222 = vset.pattern.permute.xlu0 4
        %3223 = vperm.xlu0 %3222, %v856
        %v3224 = vpop.permute.xlu0 %3223
        %3226 = vset.pattern.permute.xlu0 4
        %3227 = vperm.xlu0 %3226, %v857
        %v3228 = vpop.permute.xlu0 %3227
        %3230 = vset.pattern.permute.xlu0 4
        %3231 = vperm.xlu0 %3230, %v858
        %v3232 = vpop.permute.xlu0 %3231
        %3234 = vset.pattern.permute.xlu0 4
        %3235 = vperm.xlu0 %3234, %v859
        %v3236 = vpop.permute.xlu0 %3235
        %3238 = vset.pattern.permute.xlu0 4
        %3239 = vperm.xlu0 %3238, %v860
        %v3240 = vpop.permute.xlu0 %3239
        %3242 = vset.pattern.permute.xlu0 4
        %3243 = vperm.xlu0 %3242, %v861
        %v3244 = vpop.permute.xlu0 %3243
        %v3246 = vadd.f32 %v814, %v3184
        %v3247 = vadd.f32 %v815, %v3184
        %v3248 = vadd.f32 %v816, %v3188
        %v3249 = vadd.f32 %v817, %v3188
        %v3250 = vadd.f32 %v818, %v3192
        %v3251 = vadd.f32 %v819, %v3192
        %v3252 = vadd.f32 %v820, %v3196
        %v3253 = vadd.f32 %v821, %v3196
        %v3254 = vadd.f32 %v822, %v3200
        %v3255 = vadd.f32 %v823, %v3200
        %v3256 = vadd.f32 %v824, %v3204
        %v3257 = vadd.f32 %v825, %v3204
        %v3258 = vadd.f32 %v826, %v3208
        %v3259 = vadd.f32 %v827, %v3208
        %v3260 = vadd.f32 %v828, %v3212
        %v3261 = vadd.f32 %v829, %v3212
        %v3262 = vadd.f32 %v830, %v3216
        %v3263 = vadd.f32 %v831, %v3216
        %v3264 = vadd.f32 %v832, %v3220
        %v3265 = vadd.f32 %v833, %v3220
        %v3266 = vadd.f32 %v834, %v3224
        %v3267 = vadd.f32 %v835, %v3224
        %v3268 = vadd.f32 %v836, %v3228
        %v3269 = vadd.f32 %v837, %v3228
        %v3270 = vadd.f32 %v838, %v3232
        %v3271 = vadd.f32 %v839, %v3232
        %v3272 = vadd.f32 %v840, %v3236
        %v3273 = vadd.f32 %v841, %v3236
        %v3274 = vadd.f32 %v842, %v3240
        %v3275 = vadd.f32 %v843, %v3240
        %v3276 = vadd.f32 %v844, %v3244
        %v3277 = vadd.f32 %v845, %v3244
        %v3278 = vmin.f32 %v3246, %v3250
        %v3279 = vmin.f32 %v3248, %v3252
        %v3280 = vmin.f32 %v3278, %v3254
        %v3281 = vmin.f32 %v3279, %v3256
        %v3282 = vmin.f32 %v3280, %v3258
        %v3283 = vmin.f32 %v3281, %v3260
        %v3284 = vmin.f32 %v3282, %v3262
        %v3285 = vmin.f32 %v3283, %v3264
        %v3286 = vmin.f32 %v3284, %v3266
        %v3287 = vmin.f32 %v3285, %v3268
        %v3288 = vmin.f32 %v3286, %v3270
        %v3289 = vmin.f32 %v3287, %v3272
        %v3290 = vmin.f32 %v3288, %v3274
        %v3291 = vmin.f32 %v3289, %v3276
        %v3292 = vmin.f32 %v3290, %v3291
        %v3293 = vrot.slane %v3292, 4
        %v3294 = vmin.f32 %v3292, %v3293
        %v3295 = vrot.slane %v3294, 2
        %v3296 = vmin.f32 %v3294, %v3295
        %v3297 = vrot.slane %v3296, 1
        %v3298 = vmin.f32 %v3296, %v3297
        %v3299 = vmin.f32 %v3247, %v3251
        %v3300 = vmin.f32 %v3249, %v3253
        %v3301 = vmin.f32 %v3299, %v3255
        %v3302 = vmin.f32 %v3300, %v3257
        %v3303 = vmin.f32 %v3301, %v3259
        %v3304 = vmin.f32 %v3302, %v3261
        %v3305 = vmin.f32 %v3303, %v3263
        %v3306 = vmin.f32 %v3304, %v3265
        %v3307 = vmin.f32 %v3305, %v3267
        %v3308 = vmin.f32 %v3306, %v3269
        %v3309 = vmin.f32 %v3307, %v3271
        %v3310 = vmin.f32 %v3308, %v3273
        %v3311 = vmin.f32 %v3309, %v3275
        %v3312 = vmin.f32 %v3310, %v3277
        %v3313 = vmin.f32 %v3311, %v3312
        %v3314 = vrot.slane %v3313, 4
        %v3315 = vmin.f32 %v3313, %v3314
        %v3316 = vrot.slane %v3315, 2
        %v3317 = vmin.f32 %v3315, %v3316
        %v3318 = vrot.slane %v3317, 1
        %v3319 = vmin.f32 %v3317, %v3318
        %3320 = vset.pattern.permute.xlu0 4
        %3321 = vperm.xlu0 %3320, %v862
        %v3322 = vpop.permute.xlu0 %3321
        %3324 = vset.pattern.permute.xlu0 4
        %3325 = vperm.xlu0 %3324, %v863
        %v3326 = vpop.permute.xlu0 %3325
        %3328 = vset.pattern.permute.xlu0 4
        %3329 = vperm.xlu0 %3328, %v864
        %v3330 = vpop.permute.xlu0 %3329
        %3332 = vset.pattern.permute.xlu0 4
        %3333 = vperm.xlu0 %3332, %v865
        %v3334 = vpop.permute.xlu0 %3333
        %3336 = vset.pattern.permute.xlu0 4
        %3337 = vperm.xlu0 %3336, %v866
        %v3338 = vpop.permute.xlu0 %3337
        %3340 = vset.pattern.permute.xlu0 4
        %3341 = vperm.xlu0 %3340, %v867
        %v3342 = vpop.permute.xlu0 %3341
        %3344 = vset.pattern.permute.xlu0 4
        %3345 = vperm.xlu0 %3344, %v868
        %v3346 = vpop.permute.xlu0 %3345
        %3348 = vset.pattern.permute.xlu0 4
        %3349 = vperm.xlu0 %3348, %v869
        %v3350 = vpop.permute.xlu0 %3349
        %3352 = vset.pattern.permute.xlu0 4
        %3353 = vperm.xlu0 %3352, %v870
        %v3354 = vpop.permute.xlu0 %3353
        %3356 = vset.pattern.permute.xlu0 4
        %3357 = vperm.xlu0 %3356, %v871
        %v3358 = vpop.permute.xlu0 %3357
        %3360 = vset.pattern.permute.xlu0 4
        %3361 = vperm.xlu0 %3360, %v872
        %v3362 = vpop.permute.xlu0 %3361
        %3364 = vset.pattern.permute.xlu0 4
        %3365 = vperm.xlu0 %3364, %v873
        %v3366 = vpop.permute.xlu0 %3365
        %3368 = vset.pattern.permute.xlu0 4
        %3369 = vperm.xlu0 %3368, %v874
        %v3370 = vpop.permute.xlu0 %3369
        %3372 = vset.pattern.permute.xlu0 4
        %3373 = vperm.xlu0 %3372, %v875
        %v3374 = vpop.permute.xlu0 %3373
        %3376 = vset.pattern.permute.xlu0 4
        %3377 = vperm.xlu0 %3376, %v876
        %v3378 = vpop.permute.xlu0 %3377
        %3380 = vset.pattern.permute.xlu0 4
        %3381 = vperm.xlu0 %3380, %v877
        %v3382 = vpop.permute.xlu0 %3381
        %v3384 = vadd.f32 %v814, %v3322
        %v3385 = vadd.f32 %v815, %v3322
        %v3386 = vadd.f32 %v816, %v3326
        %v3387 = vadd.f32 %v817, %v3326
        %v3388 = vadd.f32 %v818, %v3330
        %v3389 = vadd.f32 %v819, %v3330
        %v3390 = vadd.f32 %v820, %v3334
        %v3391 = vadd.f32 %v821, %v3334
        %v3392 = vadd.f32 %v822, %v3338
        %v3393 = vadd.f32 %v823, %v3338
        %v3394 = vadd.f32 %v824, %v3342
        %v3395 = vadd.f32 %v825, %v3342
        %v3396 = vadd.f32 %v826, %v3346
        %v3397 = vadd.f32 %v827, %v3346
        %v3398 = vadd.f32 %v828, %v3350
        %v3399 = vadd.f32 %v829, %v3350
        %v3400 = vadd.f32 %v830, %v3354
        %v3401 = vadd.f32 %v831, %v3354
        %v3402 = vadd.f32 %v832, %v3358
        %v3403 = vadd.f32 %v833, %v3358
        %v3404 = vadd.f32 %v834, %v3362
        %v3405 = vadd.f32 %v835, %v3362
        %v3406 = vadd.f32 %v836, %v3366
        %v3407 = vadd.f32 %v837, %v3366
        %v3408 = vadd.f32 %v838, %v3370
        %v3409 = vadd.f32 %v839, %v3370
        %v3410 = vadd.f32 %v840, %v3374
        %v3411 = vadd.f32 %v841, %v3374
        %v3412 = vadd.f32 %v842, %v3378
        %v3413 = vadd.f32 %v843, %v3378
        %v3414 = vadd.f32 %v844, %v3382
        %v3415 = vadd.f32 %v845, %v3382
        %v3416 = vmin.f32 %v3384, %v3388
        %v3417 = vmin.f32 %v3386, %v3390
        %v3418 = vmin.f32 %v3416, %v3392
        %v3419 = vmin.f32 %v3417, %v3394
        %v3420 = vmin.f32 %v3418, %v3396
        %v3421 = vmin.f32 %v3419, %v3398
        %v3422 = vmin.f32 %v3420, %v3400
        %v3423 = vmin.f32 %v3421, %v3402
        %v3424 = vmin.f32 %v3422, %v3404
        %v3425 = vmin.f32 %v3423, %v3406
        %v3426 = vmin.f32 %v3424, %v3408
        %v3427 = vmin.f32 %v3425, %v3410
        %v3428 = vmin.f32 %v3426, %v3412
        %v3429 = vmin.f32 %v3427, %v3414
        %v3430 = vmin.f32 %v3428, %v3429
        %v3431 = vrot.slane %v3430, 4
        %v3432 = vmin.f32 %v3430, %v3431
        %v3433 = vrot.slane %v3432, 2
        %v3434 = vmin.f32 %v3432, %v3433
        %v3435 = vrot.slane %v3434, 1
        %v3436 = vmin.f32 %v3434, %v3435
        %v3437 = vmin.f32 %v3385, %v3389
        %v3438 = vmin.f32 %v3387, %v3391
        %v3439 = vmin.f32 %v3437, %v3393
        %v3440 = vmin.f32 %v3438, %v3395
        %v3441 = vmin.f32 %v3439, %v3397
        %v3442 = vmin.f32 %v3440, %v3399
        %v3443 = vmin.f32 %v3441, %v3401
        %v3444 = vmin.f32 %v3442, %v3403
        %v3445 = vmin.f32 %v3443, %v3405
        %v3446 = vmin.f32 %v3444, %v3407
        %v3447 = vmin.f32 %v3445, %v3409
        %v3448 = vmin.f32 %v3446, %v3411
        %v3449 = vmin.f32 %v3447, %v3413
        %v3450 = vmin.f32 %v3448, %v3415
        %v3451 = vmin.f32 %v3449, %v3450
        %v3452 = vrot.slane %v3451, 4
        %v3453 = vmin.f32 %v3451, %v3452
        %v3454 = vrot.slane %v3453, 2
        %v3455 = vmin.f32 %v3453, %v3454
        %v3456 = vrot.slane %v3455, 1
        %v3457 = vmin.f32 %v3455, %v3456
        %3458 = vset.pattern.permute.xlu0 4
        %3459 = vperm.xlu0 %3458, %v878
        %v3460 = vpop.permute.xlu0 %3459
        %3462 = vset.pattern.permute.xlu0 4
        %3463 = vperm.xlu0 %3462, %v879
        %v3464 = vpop.permute.xlu0 %3463
        %3466 = vset.pattern.permute.xlu0 4
        %3467 = vperm.xlu0 %3466, %v880
        %v3468 = vpop.permute.xlu0 %3467
        %3470 = vset.pattern.permute.xlu0 4
        %3471 = vperm.xlu0 %3470, %v881
        %v3472 = vpop.permute.xlu0 %3471
        %3474 = vset.pattern.permute.xlu0 4
        %3475 = vperm.xlu0 %3474, %v882
        %v3476 = vpop.permute.xlu0 %3475
        %3478 = vset.pattern.permute.xlu0 4
        %3479 = vperm.xlu0 %3478, %v883
        %v3480 = vpop.permute.xlu0 %3479
        %3482 = vset.pattern.permute.xlu0 4
        %3483 = vperm.xlu0 %3482, %v884
        %v3484 = vpop.permute.xlu0 %3483
        %3486 = vset.pattern.permute.xlu0 4
        %3487 = vperm.xlu0 %3486, %v885
        %v3488 = vpop.permute.xlu0 %3487
        %3490 = vset.pattern.permute.xlu0 4
        %3491 = vperm.xlu0 %3490, %v886
        %v3492 = vpop.permute.xlu0 %3491
        %3494 = vset.pattern.permute.xlu0 4
        %3495 = vperm.xlu0 %3494, %v887
        %v3496 = vpop.permute.xlu0 %3495
        %3498 = vset.pattern.permute.xlu0 4
        %3499 = vperm.xlu0 %3498, %v888
        %v3500 = vpop.permute.xlu0 %3499
        %3502 = vset.pattern.permute.xlu0 4
        %3503 = vperm.xlu0 %3502, %v889
        %v3504 = vpop.permute.xlu0 %3503
        %3506 = vset.pattern.permute.xlu0 4
        %3507 = vperm.xlu0 %3506, %v890
        %v3508 = vpop.permute.xlu0 %3507
        %3510 = vset.pattern.permute.xlu0 4
        %3511 = vperm.xlu0 %3510, %v891
        %v3512 = vpop.permute.xlu0 %3511
        %3514 = vset.pattern.permute.xlu0 4
        %3515 = vperm.xlu0 %3514, %v892
        %v3516 = vpop.permute.xlu0 %3515
        %3518 = vset.pattern.permute.xlu0 4
        %3519 = vperm.xlu0 %3518, %v893
        %v3520 = vpop.permute.xlu0 %3519
        %v3522 = vadd.f32 %v814, %v3460
        %v3523 = vadd.f32 %v815, %v3460
        %v3524 = vadd.f32 %v816, %v3464
        %v3525 = vadd.f32 %v817, %v3464
        %v3526 = vadd.f32 %v818, %v3468
        %v3527 = vadd.f32 %v819, %v3468
        %v3528 = vadd.f32 %v820, %v3472
        %v3529 = vadd.f32 %v821, %v3472
        %v3530 = vadd.f32 %v822, %v3476
        %v3531 = vadd.f32 %v823, %v3476
        %v3532 = vadd.f32 %v824, %v3480
        %v3533 = vadd.f32 %v825, %v3480
        %v3534 = vadd.f32 %v826, %v3484
        %v3535 = vadd.f32 %v827, %v3484
        %v3536 = vadd.f32 %v828, %v3488
        %v3537 = vadd.f32 %v829, %v3488
        %v3538 = vadd.f32 %v830, %v3492
        %v3539 = vadd.f32 %v831, %v3492
        %v3540 = vadd.f32 %v832, %v3496
        %v3541 = vadd.f32 %v833, %v3496
        %v3542 = vadd.f32 %v834, %v3500
        %v3543 = vadd.f32 %v835, %v3500
        %v3544 = vadd.f32 %v836, %v3504
        %v3545 = vadd.f32 %v837, %v3504
        %v3546 = vadd.f32 %v838, %v3508
        %v3547 = vadd.f32 %v839, %v3508
        %v3548 = vadd.f32 %v840, %v3512
        %v3549 = vadd.f32 %v841, %v3512
        %v3550 = vadd.f32 %v842, %v3516
        %v3551 = vadd.f32 %v843, %v3516
        %v3552 = vadd.f32 %v844, %v3520
        %v3553 = vadd.f32 %v845, %v3520
        %v3554 = vmin.f32 %v3522, %v3526
        %v3555 = vmin.f32 %v3524, %v3528
        %v3556 = vmin.f32 %v3554, %v3530
        %v3557 = vmin.f32 %v3555, %v3532
        %v3558 = vmin.f32 %v3556, %v3534
        %v3559 = vmin.f32 %v3557, %v3536
        %v3560 = vmin.f32 %v3558, %v3538
        %v3561 = vmin.f32 %v3559, %v3540
        %v3562 = vmin.f32 %v3560, %v3542
        %v3563 = vmin.f32 %v3561, %v3544
        %v3564 = vmin.f32 %v3562, %v3546
        %v3565 = vmin.f32 %v3563, %v3548
        %v3566 = vmin.f32 %v3564, %v3550
        %v3567 = vmin.f32 %v3565, %v3552
        %v3568 = vmin.f32 %v3566, %v3567
        %v3569 = vrot.slane %v3568, 4
        %v3570 = vmin.f32 %v3568, %v3569
        %v3571 = vrot.slane %v3570, 2
        %v3572 = vmin.f32 %v3570, %v3571
        %v3573 = vrot.slane %v3572, 1
        %v3574 = vmin.f32 %v3572, %v3573
        %v3575 = vmin.f32 %v3523, %v3527
        %v3576 = vmin.f32 %v3525, %v3529
        %v3577 = vmin.f32 %v3575, %v3531
        %v3578 = vmin.f32 %v3576, %v3533
        %v3579 = vmin.f32 %v3577, %v3535
        %v3580 = vmin.f32 %v3578, %v3537
        %v3581 = vmin.f32 %v3579, %v3539
        %v3582 = vmin.f32 %v3580, %v3541
        %v3583 = vmin.f32 %v3581, %v3543
        %v3584 = vmin.f32 %v3582, %v3545
        %v3585 = vmin.f32 %v3583, %v3547
        %v3586 = vmin.f32 %v3584, %v3549
        %v3587 = vmin.f32 %v3585, %v3551
        %v3588 = vmin.f32 %v3586, %v3553
        %v3589 = vmin.f32 %v3587, %v3588
        %v3590 = vrot.slane %v3589, 4
        %v3591 = vmin.f32 %v3589, %v3590
        %v3592 = vrot.slane %v3591, 2
        %v3593 = vmin.f32 %v3591, %v3592
        %v3594 = vrot.slane %v3593, 1
        %v3595 = vmin.f32 %v3593, %v3594
        %3596 = vset.pattern.permute.xlu0 4
        %3597 = vperm.xlu0 %3596, %v894
        %v3598 = vpop.permute.xlu0 %3597
        %3600 = vset.pattern.permute.xlu0 4
        %3601 = vperm.xlu0 %3600, %v895
        %v3602 = vpop.permute.xlu0 %3601
        %3604 = vset.pattern.permute.xlu0 4
        %3605 = vperm.xlu0 %3604, %v896
        %v3606 = vpop.permute.xlu0 %3605
        %3608 = vset.pattern.permute.xlu0 4
        %3609 = vperm.xlu0 %3608, %v897
        %v3610 = vpop.permute.xlu0 %3609
        %3612 = vset.pattern.permute.xlu0 4
        %3613 = vperm.xlu0 %3612, %v898
        %v3614 = vpop.permute.xlu0 %3613
        %3616 = vset.pattern.permute.xlu0 4
        %3617 = vperm.xlu0 %3616, %v899
        %v3618 = vpop.permute.xlu0 %3617
        %3620 = vset.pattern.permute.xlu0 4
        %3621 = vperm.xlu0 %3620, %v900
        %v3622 = vpop.permute.xlu0 %3621
        %3624 = vset.pattern.permute.xlu0 4
        %3625 = vperm.xlu0 %3624, %v901
        %v3626 = vpop.permute.xlu0 %3625
        %3628 = vset.pattern.permute.xlu0 4
        %3629 = vperm.xlu0 %3628, %v902
        %v3630 = vpop.permute.xlu0 %3629
        %3632 = vset.pattern.permute.xlu0 4
        %3633 = vperm.xlu0 %3632, %v903
        %v3634 = vpop.permute.xlu0 %3633
        %3636 = vset.pattern.permute.xlu0 4
        %3637 = vperm.xlu0 %3636, %v904
        %v3638 = vpop.permute.xlu0 %3637
        %3640 = vset.pattern.permute.xlu0 4
        %3641 = vperm.xlu0 %3640, %v905
        %v3642 = vpop.permute.xlu0 %3641
        %3644 = vset.pattern.permute.xlu0 4
        %3645 = vperm.xlu0 %3644, %v906
        %v3646 = vpop.permute.xlu0 %3645
        %3648 = vset.pattern.permute.xlu0 4
        %3649 = vperm.xlu0 %3648, %v907
        %v3650 = vpop.permute.xlu0 %3649
        %3652 = vset.pattern.permute.xlu0 4
        %3653 = vperm.xlu0 %3652, %v908
        %v3654 = vpop.permute.xlu0 %3653
        %3656 = vset.pattern.permute.xlu0 4
        %3657 = vperm.xlu0 %3656, %v909
        %v3658 = vpop.permute.xlu0 %3657
        %v3660 = vadd.f32 %v814, %v3598
        %v3661 = vadd.f32 %v815, %v3598
        %v3662 = vadd.f32 %v816, %v3602
        %v3663 = vadd.f32 %v817, %v3602
        %v3664 = vadd.f32 %v818, %v3606
        %v3665 = vadd.f32 %v819, %v3606
        %v3666 = vadd.f32 %v820, %v3610
        %v3667 = vadd.f32 %v821, %v3610
        %v3668 = vadd.f32 %v822, %v3614
        %v3669 = vadd.f32 %v823, %v3614
        %v3670 = vadd.f32 %v824, %v3618
        %v3671 = vadd.f32 %v825, %v3618
        %v3672 = vadd.f32 %v826, %v3622
        %v3673 = vadd.f32 %v827, %v3622
        %v3674 = vadd.f32 %v828, %v3626
        %v3675 = vadd.f32 %v829, %v3626
        %v3676 = vadd.f32 %v830, %v3630
        %v3677 = vadd.f32 %v831, %v3630
        %v3678 = vadd.f32 %v832, %v3634
        %v3679 = vadd.f32 %v833, %v3634
        %v3680 = vadd.f32 %v834, %v3638
        %v3681 = vadd.f32 %v835, %v3638
        %v3682 = vadd.f32 %v836, %v3642
        %v3683 = vadd.f32 %v837, %v3642
        %v3684 = vadd.f32 %v838, %v3646
        %v3685 = vadd.f32 %v839, %v3646
        %v3686 = vadd.f32 %v840, %v3650
        %v3687 = vadd.f32 %v841, %v3650
        %v3688 = vadd.f32 %v842, %v3654
        %v3689 = vadd.f32 %v843, %v3654
        %v3690 = vadd.f32 %v844, %v3658
        %v3691 = vadd.f32 %v845, %v3658
        %v3692 = vmin.f32 %v3660, %v3664
        %v3693 = vmin.f32 %v3662, %v3666
        %v3694 = vmin.f32 %v3692, %v3668
        %v3695 = vmin.f32 %v3693, %v3670
        %v3696 = vmin.f32 %v3694, %v3672
        %v3697 = vmin.f32 %v3695, %v3674
        %v3698 = vmin.f32 %v3696, %v3676
        %v3699 = vmin.f32 %v3697, %v3678
        %v3700 = vmin.f32 %v3698, %v3680
        %v3701 = vmin.f32 %v3699, %v3682
        %v3702 = vmin.f32 %v3700, %v3684
        %v3703 = vmin.f32 %v3701, %v3686
        %v3704 = vmin.f32 %v3702, %v3688
        %v3705 = vmin.f32 %v3703, %v3690
        %v3706 = vmin.f32 %v3704, %v3705
        %v3707 = vrot.slane %v3706, 4
        %v3708 = vmin.f32 %v3706, %v3707
        %v3709 = vrot.slane %v3708, 2
        %v3710 = vmin.f32 %v3708, %v3709
        %v3711 = vrot.slane %v3710, 1
        %v3712 = vmin.f32 %v3710, %v3711
        %v3713 = vmin.f32 %v3661, %v3665
        %v3714 = vmin.f32 %v3663, %v3667
        %v3715 = vmin.f32 %v3713, %v3669
        %v3716 = vmin.f32 %v3714, %v3671
        %v3717 = vmin.f32 %v3715, %v3673
        %v3718 = vmin.f32 %v3716, %v3675
        %v3719 = vmin.f32 %v3717, %v3677
        %v3720 = vmin.f32 %v3718, %v3679
        %v3721 = vmin.f32 %v3719, %v3681
        %v3722 = vmin.f32 %v3720, %v3683
        %v3723 = vmin.f32 %v3721, %v3685
        %v3724 = vmin.f32 %v3722, %v3687
        %v3725 = vmin.f32 %v3723, %v3689
        %v3726 = vmin.f32 %v3724, %v3691
        %v3727 = vmin.f32 %v3725, %v3726
        %v3728 = vrot.slane %v3727, 4
        %v3729 = vmin.f32 %v3727, %v3728
        %v3730 = vrot.slane %v3729, 2
        %v3731 = vmin.f32 %v3729, %v3730
        %v3732 = vrot.slane %v3731, 1
        %v3733 = vmin.f32 %v3731, %v3732
        %3734 = vset.pattern.permute.xlu0 5
        %3735 = vperm.xlu0 %3734, %v846
        %v3736 = vpop.permute.xlu0 %3735
        %3738 = vset.pattern.permute.xlu0 5
        %3739 = vperm.xlu0 %3738, %v847
        %v3740 = vpop.permute.xlu0 %3739
        %3742 = vset.pattern.permute.xlu0 5
        %3743 = vperm.xlu0 %3742, %v848
        %v3744 = vpop.permute.xlu0 %3743
        %3746 = vset.pattern.permute.xlu0 5
        %3747 = vperm.xlu0 %3746, %v849
        %v3748 = vpop.permute.xlu0 %3747
        %3750 = vset.pattern.permute.xlu0 5
        %3751 = vperm.xlu0 %3750, %v850
        %v3752 = vpop.permute.xlu0 %3751
        %3754 = vset.pattern.permute.xlu0 5
        %3755 = vperm.xlu0 %3754, %v851
        %v3756 = vpop.permute.xlu0 %3755
        %3758 = vset.pattern.permute.xlu0 5
        %3759 = vperm.xlu0 %3758, %v852
        %v3760 = vpop.permute.xlu0 %3759
        %3762 = vset.pattern.permute.xlu0 5
        %3763 = vperm.xlu0 %3762, %v853
        %v3764 = vpop.permute.xlu0 %3763
        %3766 = vset.pattern.permute.xlu0 5
        %3767 = vperm.xlu0 %3766, %v854
        %v3768 = vpop.permute.xlu0 %3767
        %3770 = vset.pattern.permute.xlu0 5
        %3771 = vperm.xlu0 %3770, %v855
        %v3772 = vpop.permute.xlu0 %3771
        %3774 = vset.pattern.permute.xlu0 5
        %3775 = vperm.xlu0 %3774, %v856
        %v3776 = vpop.permute.xlu0 %3775
        %3778 = vset.pattern.permute.xlu0 5
        %3779 = vperm.xlu0 %3778, %v857
        %v3780 = vpop.permute.xlu0 %3779
        %3782 = vset.pattern.permute.xlu0 5
        %3783 = vperm.xlu0 %3782, %v858
        %v3784 = vpop.permute.xlu0 %3783
        %3786 = vset.pattern.permute.xlu0 5
        %3787 = vperm.xlu0 %3786, %v859
        %v3788 = vpop.permute.xlu0 %3787
        %3790 = vset.pattern.permute.xlu0 5
        %3791 = vperm.xlu0 %3790, %v860
        %v3792 = vpop.permute.xlu0 %3791
        %3794 = vset.pattern.permute.xlu0 5
        %3795 = vperm.xlu0 %3794, %v861
        %v3796 = vpop.permute.xlu0 %3795
        %v3798 = vadd.f32 %v814, %v3736
        %v3799 = vadd.f32 %v815, %v3736
        %v3800 = vadd.f32 %v816, %v3740
        %v3801 = vadd.f32 %v817, %v3740
        %v3802 = vadd.f32 %v818, %v3744
        %v3803 = vadd.f32 %v819, %v3744
        %v3804 = vadd.f32 %v820, %v3748
        %v3805 = vadd.f32 %v821, %v3748
        %v3806 = vadd.f32 %v822, %v3752
        %v3807 = vadd.f32 %v823, %v3752
        %v3808 = vadd.f32 %v824, %v3756
        %v3809 = vadd.f32 %v825, %v3756
        %v3810 = vadd.f32 %v826, %v3760
        %v3811 = vadd.f32 %v827, %v3760
        %v3812 = vadd.f32 %v828, %v3764
        %v3813 = vadd.f32 %v829, %v3764
        %v3814 = vadd.f32 %v830, %v3768
        %v3815 = vadd.f32 %v831, %v3768
        %v3816 = vadd.f32 %v832, %v3772
        %v3817 = vadd.f32 %v833, %v3772
        %v3818 = vadd.f32 %v834, %v3776
        %v3819 = vadd.f32 %v835, %v3776
        %v3820 = vadd.f32 %v836, %v3780
        %v3821 = vadd.f32 %v837, %v3780
        %v3822 = vadd.f32 %v838, %v3784
        %v3823 = vadd.f32 %v839, %v3784
        %v3824 = vadd.f32 %v840, %v3788
        %v3825 = vadd.f32 %v841, %v3788
        %v3826 = vadd.f32 %v842, %v3792
        %v3827 = vadd.f32 %v843, %v3792
        %v3828 = vadd.f32 %v844, %v3796
        %v3829 = vadd.f32 %v845, %v3796
        %v3830 = vmin.f32 %v3798, %v3802
        %v3831 = vmin.f32 %v3800, %v3804
        %v3832 = vmin.f32 %v3830, %v3806
        %v3833 = vmin.f32 %v3831, %v3808
        %v3834 = vmin.f32 %v3832, %v3810
        %v3835 = vmin.f32 %v3833, %v3812
        %v3836 = vmin.f32 %v3834, %v3814
        %v3837 = vmin.f32 %v3835, %v3816
        %v3838 = vmin.f32 %v3836, %v3818
        %v3839 = vmin.f32 %v3837, %v3820
        %v3840 = vmin.f32 %v3838, %v3822
        %v3841 = vmin.f32 %v3839, %v3824
        %v3842 = vmin.f32 %v3840, %v3826
        %v3843 = vmin.f32 %v3841, %v3828
        %v3844 = vmin.f32 %v3842, %v3843
        %v3845 = vrot.slane %v3844, 4
        %v3846 = vmin.f32 %v3844, %v3845
        %v3847 = vrot.slane %v3846, 2
        %v3848 = vmin.f32 %v3846, %v3847
        %v3849 = vrot.slane %v3848, 1
        %v3850 = vmin.f32 %v3848, %v3849
        %v3851 = vmin.f32 %v3799, %v3803
        %v3852 = vmin.f32 %v3801, %v3805
        %v3853 = vmin.f32 %v3851, %v3807
        %v3854 = vmin.f32 %v3852, %v3809
        %v3855 = vmin.f32 %v3853, %v3811
        %v3856 = vmin.f32 %v3854, %v3813
        %v3857 = vmin.f32 %v3855, %v3815
        %v3858 = vmin.f32 %v3856, %v3817
        %v3859 = vmin.f32 %v3857, %v3819
        %v3860 = vmin.f32 %v3858, %v3821
        %v3861 = vmin.f32 %v3859, %v3823
        %v3862 = vmin.f32 %v3860, %v3825
        %v3863 = vmin.f32 %v3861, %v3827
        %v3864 = vmin.f32 %v3862, %v3829
        %v3865 = vmin.f32 %v3863, %v3864
        %v3866 = vrot.slane %v3865, 4
        %v3867 = vmin.f32 %v3865, %v3866
        %v3868 = vrot.slane %v3867, 2
        %v3869 = vmin.f32 %v3867, %v3868
        %v3870 = vrot.slane %v3869, 1
        %v3871 = vmin.f32 %v3869, %v3870
        %3872 = vset.pattern.permute.xlu0 5
        %3873 = vperm.xlu0 %3872, %v862
        %v3874 = vpop.permute.xlu0 %3873
        %3876 = vset.pattern.permute.xlu0 5
        %3877 = vperm.xlu0 %3876, %v863
        %v3878 = vpop.permute.xlu0 %3877
        %3880 = vset.pattern.permute.xlu0 5
        %3881 = vperm.xlu0 %3880, %v864
        %v3882 = vpop.permute.xlu0 %3881
        %3884 = vset.pattern.permute.xlu0 5
        %3885 = vperm.xlu0 %3884, %v865
        %v3886 = vpop.permute.xlu0 %3885
        %3888 = vset.pattern.permute.xlu0 5
        %3889 = vperm.xlu0 %3888, %v866
        %v3890 = vpop.permute.xlu0 %3889
        %3892 = vset.pattern.permute.xlu0 5
        %3893 = vperm.xlu0 %3892, %v867
        %v3894 = vpop.permute.xlu0 %3893
        %3896 = vset.pattern.permute.xlu0 5
        %3897 = vperm.xlu0 %3896, %v868
        %v3898 = vpop.permute.xlu0 %3897
        %3900 = vset.pattern.permute.xlu0 5
        %3901 = vperm.xlu0 %3900, %v869
        %v3902 = vpop.permute.xlu0 %3901
        %3904 = vset.pattern.permute.xlu0 5
        %3905 = vperm.xlu0 %3904, %v870
        %v3906 = vpop.permute.xlu0 %3905
        %3908 = vset.pattern.permute.xlu0 5
        %3909 = vperm.xlu0 %3908, %v871
        %v3910 = vpop.permute.xlu0 %3909
        %3912 = vset.pattern.permute.xlu0 5
        %3913 = vperm.xlu0 %3912, %v872
        %v3914 = vpop.permute.xlu0 %3913
        %3916 = vset.pattern.permute.xlu0 5
        %3917 = vperm.xlu0 %3916, %v873
        %v3918 = vpop.permute.xlu0 %3917
        %3920 = vset.pattern.permute.xlu0 5
        %3921 = vperm.xlu0 %3920, %v874
        %v3922 = vpop.permute.xlu0 %3921
        %3924 = vset.pattern.permute.xlu0 5
        %3925 = vperm.xlu0 %3924, %v875
        %v3926 = vpop.permute.xlu0 %3925
        %3928 = vset.pattern.permute.xlu0 5
        %3929 = vperm.xlu0 %3928, %v876
        %v3930 = vpop.permute.xlu0 %3929
        %3932 = vset.pattern.permute.xlu0 5
        %3933 = vperm.xlu0 %3932, %v877
        %v3934 = vpop.permute.xlu0 %3933
        %v3936 = vadd.f32 %v814, %v3874
        %v3937 = vadd.f32 %v815, %v3874
        %v3938 = vadd.f32 %v816, %v3878
        %v3939 = vadd.f32 %v817, %v3878
        %v3940 = vadd.f32 %v818, %v3882
        %v3941 = vadd.f32 %v819, %v3882
        %v3942 = vadd.f32 %v820, %v3886
        %v3943 = vadd.f32 %v821, %v3886
        %v3944 = vadd.f32 %v822, %v3890
        %v3945 = vadd.f32 %v823, %v3890
        %v3946 = vadd.f32 %v824, %v3894
        %v3947 = vadd.f32 %v825, %v3894
        %v3948 = vadd.f32 %v826, %v3898
        %v3949 = vadd.f32 %v827, %v3898
        %v3950 = vadd.f32 %v828, %v3902
        %v3951 = vadd.f32 %v829, %v3902
        %v3952 = vadd.f32 %v830, %v3906
        %v3953 = vadd.f32 %v831, %v3906
        %v3954 = vadd.f32 %v832, %v3910
        %v3955 = vadd.f32 %v833, %v3910
        %v3956 = vadd.f32 %v834, %v3914
        %v3957 = vadd.f32 %v835, %v3914
        %v3958 = vadd.f32 %v836, %v3918
        %v3959 = vadd.f32 %v837, %v3918
        %v3960 = vadd.f32 %v838, %v3922
        %v3961 = vadd.f32 %v839, %v3922
        %v3962 = vadd.f32 %v840, %v3926
        %v3963 = vadd.f32 %v841, %v3926
        %v3964 = vadd.f32 %v842, %v3930
        %v3965 = vadd.f32 %v843, %v3930
        %v3966 = vadd.f32 %v844, %v3934
        %v3967 = vadd.f32 %v845, %v3934
        %v3968 = vmin.f32 %v3936, %v3940
        %v3969 = vmin.f32 %v3938, %v3942
        %v3970 = vmin.f32 %v3968, %v3944
        %v3971 = vmin.f32 %v3969, %v3946
        %v3972 = vmin.f32 %v3970, %v3948
        %v3973 = vmin.f32 %v3971, %v3950
        %v3974 = vmin.f32 %v3972, %v3952
        %v3975 = vmin.f32 %v3973, %v3954
        %v3976 = vmin.f32 %v3974, %v3956
        %v3977 = vmin.f32 %v3975, %v3958
        %v3978 = vmin.f32 %v3976, %v3960
        %v3979 = vmin.f32 %v3977, %v3962
        %v3980 = vmin.f32 %v3978, %v3964
        %v3981 = vmin.f32 %v3979, %v3966
        %v3982 = vmin.f32 %v3980, %v3981
        %v3983 = vrot.slane %v3982, 4
        %v3984 = vmin.f32 %v3982, %v3983
        %v3985 = vrot.slane %v3984, 2
        %v3986 = vmin.f32 %v3984, %v3985
        %v3987 = vrot.slane %v3986, 1
        %v3988 = vmin.f32 %v3986, %v3987
        %v3989 = vmin.f32 %v3937, %v3941
        %v3990 = vmin.f32 %v3939, %v3943
        %v3991 = vmin.f32 %v3989, %v3945
        %v3992 = vmin.f32 %v3990, %v3947
        %v3993 = vmin.f32 %v3991, %v3949
        %v3994 = vmin.f32 %v3992, %v3951
        %v3995 = vmin.f32 %v3993, %v3953
        %v3996 = vmin.f32 %v3994, %v3955
        %v3997 = vmin.f32 %v3995, %v3957
        %v3998 = vmin.f32 %v3996, %v3959
        %v3999 = vmin.f32 %v3997, %v3961
        %v4000 = vmin.f32 %v3998, %v3963
        %v4001 = vmin.f32 %v3999, %v3965
        %v4002 = vmin.f32 %v4000, %v3967
        %v4003 = vmin.f32 %v4001, %v4002
        %v4004 = vrot.slane %v4003, 4
        %v4005 = vmin.f32 %v4003, %v4004
        %v4006 = vrot.slane %v4005, 2
        %v4007 = vmin.f32 %v4005, %v4006
        %v4008 = vrot.slane %v4007, 1
        %v4009 = vmin.f32 %v4007, %v4008
        %4010 = vset.pattern.permute.xlu0 5
        %4011 = vperm.xlu0 %4010, %v878
        %v4012 = vpop.permute.xlu0 %4011
        %4014 = vset.pattern.permute.xlu0 5
        %4015 = vperm.xlu0 %4014, %v879
        %v4016 = vpop.permute.xlu0 %4015
        %4018 = vset.pattern.permute.xlu0 5
        %4019 = vperm.xlu0 %4018, %v880
        %v4020 = vpop.permute.xlu0 %4019
        %4022 = vset.pattern.permute.xlu0 5
        %4023 = vperm.xlu0 %4022, %v881
        %v4024 = vpop.permute.xlu0 %4023
        %4026 = vset.pattern.permute.xlu0 5
        %4027 = vperm.xlu0 %4026, %v882
        %v4028 = vpop.permute.xlu0 %4027
        %4030 = vset.pattern.permute.xlu0 5
        %4031 = vperm.xlu0 %4030, %v883
        %v4032 = vpop.permute.xlu0 %4031
        %4034 = vset.pattern.permute.xlu0 5
        %4035 = vperm.xlu0 %4034, %v884
        %v4036 = vpop.permute.xlu0 %4035
        %4038 = vset.pattern.permute.xlu0 5
        %4039 = vperm.xlu0 %4038, %v885
        %v4040 = vpop.permute.xlu0 %4039
        %4042 = vset.pattern.permute.xlu0 5
        %4043 = vperm.xlu0 %4042, %v886
        %v4044 = vpop.permute.xlu0 %4043
        %4046 = vset.pattern.permute.xlu0 5
        %4047 = vperm.xlu0 %4046, %v887
        %v4048 = vpop.permute.xlu0 %4047
        %4050 = vset.pattern.permute.xlu0 5
        %4051 = vperm.xlu0 %4050, %v888
        %v4052 = vpop.permute.xlu0 %4051
        %4054 = vset.pattern.permute.xlu0 5
        %4055 = vperm.xlu0 %4054, %v889
        %v4056 = vpop.permute.xlu0 %4055
        %4058 = vset.pattern.permute.xlu0 5
        %4059 = vperm.xlu0 %4058, %v890
        %v4060 = vpop.permute.xlu0 %4059
        %4062 = vset.pattern.permute.xlu0 5
        %4063 = vperm.xlu0 %4062, %v891
        %v4064 = vpop.permute.xlu0 %4063
        %4066 = vset.pattern.permute.xlu0 5
        %4067 = vperm.xlu0 %4066, %v892
        %v4068 = vpop.permute.xlu0 %4067
        %4070 = vset.pattern.permute.xlu0 5
        %4071 = vperm.xlu0 %4070, %v893
        %v4072 = vpop.permute.xlu0 %4071
        %v4074 = vadd.f32 %v814, %v4012
        %v4075 = vadd.f32 %v815, %v4012
        %v4076 = vadd.f32 %v816, %v4016
        %v4077 = vadd.f32 %v817, %v4016
        %v4078 = vadd.f32 %v818, %v4020
        %v4079 = vadd.f32 %v819, %v4020
        %v4080 = vadd.f32 %v820, %v4024
        %v4081 = vadd.f32 %v821, %v4024
        %v4082 = vadd.f32 %v822, %v4028
        %v4083 = vadd.f32 %v823, %v4028
        %v4084 = vadd.f32 %v824, %v4032
        %v4085 = vadd.f32 %v825, %v4032
        %v4086 = vadd.f32 %v826, %v4036
        %v4087 = vadd.f32 %v827, %v4036
        %v4088 = vadd.f32 %v828, %v4040
        %v4089 = vadd.f32 %v829, %v4040
        %v4090 = vadd.f32 %v830, %v4044
        %v4091 = vadd.f32 %v831, %v4044
        %v4092 = vadd.f32 %v832, %v4048
        %v4093 = vadd.f32 %v833, %v4048
        %v4094 = vadd.f32 %v834, %v4052
        %v4095 = vadd.f32 %v835, %v4052
        %v4096 = vadd.f32 %v836, %v4056
        %v4097 = vadd.f32 %v837, %v4056
        %v4098 = vadd.f32 %v838, %v4060
        %v4099 = vadd.f32 %v839, %v4060
        %v4100 = vadd.f32 %v840, %v4064
        %v4101 = vadd.f32 %v841, %v4064
        %v4102 = vadd.f32 %v842, %v4068
        %v4103 = vadd.f32 %v843, %v4068
        %v4104 = vadd.f32 %v844, %v4072
        %v4105 = vadd.f32 %v845, %v4072
        %v4106 = vmin.f32 %v4074, %v4078
        %v4107 = vmin.f32 %v4076, %v4080
        %v4108 = vmin.f32 %v4106, %v4082
        %v4109 = vmin.f32 %v4107, %v4084
        %v4110 = vmin.f32 %v4108, %v4086
        %v4111 = vmin.f32 %v4109, %v4088
        %v4112 = vmin.f32 %v4110, %v4090
        %v4113 = vmin.f32 %v4111, %v4092
        %v4114 = vmin.f32 %v4112, %v4094
        %v4115 = vmin.f32 %v4113, %v4096
        %v4116 = vmin.f32 %v4114, %v4098
        %v4117 = vmin.f32 %v4115, %v4100
        %v4118 = vmin.f32 %v4116, %v4102
        %v4119 = vmin.f32 %v4117, %v4104
        %v4120 = vmin.f32 %v4118, %v4119
        %v4121 = vrot.slane %v4120, 4
        %v4122 = vmin.f32 %v4120, %v4121
        %v4123 = vrot.slane %v4122, 2
        %v4124 = vmin.f32 %v4122, %v4123
        %v4125 = vrot.slane %v4124, 1
        %v4126 = vmin.f32 %v4124, %v4125
        %v4127 = vmin.f32 %v4075, %v4079
        %v4128 = vmin.f32 %v4077, %v4081
        %v4129 = vmin.f32 %v4127, %v4083
        %v4130 = vmin.f32 %v4128, %v4085
        %v4131 = vmin.f32 %v4129, %v4087
        %v4132 = vmin.f32 %v4130, %v4089
        %v4133 = vmin.f32 %v4131, %v4091
        %v4134 = vmin.f32 %v4132, %v4093
        %v4135 = vmin.f32 %v4133, %v4095
        %v4136 = vmin.f32 %v4134, %v4097
        %v4137 = vmin.f32 %v4135, %v4099
        %v4138 = vmin.f32 %v4136, %v4101
        %v4139 = vmin.f32 %v4137, %v4103
        %v4140 = vmin.f32 %v4138, %v4105
        %v4141 = vmin.f32 %v4139, %v4140
        %v4142 = vrot.slane %v4141, 4
        %v4143 = vmin.f32 %v4141, %v4142
        %v4144 = vrot.slane %v4143, 2
        %v4145 = vmin.f32 %v4143, %v4144
        %v4146 = vrot.slane %v4145, 1
        %v4147 = vmin.f32 %v4145, %v4146
        %4148 = vset.pattern.permute.xlu0 5
        %4149 = vperm.xlu0 %4148, %v894
        %v4150 = vpop.permute.xlu0 %4149
        %4152 = vset.pattern.permute.xlu0 5
        %4153 = vperm.xlu0 %4152, %v895
        %v4154 = vpop.permute.xlu0 %4153
        %4156 = vset.pattern.permute.xlu0 5
        %4157 = vperm.xlu0 %4156, %v896
        %v4158 = vpop.permute.xlu0 %4157
        %4160 = vset.pattern.permute.xlu0 5
        %4161 = vperm.xlu0 %4160, %v897
        %v4162 = vpop.permute.xlu0 %4161
        %4164 = vset.pattern.permute.xlu0 5
        %4165 = vperm.xlu0 %4164, %v898
        %v4166 = vpop.permute.xlu0 %4165
        %4168 = vset.pattern.permute.xlu0 5
        %4169 = vperm.xlu0 %4168, %v899
        %v4170 = vpop.permute.xlu0 %4169
        %4172 = vset.pattern.permute.xlu0 5
        %4173 = vperm.xlu0 %4172, %v900
        %v4174 = vpop.permute.xlu0 %4173
        %4176 = vset.pattern.permute.xlu0 5
        %4177 = vperm.xlu0 %4176, %v901
        %v4178 = vpop.permute.xlu0 %4177
        %4180 = vset.pattern.permute.xlu0 5
        %4181 = vperm.xlu0 %4180, %v902
        %v4182 = vpop.permute.xlu0 %4181
        %4184 = vset.pattern.permute.xlu0 5
        %4185 = vperm.xlu0 %4184, %v903
        %v4186 = vpop.permute.xlu0 %4185
        %4188 = vset.pattern.permute.xlu0 5
        %4189 = vperm.xlu0 %4188, %v904
        %v4190 = vpop.permute.xlu0 %4189
        %4192 = vset.pattern.permute.xlu0 5
        %4193 = vperm.xlu0 %4192, %v905
        %v4194 = vpop.permute.xlu0 %4193
        %4196 = vset.pattern.permute.xlu0 5
        %4197 = vperm.xlu0 %4196, %v906
        %v4198 = vpop.permute.xlu0 %4197
        %4200 = vset.pattern.permute.xlu0 5
        %4201 = vperm.xlu0 %4200, %v907
        %v4202 = vpop.permute.xlu0 %4201
        %4204 = vset.pattern.permute.xlu0 5
        %4205 = vperm.xlu0 %4204, %v908
        %v4206 = vpop.permute.xlu0 %4205
        %4208 = vset.pattern.permute.xlu0 5
        %4209 = vperm.xlu0 %4208, %v909
        %v4210 = vpop.permute.xlu0 %4209
        %v4212 = vadd.f32 %v814, %v4150
        %v4213 = vadd.f32 %v815, %v4150
        %v4214 = vadd.f32 %v816, %v4154
        %v4215 = vadd.f32 %v817, %v4154
        %v4216 = vadd.f32 %v818, %v4158
        %v4217 = vadd.f32 %v819, %v4158
        %v4218 = vadd.f32 %v820, %v4162
        %v4219 = vadd.f32 %v821, %v4162
        %v4220 = vadd.f32 %v822, %v4166
        %v4221 = vadd.f32 %v823, %v4166
        %v4222 = vadd.f32 %v824, %v4170
        %v4223 = vadd.f32 %v825, %v4170
        %v4224 = vadd.f32 %v826, %v4174
        %v4225 = vadd.f32 %v827, %v4174
        %v4226 = vadd.f32 %v828, %v4178
        %v4227 = vadd.f32 %v829, %v4178
        %v4228 = vadd.f32 %v830, %v4182
        %v4229 = vadd.f32 %v831, %v4182
        %v4230 = vadd.f32 %v832, %v4186
        %v4231 = vadd.f32 %v833, %v4186
        %v4232 = vadd.f32 %v834, %v4190
        %v4233 = vadd.f32 %v835, %v4190
        %v4234 = vadd.f32 %v836, %v4194
        %v4235 = vadd.f32 %v837, %v4194
        %v4236 = vadd.f32 %v838, %v4198
        %v4237 = vadd.f32 %v839, %v4198
        %v4238 = vadd.f32 %v840, %v4202
        %v4239 = vadd.f32 %v841, %v4202
        %v4240 = vadd.f32 %v842, %v4206
        %v4241 = vadd.f32 %v843, %v4206
        %v4242 = vadd.f32 %v844, %v4210
        %v4243 = vadd.f32 %v845, %v4210
        %v4244 = vmin.f32 %v4212, %v4216
        %v4245 = vmin.f32 %v4214, %v4218
        %v4246 = vmin.f32 %v4244, %v4220
        %v4247 = vmin.f32 %v4245, %v4222
        %v4248 = vmin.f32 %v4246, %v4224
        %v4249 = vmin.f32 %v4247, %v4226
        %v4250 = vmin.f32 %v4248, %v4228
        %v4251 = vmin.f32 %v4249, %v4230
        %v4252 = vmin.f32 %v4250, %v4232
        %v4253 = vmin.f32 %v4251, %v4234
        %v4254 = vmin.f32 %v4252, %v4236
        %v4255 = vmin.f32 %v4253, %v4238
        %v4256 = vmin.f32 %v4254, %v4240
        %v4257 = vmin.f32 %v4255, %v4242
        %v4258 = vmin.f32 %v4256, %v4257
        %v4259 = vrot.slane %v4258, 4
        %v4260 = vmin.f32 %v4258, %v4259
        %v4261 = vrot.slane %v4260, 2
        %v4262 = vmin.f32 %v4260, %v4261
        %v4263 = vrot.slane %v4262, 1
        %v4264 = vmin.f32 %v4262, %v4263
        %v4265 = vmin.f32 %v4213, %v4217
        %v4266 = vmin.f32 %v4215, %v4219
        %v4267 = vmin.f32 %v4265, %v4221
        %v4268 = vmin.f32 %v4266, %v4223
        %v4269 = vmin.f32 %v4267, %v4225
        %v4270 = vmin.f32 %v4268, %v4227
        %v4271 = vmin.f32 %v4269, %v4229
        %v4272 = vmin.f32 %v4270, %v4231
        %v4273 = vmin.f32 %v4271, %v4233
        %v4274 = vmin.f32 %v4272, %v4235
        %v4275 = vmin.f32 %v4273, %v4237
        %v4276 = vmin.f32 %v4274, %v4239
        %v4277 = vmin.f32 %v4275, %v4241
        %v4278 = vmin.f32 %v4276, %v4243
        %v4279 = vmin.f32 %v4277, %v4278
        %v4280 = vrot.slane %v4279, 4
        %v4281 = vmin.f32 %v4279, %v4280
        %v4282 = vrot.slane %v4281, 2
        %v4283 = vmin.f32 %v4281, %v4282
        %v4284 = vrot.slane %v4283, 1
        %v4285 = vmin.f32 %v4283, %v4284
        %4286 = vset.pattern.permute.xlu0 6
        %4287 = vperm.xlu0 %4286, %v846
        %v4288 = vpop.permute.xlu0 %4287
        %4290 = vset.pattern.permute.xlu0 6
        %4291 = vperm.xlu0 %4290, %v847
        %v4292 = vpop.permute.xlu0 %4291
        %4294 = vset.pattern.permute.xlu0 6
        %4295 = vperm.xlu0 %4294, %v848
        %v4296 = vpop.permute.xlu0 %4295
        %4298 = vset.pattern.permute.xlu0 6
        %4299 = vperm.xlu0 %4298, %v849
        %v4300 = vpop.permute.xlu0 %4299
        %4302 = vset.pattern.permute.xlu0 6
        %4303 = vperm.xlu0 %4302, %v850
        %v4304 = vpop.permute.xlu0 %4303
        %4306 = vset.pattern.permute.xlu0 6
        %4307 = vperm.xlu0 %4306, %v851
        %v4308 = vpop.permute.xlu0 %4307
        %4310 = vset.pattern.permute.xlu0 6
        %4311 = vperm.xlu0 %4310, %v852
        %v4312 = vpop.permute.xlu0 %4311
        %4314 = vset.pattern.permute.xlu0 6
        %4315 = vperm.xlu0 %4314, %v853
        %v4316 = vpop.permute.xlu0 %4315
        %4318 = vset.pattern.permute.xlu0 6
        %4319 = vperm.xlu0 %4318, %v854
        %v4320 = vpop.permute.xlu0 %4319
        %4322 = vset.pattern.permute.xlu0 6
        %4323 = vperm.xlu0 %4322, %v855
        %v4324 = vpop.permute.xlu0 %4323
        %4326 = vset.pattern.permute.xlu0 6
        %4327 = vperm.xlu0 %4326, %v856
        %v4328 = vpop.permute.xlu0 %4327
        %4330 = vset.pattern.permute.xlu0 6
        %4331 = vperm.xlu0 %4330, %v857
        %v4332 = vpop.permute.xlu0 %4331
        %4334 = vset.pattern.permute.xlu0 6
        %4335 = vperm.xlu0 %4334, %v858
        %v4336 = vpop.permute.xlu0 %4335
        %4338 = vset.pattern.permute.xlu0 6
        %4339 = vperm.xlu0 %4338, %v859
        %v4340 = vpop.permute.xlu0 %4339
        %4342 = vset.pattern.permute.xlu0 6
        %4343 = vperm.xlu0 %4342, %v860
        %v4344 = vpop.permute.xlu0 %4343
        %4346 = vset.pattern.permute.xlu0 6
        %4347 = vperm.xlu0 %4346, %v861
        %v4348 = vpop.permute.xlu0 %4347
        %v4350 = vadd.f32 %v814, %v4288
        %v4351 = vadd.f32 %v815, %v4288
        %v4352 = vadd.f32 %v816, %v4292
        %v4353 = vadd.f32 %v817, %v4292
        %v4354 = vadd.f32 %v818, %v4296
        %v4355 = vadd.f32 %v819, %v4296
        %v4356 = vadd.f32 %v820, %v4300
        %v4357 = vadd.f32 %v821, %v4300
        %v4358 = vadd.f32 %v822, %v4304
        %v4359 = vadd.f32 %v823, %v4304
        %v4360 = vadd.f32 %v824, %v4308
        %v4361 = vadd.f32 %v825, %v4308
        %v4362 = vadd.f32 %v826, %v4312
        %v4363 = vadd.f32 %v827, %v4312
        %v4364 = vadd.f32 %v828, %v4316
        %v4365 = vadd.f32 %v829, %v4316
        %v4366 = vadd.f32 %v830, %v4320
        %v4367 = vadd.f32 %v831, %v4320
        %v4368 = vadd.f32 %v832, %v4324
        %v4369 = vadd.f32 %v833, %v4324
        %v4370 = vadd.f32 %v834, %v4328
        %v4371 = vadd.f32 %v835, %v4328
        %v4372 = vadd.f32 %v836, %v4332
        %v4373 = vadd.f32 %v837, %v4332
        %v4374 = vadd.f32 %v838, %v4336
        %v4375 = vadd.f32 %v839, %v4336
        %v4376 = vadd.f32 %v840, %v4340
        %v4377 = vadd.f32 %v841, %v4340
        %v4378 = vadd.f32 %v842, %v4344
        %v4379 = vadd.f32 %v843, %v4344
        %v4380 = vadd.f32 %v844, %v4348
        %v4381 = vadd.f32 %v845, %v4348
        %v4382 = vmin.f32 %v4350, %v4354
        %v4383 = vmin.f32 %v4352, %v4356
        %v4384 = vmin.f32 %v4382, %v4358
        %v4385 = vmin.f32 %v4383, %v4360
        %v4386 = vmin.f32 %v4384, %v4362
        %v4387 = vmin.f32 %v4385, %v4364
        %v4388 = vmin.f32 %v4386, %v4366
        %v4389 = vmin.f32 %v4387, %v4368
        %v4390 = vmin.f32 %v4388, %v4370
        %v4391 = vmin.f32 %v4389, %v4372
        %v4392 = vmin.f32 %v4390, %v4374
        %v4393 = vmin.f32 %v4391, %v4376
        %v4394 = vmin.f32 %v4392, %v4378
        %v4395 = vmin.f32 %v4393, %v4380
        %v4396 = vmin.f32 %v4394, %v4395
        %v4397 = vrot.slane %v4396, 4
        %v4398 = vmin.f32 %v4396, %v4397
        %v4399 = vrot.slane %v4398, 2
        %v4400 = vmin.f32 %v4398, %v4399
        %v4401 = vrot.slane %v4400, 1
        %v4402 = vmin.f32 %v4400, %v4401
        %v4403 = vmin.f32 %v4351, %v4355
        %v4404 = vmin.f32 %v4353, %v4357
        %v4405 = vmin.f32 %v4403, %v4359
        %v4406 = vmin.f32 %v4404, %v4361
        %v4407 = vmin.f32 %v4405, %v4363
        %v4408 = vmin.f32 %v4406, %v4365
        %v4409 = vmin.f32 %v4407, %v4367
        %v4410 = vmin.f32 %v4408, %v4369
        %v4411 = vmin.f32 %v4409, %v4371
        %v4412 = vmin.f32 %v4410, %v4373
        %v4413 = vmin.f32 %v4411, %v4375
        %v4414 = vmin.f32 %v4412, %v4377
        %v4415 = vmin.f32 %v4413, %v4379
        %v4416 = vmin.f32 %v4414, %v4381
        %v4417 = vmin.f32 %v4415, %v4416
        %v4418 = vrot.slane %v4417, 4
        %v4419 = vmin.f32 %v4417, %v4418
        %v4420 = vrot.slane %v4419, 2
        %v4421 = vmin.f32 %v4419, %v4420
        %v4422 = vrot.slane %v4421, 1
        %v4423 = vmin.f32 %v4421, %v4422
        %4424 = vset.pattern.permute.xlu0 6
        %4425 = vperm.xlu0 %4424, %v862
        %v4426 = vpop.permute.xlu0 %4425
        %4428 = vset.pattern.permute.xlu0 6
        %4429 = vperm.xlu0 %4428, %v863
        %v4430 = vpop.permute.xlu0 %4429
        %4432 = vset.pattern.permute.xlu0 6
        %4433 = vperm.xlu0 %4432, %v864
        %v4434 = vpop.permute.xlu0 %4433
        %4436 = vset.pattern.permute.xlu0 6
        %4437 = vperm.xlu0 %4436, %v865
        %v4438 = vpop.permute.xlu0 %4437
        %4440 = vset.pattern.permute.xlu0 6
        %4441 = vperm.xlu0 %4440, %v866
        %v4442 = vpop.permute.xlu0 %4441
        %4444 = vset.pattern.permute.xlu0 6
        %4445 = vperm.xlu0 %4444, %v867
        %v4446 = vpop.permute.xlu0 %4445
        %4448 = vset.pattern.permute.xlu0 6
        %4449 = vperm.xlu0 %4448, %v868
        %v4450 = vpop.permute.xlu0 %4449
        %4452 = vset.pattern.permute.xlu0 6
        %4453 = vperm.xlu0 %4452, %v869
        %v4454 = vpop.permute.xlu0 %4453
        %4456 = vset.pattern.permute.xlu0 6
        %4457 = vperm.xlu0 %4456, %v870
        %v4458 = vpop.permute.xlu0 %4457
        %4460 = vset.pattern.permute.xlu0 6
        %4461 = vperm.xlu0 %4460, %v871
        %v4462 = vpop.permute.xlu0 %4461
        %4464 = vset.pattern.permute.xlu0 6
        %4465 = vperm.xlu0 %4464, %v872
        %v4466 = vpop.permute.xlu0 %4465
        %4468 = vset.pattern.permute.xlu0 6
        %4469 = vperm.xlu0 %4468, %v873
        %v4470 = vpop.permute.xlu0 %4469
        %4472 = vset.pattern.permute.xlu0 6
        %4473 = vperm.xlu0 %4472, %v874
        %v4474 = vpop.permute.xlu0 %4473
        %4476 = vset.pattern.permute.xlu0 6
        %4477 = vperm.xlu0 %4476, %v875
        %v4478 = vpop.permute.xlu0 %4477
        %4480 = vset.pattern.permute.xlu0 6
        %4481 = vperm.xlu0 %4480, %v876
        %v4482 = vpop.permute.xlu0 %4481
        %4484 = vset.pattern.permute.xlu0 6
        %4485 = vperm.xlu0 %4484, %v877
        %v4486 = vpop.permute.xlu0 %4485
        %v4488 = vadd.f32 %v814, %v4426
        %v4489 = vadd.f32 %v815, %v4426
        %v4490 = vadd.f32 %v816, %v4430
        %v4491 = vadd.f32 %v817, %v4430
        %v4492 = vadd.f32 %v818, %v4434
        %v4493 = vadd.f32 %v819, %v4434
        %v4494 = vadd.f32 %v820, %v4438
        %v4495 = vadd.f32 %v821, %v4438
        %v4496 = vadd.f32 %v822, %v4442
        %v4497 = vadd.f32 %v823, %v4442
        %v4498 = vadd.f32 %v824, %v4446
        %v4499 = vadd.f32 %v825, %v4446
        %v4500 = vadd.f32 %v826, %v4450
        %v4501 = vadd.f32 %v827, %v4450
        %v4502 = vadd.f32 %v828, %v4454
        %v4503 = vadd.f32 %v829, %v4454
        %v4504 = vadd.f32 %v830, %v4458
        %v4505 = vadd.f32 %v831, %v4458
        %v4506 = vadd.f32 %v832, %v4462
        %v4507 = vadd.f32 %v833, %v4462
        %v4508 = vadd.f32 %v834, %v4466
        %v4509 = vadd.f32 %v835, %v4466
        %v4510 = vadd.f32 %v836, %v4470
        %v4511 = vadd.f32 %v837, %v4470
        %v4512 = vadd.f32 %v838, %v4474
        %v4513 = vadd.f32 %v839, %v4474
        %v4514 = vadd.f32 %v840, %v4478
        %v4515 = vadd.f32 %v841, %v4478
        %v4516 = vadd.f32 %v842, %v4482
        %v4517 = vadd.f32 %v843, %v4482
        %v4518 = vadd.f32 %v844, %v4486
        %v4519 = vadd.f32 %v845, %v4486
        %v4520 = vmin.f32 %v4488, %v4492
        %v4521 = vmin.f32 %v4490, %v4494
        %v4522 = vmin.f32 %v4520, %v4496
        %v4523 = vmin.f32 %v4521, %v4498
        %v4524 = vmin.f32 %v4522, %v4500
        %v4525 = vmin.f32 %v4523, %v4502
        %v4526 = vmin.f32 %v4524, %v4504
        %v4527 = vmin.f32 %v4525, %v4506
        %v4528 = vmin.f32 %v4526, %v4508
        %v4529 = vmin.f32 %v4527, %v4510
        %v4530 = vmin.f32 %v4528, %v4512
        %v4531 = vmin.f32 %v4529, %v4514
        %v4532 = vmin.f32 %v4530, %v4516
        %v4533 = vmin.f32 %v4531, %v4518
        %v4534 = vmin.f32 %v4532, %v4533
        %v4535 = vrot.slane %v4534, 4
        %v4536 = vmin.f32 %v4534, %v4535
        %v4537 = vrot.slane %v4536, 2
        %v4538 = vmin.f32 %v4536, %v4537
        %v4539 = vrot.slane %v4538, 1
        %v4540 = vmin.f32 %v4538, %v4539
        %v4541 = vmin.f32 %v4489, %v4493
        %v4542 = vmin.f32 %v4491, %v4495
        %v4543 = vmin.f32 %v4541, %v4497
        %v4544 = vmin.f32 %v4542, %v4499
        %v4545 = vmin.f32 %v4543, %v4501
        %v4546 = vmin.f32 %v4544, %v4503
        %v4547 = vmin.f32 %v4545, %v4505
        %v4548 = vmin.f32 %v4546, %v4507
        %v4549 = vmin.f32 %v4547, %v4509
        %v4550 = vmin.f32 %v4548, %v4511
        %v4551 = vmin.f32 %v4549, %v4513
        %v4552 = vmin.f32 %v4550, %v4515
        %v4553 = vmin.f32 %v4551, %v4517
        %v4554 = vmin.f32 %v4552, %v4519
        %v4555 = vmin.f32 %v4553, %v4554
        %v4556 = vrot.slane %v4555, 4
        %v4557 = vmin.f32 %v4555, %v4556
        %v4558 = vrot.slane %v4557, 2
        %v4559 = vmin.f32 %v4557, %v4558
        %v4560 = vrot.slane %v4559, 1
        %v4561 = vmin.f32 %v4559, %v4560
        %4562 = vset.pattern.permute.xlu0 6
        %4563 = vperm.xlu0 %4562, %v878
        %v4564 = vpop.permute.xlu0 %4563
        %4566 = vset.pattern.permute.xlu0 6
        %4567 = vperm.xlu0 %4566, %v879
        %v4568 = vpop.permute.xlu0 %4567
        %4570 = vset.pattern.permute.xlu0 6
        %4571 = vperm.xlu0 %4570, %v880
        %v4572 = vpop.permute.xlu0 %4571
        %4574 = vset.pattern.permute.xlu0 6
        %4575 = vperm.xlu0 %4574, %v881
        %v4576 = vpop.permute.xlu0 %4575
        %4578 = vset.pattern.permute.xlu0 6
        %4579 = vperm.xlu0 %4578, %v882
        %v4580 = vpop.permute.xlu0 %4579
        %4582 = vset.pattern.permute.xlu0 6
        %4583 = vperm.xlu0 %4582, %v883
        %v4584 = vpop.permute.xlu0 %4583
        %4586 = vset.pattern.permute.xlu0 6
        %4587 = vperm.xlu0 %4586, %v884
        %v4588 = vpop.permute.xlu0 %4587
        %4590 = vset.pattern.permute.xlu0 6
        %4591 = vperm.xlu0 %4590, %v885
        %v4592 = vpop.permute.xlu0 %4591
        %4594 = vset.pattern.permute.xlu0 6
        %4595 = vperm.xlu0 %4594, %v886
        %v4596 = vpop.permute.xlu0 %4595
        %4598 = vset.pattern.permute.xlu0 6
        %4599 = vperm.xlu0 %4598, %v887
        %v4600 = vpop.permute.xlu0 %4599
        %4602 = vset.pattern.permute.xlu0 6
        %4603 = vperm.xlu0 %4602, %v888
        %v4604 = vpop.permute.xlu0 %4603
        %4606 = vset.pattern.permute.xlu0 6
        %4607 = vperm.xlu0 %4606, %v889
        %v4608 = vpop.permute.xlu0 %4607
        %4610 = vset.pattern.permute.xlu0 6
        %4611 = vperm.xlu0 %4610, %v890
        %v4612 = vpop.permute.xlu0 %4611
        %4614 = vset.pattern.permute.xlu0 6
        %4615 = vperm.xlu0 %4614, %v891
        %v4616 = vpop.permute.xlu0 %4615
        %4618 = vset.pattern.permute.xlu0 6
        %4619 = vperm.xlu0 %4618, %v892
        %v4620 = vpop.permute.xlu0 %4619
        %4622 = vset.pattern.permute.xlu0 6
        %4623 = vperm.xlu0 %4622, %v893
        %v4624 = vpop.permute.xlu0 %4623
        %v4626 = vadd.f32 %v814, %v4564
        %v4627 = vadd.f32 %v815, %v4564
        %v4628 = vadd.f32 %v816, %v4568
        %v4629 = vadd.f32 %v817, %v4568
        %v4630 = vadd.f32 %v818, %v4572
        %v4631 = vadd.f32 %v819, %v4572
        %v4632 = vadd.f32 %v820, %v4576
        %v4633 = vadd.f32 %v821, %v4576
        %v4634 = vadd.f32 %v822, %v4580
        %v4635 = vadd.f32 %v823, %v4580
        %v4636 = vadd.f32 %v824, %v4584
        %v4637 = vadd.f32 %v825, %v4584
        %v4638 = vadd.f32 %v826, %v4588
        %v4639 = vadd.f32 %v827, %v4588
        %v4640 = vadd.f32 %v828, %v4592
        %v4641 = vadd.f32 %v829, %v4592
        %v4642 = vadd.f32 %v830, %v4596
        %v4643 = vadd.f32 %v831, %v4596
        %v4644 = vadd.f32 %v832, %v4600
        %v4645 = vadd.f32 %v833, %v4600
        %v4646 = vadd.f32 %v834, %v4604
        %v4647 = vadd.f32 %v835, %v4604
        %v4648 = vadd.f32 %v836, %v4608
        %v4649 = vadd.f32 %v837, %v4608
        %v4650 = vadd.f32 %v838, %v4612
        %v4651 = vadd.f32 %v839, %v4612
        %v4652 = vadd.f32 %v840, %v4616
        %v4653 = vadd.f32 %v841, %v4616
        %v4654 = vadd.f32 %v842, %v4620
        %v4655 = vadd.f32 %v843, %v4620
        %v4656 = vadd.f32 %v844, %v4624
        %v4657 = vadd.f32 %v845, %v4624
        %v4658 = vmin.f32 %v4626, %v4630
        %v4659 = vmin.f32 %v4628, %v4632
        %v4660 = vmin.f32 %v4658, %v4634
        %v4661 = vmin.f32 %v4659, %v4636
        %v4662 = vmin.f32 %v4660, %v4638
        %v4663 = vmin.f32 %v4661, %v4640
        %v4664 = vmin.f32 %v4662, %v4642
        %v4665 = vmin.f32 %v4663, %v4644
        %v4666 = vmin.f32 %v4664, %v4646
        %v4667 = vmin.f32 %v4665, %v4648
        %v4668 = vmin.f32 %v4666, %v4650
        %v4669 = vmin.f32 %v4667, %v4652
        %v4670 = vmin.f32 %v4668, %v4654
        %v4671 = vmin.f32 %v4669, %v4656
        %v4672 = vmin.f32 %v4670, %v4671
        %v4673 = vrot.slane %v4672, 4
        %v4674 = vmin.f32 %v4672, %v4673
        %v4675 = vrot.slane %v4674, 2
        %v4676 = vmin.f32 %v4674, %v4675
        %v4677 = vrot.slane %v4676, 1
        %v4678 = vmin.f32 %v4676, %v4677
        %v4679 = vmin.f32 %v4627, %v4631
        %v4680 = vmin.f32 %v4629, %v4633
        %v4681 = vmin.f32 %v4679, %v4635
        %v4682 = vmin.f32 %v4680, %v4637
        %v4683 = vmin.f32 %v4681, %v4639
        %v4684 = vmin.f32 %v4682, %v4641
        %v4685 = vmin.f32 %v4683, %v4643
        %v4686 = vmin.f32 %v4684, %v4645
        %v4687 = vmin.f32 %v4685, %v4647
        %v4688 = vmin.f32 %v4686, %v4649
        %v4689 = vmin.f32 %v4687, %v4651
        %v4690 = vmin.f32 %v4688, %v4653
        %v4691 = vmin.f32 %v4689, %v4655
        %v4692 = vmin.f32 %v4690, %v4657
        %v4693 = vmin.f32 %v4691, %v4692
        %v4694 = vrot.slane %v4693, 4
        %v4695 = vmin.f32 %v4693, %v4694
        %v4696 = vrot.slane %v4695, 2
        %v4697 = vmin.f32 %v4695, %v4696
        %v4698 = vrot.slane %v4697, 1
        %v4699 = vmin.f32 %v4697, %v4698
        %4700 = vset.pattern.permute.xlu0 6
        %4701 = vperm.xlu0 %4700, %v894
        %v4702 = vpop.permute.xlu0 %4701
        %4704 = vset.pattern.permute.xlu0 6
        %4705 = vperm.xlu0 %4704, %v895
        %v4706 = vpop.permute.xlu0 %4705
        %4708 = vset.pattern.permute.xlu0 6
        %4709 = vperm.xlu0 %4708, %v896
        %v4710 = vpop.permute.xlu0 %4709
        %4712 = vset.pattern.permute.xlu0 6
        %4713 = vperm.xlu0 %4712, %v897
        %v4714 = vpop.permute.xlu0 %4713
        %4716 = vset.pattern.permute.xlu0 6
        %4717 = vperm.xlu0 %4716, %v898
        %v4718 = vpop.permute.xlu0 %4717
        %4720 = vset.pattern.permute.xlu0 6
        %4721 = vperm.xlu0 %4720, %v899
        %v4722 = vpop.permute.xlu0 %4721
        %4724 = vset.pattern.permute.xlu0 6
        %4725 = vperm.xlu0 %4724, %v900
        %v4726 = vpop.permute.xlu0 %4725
        %4728 = vset.pattern.permute.xlu0 6
        %4729 = vperm.xlu0 %4728, %v901
        %v4730 = vpop.permute.xlu0 %4729
        %4732 = vset.pattern.permute.xlu0 6
        %4733 = vperm.xlu0 %4732, %v902
        %v4734 = vpop.permute.xlu0 %4733
        %4736 = vset.pattern.permute.xlu0 6
        %4737 = vperm.xlu0 %4736, %v903
        %v4738 = vpop.permute.xlu0 %4737
        %4740 = vset.pattern.permute.xlu0 6
        %4741 = vperm.xlu0 %4740, %v904
        %v4742 = vpop.permute.xlu0 %4741
        %4744 = vset.pattern.permute.xlu0 6
        %4745 = vperm.xlu0 %4744, %v905
        %v4746 = vpop.permute.xlu0 %4745
        %4748 = vset.pattern.permute.xlu0 6
        %4749 = vperm.xlu0 %4748, %v906
        %v4750 = vpop.permute.xlu0 %4749
        %4752 = vset.pattern.permute.xlu0 6
        %4753 = vperm.xlu0 %4752, %v907
        %v4754 = vpop.permute.xlu0 %4753
        %4756 = vset.pattern.permute.xlu0 6
        %4757 = vperm.xlu0 %4756, %v908
        %v4758 = vpop.permute.xlu0 %4757
        %4760 = vset.pattern.permute.xlu0 6
        %4761 = vperm.xlu0 %4760, %v909
        %v4762 = vpop.permute.xlu0 %4761
        %v4764 = vadd.f32 %v814, %v4702
        %v4765 = vadd.f32 %v815, %v4702
        %v4766 = vadd.f32 %v816, %v4706
        %v4767 = vadd.f32 %v817, %v4706
        %v4768 = vadd.f32 %v818, %v4710
        %v4769 = vadd.f32 %v819, %v4710
        %v4770 = vadd.f32 %v820, %v4714
        %v4771 = vadd.f32 %v821, %v4714
        %v4772 = vadd.f32 %v822, %v4718
        %v4773 = vadd.f32 %v823, %v4718
        %v4774 = vadd.f32 %v824, %v4722
        %v4775 = vadd.f32 %v825, %v4722
        %v4776 = vadd.f32 %v826, %v4726
        %v4777 = vadd.f32 %v827, %v4726
        %v4778 = vadd.f32 %v828, %v4730
        %v4779 = vadd.f32 %v829, %v4730
        %v4780 = vadd.f32 %v830, %v4734
        %v4781 = vadd.f32 %v831, %v4734
        %v4782 = vadd.f32 %v832, %v4738
        %v4783 = vadd.f32 %v833, %v4738
        %v4784 = vadd.f32 %v834, %v4742
        %v4785 = vadd.f32 %v835, %v4742
        %v4786 = vadd.f32 %v836, %v4746
        %v4787 = vadd.f32 %v837, %v4746
        %v4788 = vadd.f32 %v838, %v4750
        %v4789 = vadd.f32 %v839, %v4750
        %v4790 = vadd.f32 %v840, %v4754
        %v4791 = vadd.f32 %v841, %v4754
        %v4792 = vadd.f32 %v842, %v4758
        %v4793 = vadd.f32 %v843, %v4758
        %v4794 = vadd.f32 %v844, %v4762
        %v4795 = vadd.f32 %v845, %v4762
        %v4796 = vmin.f32 %v4764, %v4768
        %v4797 = vmin.f32 %v4766, %v4770
        %v4798 = vmin.f32 %v4796, %v4772
        %v4799 = vmin.f32 %v4797, %v4774
        %v4800 = vmin.f32 %v4798, %v4776
        %v4801 = vmin.f32 %v4799, %v4778
        %v4802 = vmin.f32 %v4800, %v4780
        %v4803 = vmin.f32 %v4801, %v4782
        %v4804 = vmin.f32 %v4802, %v4784
        %v4805 = vmin.f32 %v4803, %v4786
        %v4806 = vmin.f32 %v4804, %v4788
        %v4807 = vmin.f32 %v4805, %v4790
        %v4808 = vmin.f32 %v4806, %v4792
        %v4809 = vmin.f32 %v4807, %v4794
        %v4810 = vmin.f32 %v4808, %v4809
        %v4811 = vrot.slane %v4810, 4
        %v4812 = vmin.f32 %v4810, %v4811
        %v4813 = vrot.slane %v4812, 2
        %v4814 = vmin.f32 %v4812, %v4813
        %v4815 = vrot.slane %v4814, 1
        %v4816 = vmin.f32 %v4814, %v4815
        %v4817 = vmin.f32 %v4765, %v4769
        %v4818 = vmin.f32 %v4767, %v4771
        %v4819 = vmin.f32 %v4817, %v4773
        %v4820 = vmin.f32 %v4818, %v4775
        %v4821 = vmin.f32 %v4819, %v4777
        %v4822 = vmin.f32 %v4820, %v4779
        %v4823 = vmin.f32 %v4821, %v4781
        %v4824 = vmin.f32 %v4822, %v4783
        %v4825 = vmin.f32 %v4823, %v4785
        %v4826 = vmin.f32 %v4824, %v4787
        %v4827 = vmin.f32 %v4825, %v4789
        %v4828 = vmin.f32 %v4826, %v4791
        %v4829 = vmin.f32 %v4827, %v4793
        %v4830 = vmin.f32 %v4828, %v4795
        %v4831 = vmin.f32 %v4829, %v4830
        %v4832 = vrot.slane %v4831, 4
        %v4833 = vmin.f32 %v4831, %v4832
        %v4834 = vrot.slane %v4833, 2
        %v4835 = vmin.f32 %v4833, %v4834
        %v4836 = vrot.slane %v4835, 1
        %v4837 = vmin.f32 %v4835, %v4836
        %4838 = vset.pattern.permute.xlu0 7
        %4839 = vperm.xlu0 %4838, %v846
        %v4840 = vpop.permute.xlu0 %4839
        %4842 = vset.pattern.permute.xlu0 7
        %4843 = vperm.xlu0 %4842, %v847
        %v4844 = vpop.permute.xlu0 %4843
        %4846 = vset.pattern.permute.xlu0 7
        %4847 = vperm.xlu0 %4846, %v848
        %v4848 = vpop.permute.xlu0 %4847
        %4850 = vset.pattern.permute.xlu0 7
        %4851 = vperm.xlu0 %4850, %v849
        %v4852 = vpop.permute.xlu0 %4851
        %4854 = vset.pattern.permute.xlu0 7
        %4855 = vperm.xlu0 %4854, %v850
        %v4856 = vpop.permute.xlu0 %4855
        %4858 = vset.pattern.permute.xlu0 7
        %4859 = vperm.xlu0 %4858, %v851
        %v4860 = vpop.permute.xlu0 %4859
        %4862 = vset.pattern.permute.xlu0 7
        %4863 = vperm.xlu0 %4862, %v852
        %v4864 = vpop.permute.xlu0 %4863
        %4866 = vset.pattern.permute.xlu0 7
        %4867 = vperm.xlu0 %4866, %v853
        %v4868 = vpop.permute.xlu0 %4867
        %4870 = vset.pattern.permute.xlu0 7
        %4871 = vperm.xlu0 %4870, %v854
        %v4872 = vpop.permute.xlu0 %4871
        %4874 = vset.pattern.permute.xlu0 7
        %4875 = vperm.xlu0 %4874, %v855
        %v4876 = vpop.permute.xlu0 %4875
        %4878 = vset.pattern.permute.xlu0 7
        %4879 = vperm.xlu0 %4878, %v856
        %v4880 = vpop.permute.xlu0 %4879
        %4882 = vset.pattern.permute.xlu0 7
        %4883 = vperm.xlu0 %4882, %v857
        %v4884 = vpop.permute.xlu0 %4883
        %4886 = vset.pattern.permute.xlu0 7
        %4887 = vperm.xlu0 %4886, %v858
        %v4888 = vpop.permute.xlu0 %4887
        %4890 = vset.pattern.permute.xlu0 7
        %4891 = vperm.xlu0 %4890, %v859
        %v4892 = vpop.permute.xlu0 %4891
        %4894 = vset.pattern.permute.xlu0 7
        %4895 = vperm.xlu0 %4894, %v860
        %v4896 = vpop.permute.xlu0 %4895
        %4898 = vset.pattern.permute.xlu0 7
        %4899 = vperm.xlu0 %4898, %v861
        %v4900 = vpop.permute.xlu0 %4899
        %v4902 = vadd.f32 %v814, %v4840
        %v4903 = vadd.f32 %v815, %v4840
        %v4904 = vadd.f32 %v816, %v4844
        %v4905 = vadd.f32 %v817, %v4844
        %v4906 = vadd.f32 %v818, %v4848
        %v4907 = vadd.f32 %v819, %v4848
        %v4908 = vadd.f32 %v820, %v4852
        %v4909 = vadd.f32 %v821, %v4852
        %v4910 = vadd.f32 %v822, %v4856
        %v4911 = vadd.f32 %v823, %v4856
        %v4912 = vadd.f32 %v824, %v4860
        %v4913 = vadd.f32 %v825, %v4860
        %v4914 = vadd.f32 %v826, %v4864
        %v4915 = vadd.f32 %v827, %v4864
        %v4916 = vadd.f32 %v828, %v4868
        %v4917 = vadd.f32 %v829, %v4868
        %v4918 = vadd.f32 %v830, %v4872
        %v4919 = vadd.f32 %v831, %v4872
        %v4920 = vadd.f32 %v832, %v4876
        %v4921 = vadd.f32 %v833, %v4876
        %v4922 = vadd.f32 %v834, %v4880
        %v4923 = vadd.f32 %v835, %v4880
        %v4924 = vadd.f32 %v836, %v4884
        %v4925 = vadd.f32 %v837, %v4884
        %v4926 = vadd.f32 %v838, %v4888
        %v4927 = vadd.f32 %v839, %v4888
        %v4928 = vadd.f32 %v840, %v4892
        %v4929 = vadd.f32 %v841, %v4892
        %v4930 = vadd.f32 %v842, %v4896
        %v4931 = vadd.f32 %v843, %v4896
        %v4932 = vadd.f32 %v844, %v4900
        %v4933 = vadd.f32 %v845, %v4900
        %v4934 = vmin.f32 %v4902, %v4906
        %v4935 = vmin.f32 %v4904, %v4908
        %v4936 = vmin.f32 %v4934, %v4910
        %v4937 = vmin.f32 %v4935, %v4912
        %v4938 = vmin.f32 %v4936, %v4914
        %v4939 = vmin.f32 %v4937, %v4916
        %v4940 = vmin.f32 %v4938, %v4918
        %v4941 = vmin.f32 %v4939, %v4920
        %v4942 = vmin.f32 %v4940, %v4922
        %v4943 = vmin.f32 %v4941, %v4924
        %v4944 = vmin.f32 %v4942, %v4926
        %v4945 = vmin.f32 %v4943, %v4928
        %v4946 = vmin.f32 %v4944, %v4930
        %v4947 = vmin.f32 %v4945, %v4932
        %v4948 = vmin.f32 %v4946, %v4947
        %v4949 = vrot.slane %v4948, 4
        %v4950 = vmin.f32 %v4948, %v4949
        %v4951 = vrot.slane %v4950, 2
        %v4952 = vmin.f32 %v4950, %v4951
        %v4953 = vrot.slane %v4952, 1
        %v4954 = vmin.f32 %v4952, %v4953
        %v4955 = vmin.f32 %v4903, %v4907
        %v4956 = vmin.f32 %v4905, %v4909
        %v4957 = vmin.f32 %v4955, %v4911
        %v4958 = vmin.f32 %v4956, %v4913
        %v4959 = vmin.f32 %v4957, %v4915
        %v4960 = vmin.f32 %v4958, %v4917
        %v4961 = vmin.f32 %v4959, %v4919
        %v4962 = vmin.f32 %v4960, %v4921
        %v4963 = vmin.f32 %v4961, %v4923
        %v4964 = vmin.f32 %v4962, %v4925
        %v4965 = vmin.f32 %v4963, %v4927
        %v4966 = vmin.f32 %v4964, %v4929
        %v4967 = vmin.f32 %v4965, %v4931
        %v4968 = vmin.f32 %v4966, %v4933
        %v4969 = vmin.f32 %v4967, %v4968
        %v4970 = vrot.slane %v4969, 4
        %v4971 = vmin.f32 %v4969, %v4970
        %v4972 = vrot.slane %v4971, 2
        %v4973 = vmin.f32 %v4971, %v4972
        %v4974 = vrot.slane %v4973, 1
        %v4975 = vmin.f32 %v4973, %v4974
        %4976 = vset.pattern.permute.xlu0 7
        %4977 = vperm.xlu0 %4976, %v862
        %v4978 = vpop.permute.xlu0 %4977
        %4980 = vset.pattern.permute.xlu0 7
        %4981 = vperm.xlu0 %4980, %v863
        %v4982 = vpop.permute.xlu0 %4981
        %4984 = vset.pattern.permute.xlu0 7
        %4985 = vperm.xlu0 %4984, %v864
        %v4986 = vpop.permute.xlu0 %4985
        %4988 = vset.pattern.permute.xlu0 7
        %4989 = vperm.xlu0 %4988, %v865
        %v4990 = vpop.permute.xlu0 %4989
        %4992 = vset.pattern.permute.xlu0 7
        %4993 = vperm.xlu0 %4992, %v866
        %v4994 = vpop.permute.xlu0 %4993
        %4996 = vset.pattern.permute.xlu0 7
        %4997 = vperm.xlu0 %4996, %v867
        %v4998 = vpop.permute.xlu0 %4997
        %5000 = vset.pattern.permute.xlu0 7
        %5001 = vperm.xlu0 %5000, %v868
        %v5002 = vpop.permute.xlu0 %5001
        %5004 = vset.pattern.permute.xlu0 7
        %5005 = vperm.xlu0 %5004, %v869
        %v5006 = vpop.permute.xlu0 %5005
        %5008 = vset.pattern.permute.xlu0 7
        %5009 = vperm.xlu0 %5008, %v870
        %v5010 = vpop.permute.xlu0 %5009
        %5012 = vset.pattern.permute.xlu0 7
        %5013 = vperm.xlu0 %5012, %v871
        %v5014 = vpop.permute.xlu0 %5013
        %5016 = vset.pattern.permute.xlu0 7
        %5017 = vperm.xlu0 %5016, %v872
        %v5018 = vpop.permute.xlu0 %5017
        %5020 = vset.pattern.permute.xlu0 7
        %5021 = vperm.xlu0 %5020, %v873
        %v5022 = vpop.permute.xlu0 %5021
        %5024 = vset.pattern.permute.xlu0 7
        %5025 = vperm.xlu0 %5024, %v874
        %v5026 = vpop.permute.xlu0 %5025
        %5028 = vset.pattern.permute.xlu0 7
        %5029 = vperm.xlu0 %5028, %v875
        %v5030 = vpop.permute.xlu0 %5029
        %5032 = vset.pattern.permute.xlu0 7
        %5033 = vperm.xlu0 %5032, %v876
        %v5034 = vpop.permute.xlu0 %5033
        %5036 = vset.pattern.permute.xlu0 7
        %5037 = vperm.xlu0 %5036, %v877
        %v5038 = vpop.permute.xlu0 %5037
        %v5040 = vadd.f32 %v814, %v4978
        %v5041 = vadd.f32 %v815, %v4978
        %v5042 = vadd.f32 %v816, %v4982
        %v5043 = vadd.f32 %v817, %v4982
        %v5044 = vadd.f32 %v818, %v4986
        %v5045 = vadd.f32 %v819, %v4986
        %v5046 = vadd.f32 %v820, %v4990
        %v5047 = vadd.f32 %v821, %v4990
        %v5048 = vadd.f32 %v822, %v4994
        %v5049 = vadd.f32 %v823, %v4994
        %v5050 = vadd.f32 %v824, %v4998
        %v5051 = vadd.f32 %v825, %v4998
        %v5052 = vadd.f32 %v826, %v5002
        %v5053 = vadd.f32 %v827, %v5002
        %v5054 = vadd.f32 %v828, %v5006
        %v5055 = vadd.f32 %v829, %v5006
        %v5056 = vadd.f32 %v830, %v5010
        %v5057 = vadd.f32 %v831, %v5010
        %v5058 = vadd.f32 %v832, %v5014
        %v5059 = vadd.f32 %v833, %v5014
        %v5060 = vadd.f32 %v834, %v5018
        %v5061 = vadd.f32 %v835, %v5018
        %v5062 = vadd.f32 %v836, %v5022
        %v5063 = vadd.f32 %v837, %v5022
        %v5064 = vadd.f32 %v838, %v5026
        %v5065 = vadd.f32 %v839, %v5026
        %v5066 = vadd.f32 %v840, %v5030
        %v5067 = vadd.f32 %v841, %v5030
        %v5068 = vadd.f32 %v842, %v5034
        %v5069 = vadd.f32 %v843, %v5034
        %v5070 = vadd.f32 %v844, %v5038
        %v5071 = vadd.f32 %v845, %v5038
        %v5072 = vmin.f32 %v5040, %v5044
        %v5073 = vmin.f32 %v5042, %v5046
        %v5074 = vmin.f32 %v5072, %v5048
        %v5075 = vmin.f32 %v5073, %v5050
        %v5076 = vmin.f32 %v5074, %v5052
        %v5077 = vmin.f32 %v5075, %v5054
        %v5078 = vmin.f32 %v5076, %v5056
        %v5079 = vmin.f32 %v5077, %v5058
        %v5080 = vmin.f32 %v5078, %v5060
        %v5081 = vmin.f32 %v5079, %v5062
        %v5082 = vmin.f32 %v5080, %v5064
        %v5083 = vmin.f32 %v5081, %v5066
        %v5084 = vmin.f32 %v5082, %v5068
        %v5085 = vmin.f32 %v5083, %v5070
        %v5086 = vmin.f32 %v5084, %v5085
        %v5087 = vrot.slane %v5086, 4
        %v5088 = vmin.f32 %v5086, %v5087
        %v5089 = vrot.slane %v5088, 2
        %v5090 = vmin.f32 %v5088, %v5089
        %v5091 = vrot.slane %v5090, 1
        %v5092 = vmin.f32 %v5090, %v5091
        %v5093 = vmin.f32 %v5041, %v5045
        %v5094 = vmin.f32 %v5043, %v5047
        %v5095 = vmin.f32 %v5093, %v5049
        %v5096 = vmin.f32 %v5094, %v5051
        %v5097 = vmin.f32 %v5095, %v5053
        %v5098 = vmin.f32 %v5096, %v5055
        %v5099 = vmin.f32 %v5097, %v5057
        %v5100 = vmin.f32 %v5098, %v5059
        %v5101 = vmin.f32 %v5099, %v5061
        %v5102 = vmin.f32 %v5100, %v5063
        %v5103 = vmin.f32 %v5101, %v5065
        %v5104 = vmin.f32 %v5102, %v5067
        %v5105 = vmin.f32 %v5103, %v5069
        %v5106 = vmin.f32 %v5104, %v5071
        %v5107 = vmin.f32 %v5105, %v5106
        %v5108 = vrot.slane %v5107, 4
        %v5109 = vmin.f32 %v5107, %v5108
        %v5110 = vrot.slane %v5109, 2
        %v5111 = vmin.f32 %v5109, %v5110
        %v5112 = vrot.slane %v5111, 1
        %v5113 = vmin.f32 %v5111, %v5112
        %5114 = vset.pattern.permute.xlu0 7
        %5115 = vperm.xlu0 %5114, %v878
        %v5116 = vpop.permute.xlu0 %5115
        %5118 = vset.pattern.permute.xlu0 7
        %5119 = vperm.xlu0 %5118, %v879
        %v5120 = vpop.permute.xlu0 %5119
        %5122 = vset.pattern.permute.xlu0 7
        %5123 = vperm.xlu0 %5122, %v880
        %v5124 = vpop.permute.xlu0 %5123
        %5126 = vset.pattern.permute.xlu0 7
        %5127 = vperm.xlu0 %5126, %v881
        %v5128 = vpop.permute.xlu0 %5127
        %5130 = vset.pattern.permute.xlu0 7
        %5131 = vperm.xlu0 %5130, %v882
        %v5132 = vpop.permute.xlu0 %5131
        %5134 = vset.pattern.permute.xlu0 7
        %5135 = vperm.xlu0 %5134, %v883
        %v5136 = vpop.permute.xlu0 %5135
        %5138 = vset.pattern.permute.xlu0 7
        %5139 = vperm.xlu0 %5138, %v884
        %v5140 = vpop.permute.xlu0 %5139
        %5142 = vset.pattern.permute.xlu0 7
        %5143 = vperm.xlu0 %5142, %v885
        %v5144 = vpop.permute.xlu0 %5143
        %5146 = vset.pattern.permute.xlu0 7
        %5147 = vperm.xlu0 %5146, %v886
        %v5148 = vpop.permute.xlu0 %5147
        %5150 = vset.pattern.permute.xlu0 7
        %5151 = vperm.xlu0 %5150, %v887
        %v5152 = vpop.permute.xlu0 %5151
        %5154 = vset.pattern.permute.xlu0 7
        %5155 = vperm.xlu0 %5154, %v888
        %v5156 = vpop.permute.xlu0 %5155
        %5158 = vset.pattern.permute.xlu0 7
        %5159 = vperm.xlu0 %5158, %v889
        %v5160 = vpop.permute.xlu0 %5159
        %5162 = vset.pattern.permute.xlu0 7
        %5163 = vperm.xlu0 %5162, %v890
        %v5164 = vpop.permute.xlu0 %5163
        %5166 = vset.pattern.permute.xlu0 7
        %5167 = vperm.xlu0 %5166, %v891
        %v5168 = vpop.permute.xlu0 %5167
        %5170 = vset.pattern.permute.xlu0 7
        %5171 = vperm.xlu0 %5170, %v892
        %v5172 = vpop.permute.xlu0 %5171
        %5174 = vset.pattern.permute.xlu0 7
        %5175 = vperm.xlu0 %5174, %v893
        %v5176 = vpop.permute.xlu0 %5175
        %v5178 = vadd.f32 %v814, %v5116
        %v5179 = vadd.f32 %v815, %v5116
        %v5180 = vadd.f32 %v816, %v5120
        %v5181 = vadd.f32 %v817, %v5120
        %v5182 = vadd.f32 %v818, %v5124
        %v5183 = vadd.f32 %v819, %v5124
        %v5184 = vadd.f32 %v820, %v5128
        %v5185 = vadd.f32 %v821, %v5128
        %v5186 = vadd.f32 %v822, %v5132
        %v5187 = vadd.f32 %v823, %v5132
        %v5188 = vadd.f32 %v824, %v5136
        %v5189 = vadd.f32 %v825, %v5136
        %v5190 = vadd.f32 %v826, %v5140
        %v5191 = vadd.f32 %v827, %v5140
        %v5192 = vadd.f32 %v828, %v5144
        %v5193 = vadd.f32 %v829, %v5144
        %v5194 = vadd.f32 %v830, %v5148
        %v5195 = vadd.f32 %v831, %v5148
        %v5196 = vadd.f32 %v832, %v5152
        %v5197 = vadd.f32 %v833, %v5152
        %v5198 = vadd.f32 %v834, %v5156
        %v5199 = vadd.f32 %v835, %v5156
        %v5200 = vadd.f32 %v836, %v5160
        %v5201 = vadd.f32 %v837, %v5160
        %v5202 = vadd.f32 %v838, %v5164
        %v5203 = vadd.f32 %v839, %v5164
        %v5204 = vadd.f32 %v840, %v5168
        %v5205 = vadd.f32 %v841, %v5168
        %v5206 = vadd.f32 %v842, %v5172
        %v5207 = vadd.f32 %v843, %v5172
        %v5208 = vadd.f32 %v844, %v5176
        %v5209 = vadd.f32 %v845, %v5176
        %v5210 = vmin.f32 %v5178, %v5182
        %v5211 = vmin.f32 %v5180, %v5184
        %v5212 = vmin.f32 %v5210, %v5186
        %v5213 = vmin.f32 %v5211, %v5188
        %v5214 = vmin.f32 %v5212, %v5190
        %v5215 = vmin.f32 %v5213, %v5192
        %v5216 = vmin.f32 %v5214, %v5194
        %v5217 = vmin.f32 %v5215, %v5196
        %v5218 = vmin.f32 %v5216, %v5198
        %v5219 = vmin.f32 %v5217, %v5200
        %v5220 = vmin.f32 %v5218, %v5202
        %v5221 = vmin.f32 %v5219, %v5204
        %v5222 = vmin.f32 %v5220, %v5206
        %v5223 = vmin.f32 %v5221, %v5208
        %v5224 = vmin.f32 %v5222, %v5223
        %v5225 = vrot.slane %v5224, 4
        %v5226 = vmin.f32 %v5224, %v5225
        %v5227 = vrot.slane %v5226, 2
        %v5228 = vmin.f32 %v5226, %v5227
        %v5229 = vrot.slane %v5228, 1
        %v5230 = vmin.f32 %v5228, %v5229
        %v5231 = vmin.f32 %v5179, %v5183
        %v5232 = vmin.f32 %v5181, %v5185
        %v5233 = vmin.f32 %v5231, %v5187
        %v5234 = vmin.f32 %v5232, %v5189
        %v5235 = vmin.f32 %v5233, %v5191
        %v5236 = vmin.f32 %v5234, %v5193
        %v5237 = vmin.f32 %v5235, %v5195
        %v5238 = vmin.f32 %v5236, %v5197
        %v5239 = vmin.f32 %v5237, %v5199
        %v5240 = vmin.f32 %v5238, %v5201
        %v5241 = vmin.f32 %v5239, %v5203
        %v5242 = vmin.f32 %v5240, %v5205
        %v5243 = vmin.f32 %v5241, %v5207
        %v5244 = vmin.f32 %v5242, %v5209
        %v5245 = vmin.f32 %v5243, %v5244
        %v5246 = vrot.slane %v5245, 4
        %v5247 = vmin.f32 %v5245, %v5246
        %v5248 = vrot.slane %v5247, 2
        %v5249 = vmin.f32 %v5247, %v5248
        %v5250 = vrot.slane %v5249, 1
        %v5251 = vmin.f32 %v5249, %v5250
        %5252 = vset.pattern.permute.xlu0 7
        %5253 = vperm.xlu0 %5252, %v894
        %v5254 = vpop.permute.xlu0 %5253
        %5256 = vset.pattern.permute.xlu0 7
        %5257 = vperm.xlu0 %5256, %v895
        %v5258 = vpop.permute.xlu0 %5257
        %5260 = vset.pattern.permute.xlu0 7
        %5261 = vperm.xlu0 %5260, %v896
        %v5262 = vpop.permute.xlu0 %5261
        %5264 = vset.pattern.permute.xlu0 7
        %5265 = vperm.xlu0 %5264, %v897
        %v5266 = vpop.permute.xlu0 %5265
        %5268 = vset.pattern.permute.xlu0 7
        %5269 = vperm.xlu0 %5268, %v898
        %v5270 = vpop.permute.xlu0 %5269
        %5272 = vset.pattern.permute.xlu0 7
        %5273 = vperm.xlu0 %5272, %v899
        %v5274 = vpop.permute.xlu0 %5273
        %5276 = vset.pattern.permute.xlu0 7
        %5277 = vperm.xlu0 %5276, %v900
        %v5278 = vpop.permute.xlu0 %5277
        %5280 = vset.pattern.permute.xlu0 7
        %5281 = vperm.xlu0 %5280, %v901
        %v5282 = vpop.permute.xlu0 %5281
        %5284 = vset.pattern.permute.xlu0 7
        %5285 = vperm.xlu0 %5284, %v902
        %v5286 = vpop.permute.xlu0 %5285
        %5288 = vset.pattern.permute.xlu0 7
        %5289 = vperm.xlu0 %5288, %v903
        %v5290 = vpop.permute.xlu0 %5289
        %5292 = vset.pattern.permute.xlu0 7
        %5293 = vperm.xlu0 %5292, %v904
        %v5294 = vpop.permute.xlu0 %5293
        %5296 = vset.pattern.permute.xlu0 7
        %5297 = vperm.xlu0 %5296, %v905
        %v5298 = vpop.permute.xlu0 %5297
        %5300 = vset.pattern.permute.xlu0 7
        %5301 = vperm.xlu0 %5300, %v906
        %v5302 = vpop.permute.xlu0 %5301
        %5304 = vset.pattern.permute.xlu0 7
        %5305 = vperm.xlu0 %5304, %v907
        %v5306 = vpop.permute.xlu0 %5305
        %5308 = vset.pattern.permute.xlu0 7
        %5309 = vperm.xlu0 %5308, %v908
        %v5310 = vpop.permute.xlu0 %5309
        %5312 = vset.pattern.permute.xlu0 7
        %5313 = vperm.xlu0 %5312, %v909
        %v5314 = vpop.permute.xlu0 %5313
        %v5316 = vadd.f32 %v814, %v5254
        %v5317 = vadd.f32 %v815, %v5254
        %v5318 = vadd.f32 %v816, %v5258
        %v5319 = vadd.f32 %v817, %v5258
        %v5320 = vadd.f32 %v818, %v5262
        %v5321 = vadd.f32 %v819, %v5262
        %v5322 = vadd.f32 %v820, %v5266
        %v5323 = vadd.f32 %v821, %v5266
        %v5324 = vadd.f32 %v822, %v5270
        %v5325 = vadd.f32 %v823, %v5270
        %v5326 = vadd.f32 %v824, %v5274
        %v5327 = vadd.f32 %v825, %v5274
        %v5328 = vadd.f32 %v826, %v5278
        %v5329 = vadd.f32 %v827, %v5278
        %v5330 = vadd.f32 %v828, %v5282
        %v5331 = vadd.f32 %v829, %v5282
        %v5332 = vadd.f32 %v830, %v5286
        %v5333 = vadd.f32 %v831, %v5286
        %v5334 = vadd.f32 %v832, %v5290
        %v5335 = vadd.f32 %v833, %v5290
        %v5336 = vadd.f32 %v834, %v5294
        %v5337 = vadd.f32 %v835, %v5294
        %v5338 = vadd.f32 %v836, %v5298
        %v5339 = vadd.f32 %v837, %v5298
        %v5340 = vadd.f32 %v838, %v5302
        %v5341 = vadd.f32 %v839, %v5302
        %v5342 = vadd.f32 %v840, %v5306
        %v5343 = vadd.f32 %v841, %v5306
        %v5344 = vadd.f32 %v842, %v5310
        %v5345 = vadd.f32 %v843, %v5310
        %v5346 = vadd.f32 %v844, %v5314
        %v5347 = vadd.f32 %v845, %v5314
        %v5348 = vmin.f32 %v5316, %v5320
        %v5349 = vmin.f32 %v5318, %v5322
        %v5350 = vmin.f32 %v5348, %v5324
        %v5351 = vmin.f32 %v5349, %v5326
        %v5352 = vmin.f32 %v5350, %v5328
        %v5353 = vmin.f32 %v5351, %v5330
        %v5354 = vmin.f32 %v5352, %v5332
        %v5355 = vmin.f32 %v5353, %v5334
        %v5356 = vmin.f32 %v5354, %v5336
        %v5357 = vmin.f32 %v5355, %v5338
        %v5358 = vmin.f32 %v5356, %v5340
        %v5359 = vmin.f32 %v5357, %v5342
        %v5360 = vmin.f32 %v5358, %v5344
        %v5361 = vmin.f32 %v5359, %v5346
        %v5362 = vmin.f32 %v5360, %v5361
        %v5363 = vrot.slane %v5362, 4
        %v5364 = vmin.f32 %v5362, %v5363
        %v5365 = vrot.slane %v5364, 2
        %v5366 = vmin.f32 %v5364, %v5365
        %v5367 = vrot.slane %v5366, 1
        %v5368 = vmin.f32 %v5366, %v5367
        %v5369 = vmin.f32 %v5317, %v5321
        %v5370 = vmin.f32 %v5319, %v5323
        %v5371 = vmin.f32 %v5369, %v5325
        %v5372 = vmin.f32 %v5370, %v5327
        %v5373 = vmin.f32 %v5371, %v5329
        %v5374 = vmin.f32 %v5372, %v5331
        %v5375 = vmin.f32 %v5373, %v5333
        %v5376 = vmin.f32 %v5374, %v5335
        %v5377 = vmin.f32 %v5375, %v5337
        %v5378 = vmin.f32 %v5376, %v5339
        %v5379 = vmin.f32 %v5377, %v5341
        %v5380 = vmin.f32 %v5378, %v5343
        %v5381 = vmin.f32 %v5379, %v5345
        %v5382 = vmin.f32 %v5380, %v5347
        %v5383 = vmin.f32 %v5381, %v5382
        %v5384 = vrot.slane %v5383, 4
        %v5385 = vmin.f32 %v5383, %v5384
        %v5386 = vrot.slane %v5385, 2
        %v5387 = vmin.f32 %v5385, %v5386
        %v5388 = vrot.slane %v5387, 1
        %v5389 = vmin.f32 %v5387, %v5388
        %v5390 = vld [vmem:[#allocation2] sm:$0xff]
        %v5391 = vld [vmem:[#allocation2 + $0x8] sm:$0xff]
        %vm5392 = vcmask 1040384
        %v5393 = vsel %vm5392, %v1042, %v1642
        %v5394 = vsel %vm5392, %v1063, %v1663
        %vm5395 = vcmask 1041408
        %v5396 = vsel %vm5395, %v5393, %v2194
        %v5397 = vsel %vm5395, %v5394, %v2215
        %vm5398 = vcmask 1042432
        %v5399 = vsel %vm5398, %v5396, %v2746
        %v5400 = vsel %vm5398, %v5397, %v2767
        %vm5401 = vcmask 1043456
        %v5402 = vsel %vm5401, %v5399, %v3298
        %v5403 = vsel %vm5401, %v5400, %v3319
        %vm5404 = vcmask 1044480
        %v5405 = vsel %vm5404, %v5402, %v3850
        %v5406 = vsel %vm5404, %v5403, %v3871
        %vm5407 = vcmask 1045504
        %v5408 = vsel %vm5407, %v5405, %v4402
        %v5409 = vsel %vm5407, %v5406, %v4423
        %vm5410 = vcmask 1046528
        %v5411 = vsel %vm5410, %v5408, %v4954
        %v5412 = vsel %vm5410, %v5409, %v4975
        %v5413 = vmin.f32 %v5390, %v5411
        %v5414 = vmin.f32 %v5391, %v5412
        %5415 = vst [vmem:[#allocation2] sm:$0xff] %v5413
        %5416 = vst [vmem:[#allocation2 + $0x8] sm:$0xff] %v5414
        %v5417 = vld [vmem:[#allocation3] sm:$0xff]
        %v5418 = vld [vmem:[#allocation3 + $0x8] sm:$0xff]
        %v5419 = vsel %vm5392, %v1196, %v1780
        %v5420 = vsel %vm5392, %v1217, %v1801
        %v5421 = vsel %vm5395, %v5419, %v2332
        %v5422 = vsel %vm5395, %v5420, %v2353
        %v5423 = vsel %vm5398, %v5421, %v2884
        %v5424 = vsel %vm5398, %v5422, %v2905
        %v5425 = vsel %vm5401, %v5423, %v3436
        %v5426 = vsel %vm5401, %v5424, %v3457
        %v5427 = vsel %vm5404, %v5425, %v3988
        %v5428 = vsel %vm5404, %v5426, %v4009
        %v5429 = vsel %vm5407, %v5427, %v4540
        %v5430 = vsel %vm5407, %v5428, %v4561
        %v5431 = vsel %vm5410, %v5429, %v5092
        %v5432 = vsel %vm5410, %v5430, %v5113
        %v5433 = vmin.f32 %v5417, %v5431
        %v5434 = vmin.f32 %v5418, %v5432
        %5435 = vst [vmem:[#allocation3] sm:$0xff] %v5433
        %5436 = vst [vmem:[#allocation3 + $0x8] sm:$0xff] %v5434
        %v5437 = vld [vmem:[#allocation4] sm:$0xff]
        %v5438 = vld [vmem:[#allocation4 + $0x8] sm:$0xff]
        %v5439 = vsel %vm5392, %v1350, %v1918
        %v5440 = vsel %vm5392, %v1371, %v1939
        %v5441 = vsel %vm5395, %v5439, %v2470
        %v5442 = vsel %vm5395, %v5440, %v2491
        %v5443 = vsel %vm5398, %v5441, %v3022
        %v5444 = vsel %vm5398, %v5442, %v3043
        %v5445 = vsel %vm5401, %v5443, %v3574
        %v5446 = vsel %vm5401, %v5444, %v3595
        %v5447 = vsel %vm5404, %v5445, %v4126
        %v5448 = vsel %vm5404, %v5446, %v4147
        %v5449 = vsel %vm5407, %v5447, %v4678
        %v5450 = vsel %vm5407, %v5448, %v4699
        %v5451 = vsel %vm5410, %v5449, %v5230
        %v5452 = vsel %vm5410, %v5450, %v5251
        %v5453 = vmin.f32 %v5437, %v5451
        %v5454 = vmin.f32 %v5438, %v5452
        %5455 = vst [vmem:[#allocation4] sm:$0xff] %v5453
        %5456 = vst [vmem:[#allocation4 + $0x8] sm:$0xff] %v5454
        %v5457 = vld [vmem:[#allocation5] sm:$0xff]
        %v5458 = vld [vmem:[#allocation5 + $0x8] sm:$0xff]
        %v5459 = vsel %vm5392, %v1504, %v2056
        %v5460 = vsel %vm5392, %v1525, %v2077
        %v5461 = vsel %vm5395, %v5459, %v2608
        %v5462 = vsel %vm5395, %v5460, %v2629
        %v5463 = vsel %vm5398, %v5461, %v3160
        %v5464 = vsel %vm5398, %v5462, %v3181
        %v5465 = vsel %vm5401, %v5463, %v3712
        %v5466 = vsel %vm5401, %v5464, %v3733
        %v5467 = vsel %vm5404, %v5465, %v4264
        %v5468 = vsel %vm5404, %v5466, %v4285
        %v5469 = vsel %vm5407, %v5467, %v4816
        %v5470 = vsel %vm5407, %v5468, %v4837
        %v5471 = vsel %vm5410, %v5469, %v5368
        %v5472 = vsel %vm5410, %v5470, %v5389
        %v5473 = vmin.f32 %v5457, %v5471
        %v5474 = vmin.f32 %v5458, %v5472
        %5475 = vst [vmem:[#allocation5] sm:$0xff] %v5473
        %5476 = vst [vmem:[#allocation5 + $0x8] sm:$0xff] %v5474
        %p5477 = scmp.eq.s32.totalorder %s26, 1
        // Predicated region
        $region53: #{tpu_custom_call.1} parent=47 // pred_check
          %p5478 = pneg %p5477
        $region54: #{tpu_custom_call.1} parent=47 // pred_check_branch
          %5480 = sbr.rel (%p5478) target = $region56
        $region55: #{tpu_custom_call.1} parent=47 // pred_region
          %v5481 = vld [vmem:[%s501] sm:$0xff]
          %v5482 = vld [vmem:[%s501 + $0x8] sm:$0xff]
          %v5483 = vld [vmem:[%s511] sm:$0xff]
          %v5484 = vld [vmem:[%s511 + $0x8] sm:$0xff]
          %v5485 = vld [vmem:[%s521] sm:$0xff]
          %v5486 = vld [vmem:[%s521 + $0x8] sm:$0xff]
          %vm5487 = vcmp.gt.f32.partialorder %v5481, 0.5
          %vm5488 = vcmp.gt.f32.partialorder %v5482, 0.5
          %v5489 = vsel %vm5487, 1, 0
          %v5490 = vsel %vm5488, 1, 0
          %v5491 = vcvt.s32.f32 %v5489
          %v5492 = vcvt.s32.f32 %v5490
          %v5493 = vld [vmem:[#allocation2] sm:$0xff]
          %v5494 = vld [vmem:[#allocation2 + $0x8] sm:$0xff]
          %vm5495 = vcmp.lt.f32.partialorder %v5493, 1e+08
          %vm5496 = vcmp.lt.f32.partialorder %v5494, 1e+08
          %v5497 = vsel %vm5495, %v5493, 0.0
          %v5498 = vsel %vm5496, %v5494, 0.0
          %v5499 = vmul.f32 %v5491, %v5497
          %v5500 = vmul.f32 %v5492, %v5498
          %v5501 = vsub.f32 1.0, %v5491
          %v5502 = vsub.f32 1.0, %v5492
          %v5503 = vld [vmem:[#allocation3] sm:$0xff]
          %v5504 = vld [vmem:[#allocation3 + $0x8] sm:$0xff]
          %vm5505 = vcmp.lt.f32.partialorder %v5503, 1e+08
          %vm5506 = vcmp.lt.f32.partialorder %v5504, 1e+08
          %v5507 = vsel %vm5505, %v5503, 0.0
          %v5508 = vsel %vm5506, %v5504, 0.0
          %v5509 = vmul.f32 %v5501, %v5507
          %v5510 = vmul.f32 %v5502, %v5508
          %v5511 = vadd.f32 %v5499, %v5509
          %v5512 = vadd.f32 %v5500, %v5510
          %v5513 = vld [vmem:[#allocation4] sm:$0xff]
          %v5514 = vld [vmem:[#allocation4 + $0x8] sm:$0xff]
          %vm5515 = vcmp.lt.f32.partialorder %v5513, 1e+08
          %vm5516 = vcmp.lt.f32.partialorder %v5514, 1e+08
          %v5517 = vsel %vm5515, %v5513, 0.0
          %v5518 = vsel %vm5516, %v5514, 0.0
          %v5519 = vmul.f32 %v5483, %v5517
          %v5520 = vmul.f32 %v5484, %v5518
          %v5521 = vsub.f32 1.0, %v5483
          %v5522 = vsub.f32 1.0, %v5484
          %v5523 = vld [vmem:[#allocation5] sm:$0xff]
          %v5524 = vld [vmem:[#allocation5 + $0x8] sm:$0xff]
          %vm5525 = vcmp.lt.f32.partialorder %v5523, 1e+08
          %vm5526 = vcmp.lt.f32.partialorder %v5524, 1e+08
          %v5527 = vsel %vm5525, %v5523, 0.0
          %v5528 = vsel %vm5526, %v5524, 0.0
          %v5529 = vmul.f32 %v5521, %v5527
          %v5530 = vmul.f32 %v5522, %v5528
          %v5531 = vadd.f32 %v5519, %v5529
          %v5532 = vadd.f32 %v5520, %v5530
          %v5533 = vsub.f32 %v5481, %v5483
          %v5534 = vsub.f32 %v5482, %v5484
          %v5535 = vmul.f32 %v5533, %v5533
          %v5536 = vmul.f32 %v5534, %v5534
          %v5537 = vmul.f32 %v5485, %v5535
          %v5538 = vmul.f32 %v5486, %v5536
          %v5539 = vadd.f32 %v5511, %v5531
          %v5540 = vadd.f32 %v5512, %v5532
          %v5541 = vmul.f32 %v5537, %v5539
          %v5542 = vmul.f32 %v5538, %v5540
          %5543 = vst [vmem:[#allocation6] sm:$0xff] %v5541
          %5544 = vst [vmem:[#allocation6 + $0x8] sm:$0xff] %v5542
        $region56: #{tpu_custom_call.1} parent=47 // pred_fallthru
          _
        // Predicated region
        $region57: #{tpu_custom_call.1} parent=47 // pred_check
          %p5545 = pneg %p254
        $region58: #{tpu_custom_call.1} parent=47 // pred_check_branch
          %5547 = sbr.rel (%p5545) target = $region60
        $region59: #{tpu_custom_call.1} parent=47 // pred_region
          %s5548 = smul.u32 2, %s25
          %s5550 = ssub.s32 256, 256
          %5551 = vsyncadd [#allocation7], %s5550
          %s5552 = smul.addr %s24, 2
          %s5553 = sadd.s32 %s5548, %s5552
          %s5554 = smul.addr %s5553, 128
          %s5555 = scalar_lea.hbm %s7, %s5554
          %s5557 = sshll.u32 [#allocation6], 4
          %s5558 = int_to_ptr.vmem [resolvable:$true] %s5557
          %5560 = dma.vmem_to_hbm [thread:$0]  %s5558, 256, %s5555, [#allocation7]
        $region60: #{tpu_custom_call.1} parent=47 // pred_fallthru
          _
        // Predicated region
        $region61: #{tpu_custom_call.1} parent=47 // pred_check
          %p5561 = pneg %p254
        $region62: #{tpu_custom_call.1} parent=47 // pred_check_branch
          %5563 = sbr.rel (%p5561) target = $region64
        $region63: #{tpu_custom_call.1} parent=47 // pred_region
          %5564 = dma.done [#allocation7], 256
        $region64: #{tpu_custom_call.1} parent=47 // pred_fallthru
          _
      $region48: #{tpu_custom_call.1} parent=5 // pred_fallthru
        _
      %p5565 = scmp.le.s32.totalorder 2, %s14
      // Predicated region
      $region65: #{tpu_custom_call.1} parent=5 // pred_check
        %p5566 = pneg %p5565
      $region66: #{tpu_custom_call.1} parent=5 // pred_check_branch
        %5568 = sbr.rel (%p5566) target = $region68
      $region67: #{tpu_custom_call.1} parent=5 // pred_region
        %s5569 = ssub.s32 %s14, 2
      $region68: #{tpu_custom_call.1} parent=5 // pred_fallthru
        _
    $region6: #{tpu_custom_call.1} parent=1 // loop_footer
      %s18 = sadd.s32 1, %s14
    $region7: #{tpu_custom_call.1} parent=1 // loop_footer_branch
      %13 = sbr.rel target = $region3
    $region8: #{tpu_custom_call.1} parent=1 // loop_exit
      _
    %5570 = vsyncpa [#allocation7], 1
    %s5571 = scalar_lea.sflag [#allocation7], 1
    %5572 = vsyncpa %s5571, 1

</llo_original>
